<compile_context>
chip_gen: v7x
topology: tpu7x:2x2x1
jax: 0.10.0
libtpu: 0.0.40
codegen_flags: <defaults>
</compile_context>

<pallas_src>
from functools import partial

import jax
import jax.numpy as jnp
from jax.experimental import pallas as pl
from jax.experimental.pallas import tpu as pltpu


# ------------------------------- small helpers -------------------------------

def _round_up(x, m):
    return (x + m - 1) // m * m


def _tpu_vmem():
    # v5e/v6e: 128 MiB physical VMEM per core; v7x: 64 MiB.  Leave headroom.
    try:
        cap = int(pltpu.get_tpu_info().vmem_capacity_bytes)
    except Exception:
        cap = 128 * 1024 * 1024
    limit = int(min(96 * 1024 * 1024, (cap * 3) // 4))
    return limit, cap < 100 * 1024 * 1024


_VMEM_LIMIT, _SMALL_VMEM = _tpu_vmem()
_BN_FUSED_MAX_ELEMS = 1 << 20                       # single-call BN below this
_EW_TARGET_BYTES = (2 if _SMALL_VMEM else 4) * 1024 * 1024


def _pick_tile(dim, cap, align):
    """Biggest tile <= cap (aligned) that splits `dim` into equal-ish steps."""
    d = _round_up(dim, align)
    if d <= cap:
        return d
    steps = -(-d // cap)
    return _round_up(-(-d // steps), align)


def _row_block(rows, c, lead=1, itemsize=2):
    """Row block for gridded elementwise kernels (VMEM-budget sized)."""
    blk = max(64, (_EW_TARGET_BYTES // (itemsize * max(c, 128) * lead)) // 64 * 64)
    return int(min(blk, _round_up(rows, 64)))


def _apply_act(y, act, neg_slope):
    if act == "relu":
        return jnp.maximum(y, 0.0)
    if act == "leaky":
        return jnp.where(y >= 0.0, y, neg_slope * y)
    return y


# ------------------------------- matmul core ---------------------------------

def _matmul_kernel(*refs, has_bias):
    """bf16 x bf16 -> f32 scratch accumulation over the k grid axis; optional
    bias and dtype cast in the final-k epilogue."""
    if has_bias:
        a_ref, b_ref, bias_ref, o_ref, acc_ref = refs
    else:
        a_ref, b_ref, o_ref, acc_ref = refs
        bias_ref = None
    k = pl.program_id(2)
    prod = jnp.dot(a_ref[...], b_ref[...], preferred_element_type=jnp.float32)

    @pl.when(k == 0)
    def _():
        acc_ref[...] = prod

    @pl.when(k != 0)
    def _():
        acc_ref[...] += prod

    @pl.when(k == pl.num_programs(2) - 1)
    def _():
        r = acc_ref[...]
        if bias_ref is not None:
            r = r + bias_ref[...]
        o_ref[...] = r.astype(o_ref.dtype)


def pallas_matmul_bias(a, b, bias=None, out_dtype=jnp.bfloat16):
    """a: (M, K), b: (K, N) -> (M, N) in `out_dtype` (accumulation is f32)."""
    M, K = a.shape
    _, N = b.shape

    tk = _pick_tile(K, 2048 if _SMALL_VMEM else 4096, 128)
    tm_cap = int(min(1024, max(256, ((512 * 1024) // (2 * tk)) // 16 * 16)))
    tm = _pick_tile(M, tm_cap, 16)
    tn = _pick_tile(N, 512, 128)
    # keep >=2 output tiles where possible so both v7x TensorCores get work
    if (-(-M // tm)) * (-(-N // tn)) == 1 and tn % 256 == 0:
        tn //= 2

    Mp, Kp, Np = _round_up(M, tm), _round_up(K, tk), _round_up(N, tn)
    a = jnp.pad(a.astype(jnp.bfloat16), ((0, Mp - M), (0, Kp - K)))
    b = jnp.pad(b.astype(jnp.bfloat16), ((0, Kp - K), (0, Np - N)))

    ops = [a, b]
    in_specs = [pl.BlockSpec((tm, tk), lambda i, j, k: (i, k)),
                pl.BlockSpec((tk, tn), lambda i, j, k: (k, j))]
    if bias is not None:
        ops.append(jnp.pad(bias.reshape(1, N).astype(jnp.float32),
                           ((0, 0), (0, Np - N))))
        in_specs.append(pl.BlockSpec((1, tn), lambda i, j, k: (0, j)))

    out = pl.pallas_call(
        partial(_matmul_kernel, has_bias=bias is not None),
        out_shape=jax.ShapeDtypeStruct((Mp, Np), out_dtype),
        grid_spec=pltpu.PrefetchScalarGridSpec(
            num_scalar_prefetch=0,
            grid=(Mp // tm, Np // tn, Kp // tk),
            in_specs=in_specs,
            out_specs=pl.BlockSpec((tm, tn), lambda i, j, k: (i, j)),
            scratch_shapes=[pltpu.VMEM((tm, tn), jnp.float32)]),
        compiler_params=pltpu.CompilerParams(
            dimension_semantics=("parallel", "parallel", "arbitrary"),
            vmem_limit_bytes=_VMEM_LIMIT),
    )(*ops)
    return out[:M, :N]


# ------------------------ direct 3x3 stride-1 conv ----------------------------

def _direct_conv3_kernel(*refs, Ho, Wo, has_bias):
    """Reads one padded NHWC image block and a (9, Cin, cn) weight block; the
    9-tap reduction runs in VMEM (no im2col in HBM)."""
    if has_bias:
        x_ref, w_ref, b_ref, o_ref = refs
    else:
        x_ref, w_ref, o_ref = refs
        b_ref = None
    cin = x_ref.shape[-1]
    cn = o_ref.shape[-1]
    xb = x_ref[0]                                   # (Ho+2, Wo+2, Cin)
    acc = None
    for t in range(9):
        ti, tj = t // 3, t % 3
        a = jax.lax.slice(xb, (ti, tj, 0), (ti + Ho, tj + Wo, cin))
        p = jnp.dot(a.reshape(Ho * Wo, cin), w_ref[t],
                    preferred_element_type=jnp.float32)
        acc = p if acc is None else acc + p
    if b_ref is not None:
        acc = acc + b_ref[...]
    o_ref[...] = acc.reshape(1, Ho, Wo, cn).astype(o_ref.dtype)


def _conv3x3_direct(x, w, b):
    """3x3 / stride 1 / padding 1 conv, NHWC bf16 in -> bf16 out."""
    N, H, W, Cin = x.shape
    Cout = w.shape[-1]
    xp = jnp.pad(x, ((0, 0), (1, 1), (1, 1), (0, 0)))
    w2 = w.reshape(9, Cin, Cout).astype(jnp.bfloat16)

    cn = Cout
    while 9 * Cin * cn * 2 > 10 * 1024 * 1024 and cn % 2 == 0 and cn > 128:
        cn //= 2

    ops = [xp, w2]
    in_specs = [pl.BlockSpec((1, H + 2, W + 2, Cin), lambda j, n: (n, 0, 0, 0)),
                pl.BlockSpec((9, Cin, cn), lambda j, n: (0, 0, j))]
    if b is not None:
        ops.append(b.reshape(1, Cout).astype(jnp.float32))
        in_specs.append(pl.BlockSpec((1, cn), lambda j, n: (0, j)))

    return pl.pallas_call(
        partial(_direct_conv3_kernel, Ho=H, Wo=W, has_bias=b is not None),
        out_shape=jax.ShapeDtypeStruct((N, H, W, Cout), jnp.bfloat16),
        grid_spec=pltpu.PrefetchScalarGridSpec(
            num_scalar_prefetch=0,
            grid=(Cout // cn, N),          # batch innermost: weight stays resident
            in_specs=in_specs,
            out_specs=pl.BlockSpec((1, H, W, cn), lambda j, n: (n, 0, 0, j))),
        compiler_params=pltpu.CompilerParams(
            dimension_semantics=("parallel", "parallel"),
            vmem_limit_bytes=_VMEM_LIMIT),
    )(*ops)


# ------------------------------ layer wrappers --------------------------------

@partial(jax.jit, static_argnames=("stride", "padding"))
def conv2d(x, w, b=None, *, stride, padding):
    """x: (N,H,W,Cin) NHWC, w: (kh,kw,Cin,Cout), optional bias (Cout,)."""
    x = x.astype(jnp.bfloat16)
    N, H, W, Cin = x.shape
    kh, kw, _, Cout = w.shape
    Ho = (H + 2 * padding - kh) // stride + 1
    Wo = (W + 2 * padding - kw) // stride + 1

    if kh == 3 and kw == 3 and stride == 1 and padding == 1 and W % 8 == 0:
        return _conv3x3_direct(x, w, b)

    if kh == 1 and kw == 1 and padding == 0:
        xs = x[:, ::stride, ::stride, :] if stride > 1 else x
        cols = xs.reshape(N * Ho * Wo, Cin)
    else:
        # TODO(synk): the stem 7x7, the few stride-2 3x3 convs and the W=4
        # layer4/enc convs still go through an im2col materialization; they
        # are small in this model.
        xp = jnp.pad(x, ((0, 0), (padding, padding), (padding, padding), (0, 0)))
        views = [xp[:, i:i + stride * (Ho - 1) + 1:stride,
                    j:j + stride * (Wo - 1) + 1:stride, :]
                 for i in range(kh) for j in range(kw)]
        cols = jnp.concatenate(views, axis=-1).reshape(N * Ho * Wo, kh * kw * Cin)
    out = pallas_matmul_bias(cols, w.reshape(kh * kw * Cin, Cout), bias=b)
    return out.reshape(N, Ho, Wo, Cout)


@jax.jit
def conv_transpose2d_s2(x, w_eq, b):
    """ConvTranspose2d(k=3, stride=2, padding=1, output_padding=1) decomposed
    into its 4 output phases (no zero-dilated input, ~4x fewer MACs).

    w_eq is stored as the equivalent-conv kernel (kh, kw, Cin, Cout), i.e. the
    spatially flipped, channel-transposed PyTorch ConvTranspose2d weight."""
    x = x.astype(jnp.bfloat16)
    w_eq = w_eq.astype(jnp.bfloat16)
    N, H, W, Cin = x.shape
    Cout = w_eq.shape[-1]
    xp = jnp.pad(x, ((0, 0), (0, 1), (0, 1), (0, 0)))
    M = N * H * W
    t00 = x.reshape(M, Cin)
    t01 = xp[:, :H, 1:, :].reshape(M, Cin)
    t10 = xp[:, 1:, :W, :].reshape(M, Cin)
    t11 = xp[:, 1:, 1:, :].reshape(M, Cin)

    y_ee = pallas_matmul_bias(t00, w_eq[1, 1], bias=b)
    y_eo = pallas_matmul_bias(
        jnp.concatenate([t00, t01], axis=1),
        jnp.concatenate([w_eq[1, 0], w_eq[1, 2]], axis=0), bias=b)
    y_oe = pallas_matmul_bias(
        jnp.concatenate([t00, t10], axis=1),
        jnp.concatenate([w_eq[0, 1], w_eq[2, 1]], axis=0), bias=b)
    y_oo = pallas_matmul_bias(
        jnp.concatenate([t00, t01, t10, t11], axis=1),
        jnp.concatenate([w_eq[0, 0], w_eq[0, 2], w_eq[2, 0], w_eq[2, 2]],
                        axis=0), bias=b)

    rs = lambda y: y.reshape(N, H, W, Cout)
    row_e = jnp.stack([rs(y_ee), rs(y_eo)], axis=3).reshape(N, H, 2 * W, Cout)
    row_o = jnp.stack([rs(y_oe), rs(y_oo)], axis=3).reshape(N, H, 2 * W, Cout)
    return jnp.stack([row_e, row_o], axis=2).reshape(N, 2 * H, 2 * W, Cout)


# --------------------------------- BatchNorm ----------------------------------

def _bn_fused_kernel(*refs, act, neg_slope, has_res, inv_n):
    """Single-call BN: stats + normalize + affine (+residual) (+activation)."""
    if has_res:
        x_ref, res_ref, g_ref, b_ref, o_ref = refs
    else:
        x_ref, g_ref, b_ref, o_ref = refs
        res_ref = None
    x = x_ref[...].astype(jnp.float32)                 # (G, Rg, C)
    mean = jnp.sum(x, axis=1, keepdims=True) * inv_n
    xc = x - mean
    var = jnp.sum(xc * xc, axis=1, keepdims=True) * inv_n
    rstd = jax.lax.rsqrt(var + 1e-5)
    y = xc * (rstd * g_ref[...]) + b_ref[...]
    if res_ref is not None:
        y = y + res_ref[...].astype(jnp.float32)
    o_ref[...] = _apply_act(y, act, neg_slope).astype(o_ref.dtype)


def _bn_stats_kernel(x_ref, sum_ref, sq_ref):
    """Pass 1: per-group per-channel sum / sum-of-squares (resident output)."""
    @pl.when(pl.program_id(0) == 0)
    def _():
        sum_ref[...] = jnp.zeros_like(sum_ref)
        sq_ref[...] = jnp.zeros_like(sq_ref)

    x = x_ref[...].astype(jnp.float32)                 # (G, rb, C)
    sum_ref[...] += jnp.sum(x, axis=1)
    sq_ref[...] += jnp.sum(x * x, axis=1)


def _bn_apply_kernel(*refs, act, neg_slope, has_res):
    """Pass 2: y = x*scale + shift (+ residual) (+ activation)."""
    if has_res:
        x_ref, res_ref, scale_ref, shift_ref, o_ref = refs
    else:
        x_ref, scale_ref, shift_ref, o_ref = refs
        res_ref = None
    y = x_ref[...].astype(jnp.float32) * scale_ref[...] + shift_ref[...]
    if res_ref is not None:
        y = y + res_ref[...].astype(jnp.float32)
    o_ref[...] = _apply_act(y, act, neg_slope).astype(o_ref.dtype)


@partial(jax.jit, static_argnames=("act", "groups", "out_dtype"))
def bn_act(x, gamma, beta, residual=None, *, act, groups=1,
           out_dtype=jnp.bfloat16):
    """Training-mode BatchNorm with per-`group` batch statistics (groups=2 when
    the source and target streams are batched together, preserving the exact
    semantics of PyTorch's two separate forward calls), followed by an optional
    fused residual add and activation.  Works for BN2d (NHWC) and BN1d (N,C)."""
    eps = 1e-5
    shp = x.shape
    C = shp[-1]
    R = x.size // C
    assert R % groups == 0
    Rg = R // groups
    has_res = residual is not None

    x3 = x.reshape(groups, Rg, C)
    r3 = residual.reshape(groups, Rg, C) if has_res else None
    g = gamma.reshape(1, 1, C).astype(jnp.float32)
    b = beta.reshape(1, 1, C).astype(jnp.float32)

    # ---- small tensors: one fused kernel ------------------------------------
    if x.size <= _BN_FUSED_MAX_ELEMS:
        ops = [x3] + ([r3] if has_res else []) + [g, b]
        vm = pl.BlockSpec(memory_space=pltpu.MemorySpace.VMEM)
        out = pl.pallas_call(
            partial(_bn_fused_kernel, act=act, neg_slope=0.2, has_res=has_res,
                    inv_n=1.0 / Rg),
            out_shape=jax.ShapeDtypeStruct((groups, Rg, C), out_dtype),
            in_specs=[vm] * len(ops),
            out_specs=vm,
            compiler_params=pltpu.CompilerParams(vmem_limit_bytes=_VMEM_LIMIT),
        )(*ops)
        return out.reshape(shp)

    # ---- large tensors: gridded two-pass scheme ------------------------------
    itemsize = jnp.dtype(x.dtype).itemsize
    rb = _row_block(Rg, C, groups, itemsize)
    Rp = _round_up(Rg, rb)
    pad = Rp - Rg
    x3p = jnp.pad(x3, ((0, 0), (0, pad), (0, 0))) if pad else x3

    data_spec = pl.BlockSpec((groups, rb, C), lambda r: (0, r, 0))
    vec_spec = pl.BlockSpec((groups, 1, C), lambda r: (0, 0, 0))

    s, sq = pl.pallas_call(
        _bn_stats_kernel,
        out_shape=(jax.ShapeDtypeStruct((groups, C), jnp.float32),
                   jax.ShapeDtypeStruct((groups, C), jnp.float32)),
        grid_spec=pltpu.PrefetchScalarGridSpec(
            num_scalar_prefetch=0,
            grid=(Rp // rb,),
            in_specs=[data_spec],
            out_specs=(pl.BlockSpec((groups, C), lambda r: (0, 0)),
                       pl.BlockSpec((groups, C), lambda r: (0, 0)))),
        compiler_params=pltpu.CompilerParams(
            dimension_semantics=("arbitrary",),
            vmem_limit_bytes=_VMEM_LIMIT),
    )(x3p)

    mean = s / Rg
    var = jnp.maximum(sq / Rg - mean * mean, 0.0)
    rstd = jax.lax.rsqrt(var + eps)
    g2 = gamma.reshape(1, C).astype(jnp.float32)
    b2 = beta.reshape(1, C).astype(jnp.float32)
    scale = (rstd * g2).reshape(groups, 1, C)
    shift = (b2 - mean * rstd * g2).reshape(groups, 1, C)

    ops = [x3p]
    in_specs = [data_spec]
    if has_res:
        r3p = jnp.pad(r3, ((0, 0), (0, pad), (0, 0))) if pad else r3
        ops.append(r3p)
        in_specs.append(data_spec)
    ops += [scale, shift]
    in_specs += [vec_spec, vec_spec]

    out = pl.pallas_call(
        partial(_bn_apply_kernel, act=act, neg_slope=0.2, has_res=has_res),
        out_shape=jax.ShapeDtypeStruct((groups, Rp, C), out_dtype),
        grid_spec=pltpu.PrefetchScalarGridSpec(
            num_scalar_prefetch=0,
            grid=(Rp // rb,),
            in_specs=in_specs,
            out_specs=data_spec),
        compiler_params=pltpu.CompilerParams(
            dimension_semantics=("parallel",),
            vmem_limit_bytes=_VMEM_LIMIT),
    )(*ops)
    return out[:, :Rg, :].reshape(shp)


# --------------------------- add / pool / linear -------------------------------

def _add_act_kernel(a_ref, b_ref, o_ref, *, relu):
    y = a_ref[...].astype(jnp.float32) + b_ref[...].astype(jnp.float32)
    if relu:
        y = jnp.maximum(y, 0.0)
    o_ref[...] = y.astype(o_ref.dtype)


@partial(jax.jit, static_argnames=("relu",))
def add_act(a, b, *, relu):
    shp = a.shape
    C = shp[-1]
    R = a.size // C
    rb = _row_block(R, C, 1, jnp.dtype(a.dtype).itemsize)
    Rp = _round_up(R, rb)
    pad = Rp - R
    a2 = a.reshape(R, C)
    b2 = b.reshape(R, C)
    if pad:
        a2 = jnp.pad(a2, ((0, pad), (0, 0)))
        b2 = jnp.pad(b2, ((0, pad), (0, 0)))
    out = pl.pallas_call(
        partial(_add_act_kernel, relu=relu),
        out_shape=jax.ShapeDtypeStruct((Rp, C), a.dtype),
        grid_spec=pltpu.PrefetchScalarGridSpec(
            num_scalar_prefetch=0,
            grid=(Rp // rb,),
            in_specs=[pl.BlockSpec((rb, C), lambda r: (r, 0)),
                      pl.BlockSpec((rb, C), lambda r: (r, 0))],
            out_specs=pl.BlockSpec((rb, C), lambda r: (r, 0))),
        compiler_params=pltpu.CompilerParams(
            dimension_semantics=("parallel",),
            vmem_limit_bytes=_VMEM_LIMIT),
    )(a2, b2)
    return out[:R].reshape(shp)


@jax.jit
def maxpool_3x3_s2_p1(x):
    """nn.MaxPool2d(3, stride=2, padding=1) on NHWC.
    TODO(synk): left to a fused XLA max over the 9 shifted views (no 9x HBM
    stack); a Pallas version would need strided sublane slicing for no
    bandwidth benefit."""
    N, H, W, C = x.shape
    Ho = (H + 2 - 3) // 2 + 1
    Wo = (W + 2 - 3) // 2 + 1
    xp = jnp.pad(x, ((0, 0), (1, 1), (1, 1), (0, 0)),
                 constant_values=-jnp.inf)
    out = None
    for i in range(3):
        for j in range(3):
            v = xp[:, i:i + 2 * (Ho - 1) + 1:2, j:j + 2 * (Wo - 1) + 1:2, :]
            out = v if out is None else jnp.maximum(out, v)
    return out


def _mean_axis1_kernel(x_ref, o_ref):
    o_ref[...] = jnp.mean(x_ref[...].astype(jnp.float32), axis=1)


@jax.jit
def avgpool_flatten(x):
    """nn.AvgPool2d((8,4)) on an (N,8,4,C) map + flatten -> (N, C) f32."""
    N, H, W, C = x.shape
    vm = pl.BlockSpec(memory_space=pltpu.MemorySpace.VMEM)
    return pl.pallas_call(
        _mean_axis1_kernel,
        out_shape=jax.ShapeDtypeStruct((N, C), jnp.float32),
        in_specs=[vm],
        out_specs=vm,
        compiler_params=pltpu.CompilerParams(vmem_limit_bytes=_VMEM_LIMIT),
    )(x.reshape(N, H * W, C))


@jax.jit
def linear(x, w, b):
    return pallas_matmul_bias(x, w, bias=b, out_dtype=jnp.float32)


# ------------------------------- model graph ---------------------------------

def bottleneck_fwd(x, p, groups):
    out = conv2d(x, p["conv1"], stride=1, padding=0)
    out = bn_act(out, p["bn1g"], p["bn1b"], act="relu", groups=groups)
    out = conv2d(out, p["conv2"], stride=p["stride"], padding=1)
    out = bn_act(out, p["bn2g"], p["bn2b"], act="relu", groups=groups)
    out = conv2d(out, p["conv3"], stride=1, padding=0)
    if "convd" in p:
        identity = conv2d(x, p["convd"], stride=p["stride"], padding=0)
        identity = bn_act(identity, p["bndg"], p["bndb"], act="none",
                          groups=groups)
    else:
        identity = x
    # bn3 + residual add + final ReLU fused into a single BN kernel
    return bn_act(out, p["bn3g"], p["bn3b"], residual=identity, act="relu",
                  groups=groups)


def layer_fwd(x, blocks, groups):
    for p in blocks:
        x = bottleneck_fwd(x, p, groups)
    return x


def base_encoder_fwd(x, P, groups):
    # resnet50 children [:-3]: conv1, bn1, relu, maxpool, layer1..3
    x = conv2d(x, P["conv1"], stride=2, padding=3)
    x = bn_act(x, P["bn1g"], P["bn1b"], act="relu", groups=groups)
    x = maxpool_3x3_s2_p1(x)
    x = layer_fwd(x, P["layer1"], groups)
    x = layer_fwd(x, P["layer2"], groups)
    x = layer_fwd(x, P["layer3"], groups)
    return x


def decoder_fwd(x, P, groups):
    x = conv_transpose2d_s2(x, P["w1"], P["b1"])
    x = bn_act(x, P["g1"], P["be1"], act="leaky", groups=groups)
    # stride-1 ConvTranspose2d(pad=1) == stride-1 conv with the equivalent
    # (flipped/transposed) kernel, which is how the weights are stored.
    x = conv2d(x, P["w2"], P["b2"], stride=1, padding=1)
    x = bn_act(x, P["g2"], P["be2"], act="leaky", groups=groups)
    x = conv2d(x, P["w3"], P["b3"], stride=1, padding=1)
    x = bn_act(x, P["g3"], P["be3"], act="leaky", groups=groups)
    return x


def classifier_fwd(f, P):
    # Classifier(BN=True, Drop=False): BatchNorm1d -> Linear
    f = bn_act(f, P["gamma"], P["beta"], act="none", groups=1,
               out_dtype=jnp.float32)
    return linear(f, P["w"], P["bias"])


def adaptreid_forward(params, image_s_nchw, image_t_nchw):
    """train_mode forward of AdaptReID_model.  Inputs / 4-D outputs are NCHW.

    The source and target streams share weights for the base encoder,
    encoder_c and decoder, so they are run as one batched pass; BN statistics
    are computed per stream (groups=2) to match PyTorch's separate calls."""
    image_s = jnp.transpose(image_s_nchw, (0, 2, 3, 1))
    image_t = jnp.transpose(image_t_nchw, (0, 2, 3, 1))
    B = image_s.shape[0]
    images = jnp.concatenate([image_s, image_t], axis=0)

    feature = base_encoder_fwd(images, params["base"], groups=2)
    feature_s, feature_t = feature[:B], feature[B:]

    feature_ec = layer_fwd(feature, params["enc_c"], groups=2)

    feature_s_es = layer_fwd(feature_s, params["enc_s"], groups=1)
    feature_t_et = layer_fwd(feature_t, params["enc_t"], groups=1)

    pooled = avgpool_flatten(jnp.concatenate(
        [feature_s_es, feature_ec[:B], feature_t_et, feature_ec[B:]], axis=0))
    feature_s_es_avg = pooled[:B]
    feature_s_ec_avg = pooled[B:2 * B]
    feature_t_et_avg = pooled[2 * B:3 * B]
    feature_t_ec_avg = pooled[3 * B:]

    feature_priv = jnp.concatenate([feature_s_es, feature_t_et], axis=0)
    feature_sum = add_act(feature_ec, feature_priv, relu=False)
    image_rec = decoder_fwd(feature_sum, params["dec"], groups=2)
    image_s_rec, image_t_rec = image_rec[:B], image_rec[B:]

    pred_s = classifier_fwd(feature_s_ec_avg, params["cls"])

    to_nchw = lambda a: jnp.transpose(a.astype(jnp.float32), (0, 3, 1, 2))
    return (to_nchw(feature_s), to_nchw(feature_t),
            feature_s_es_avg, feature_s_ec_avg,
            feature_t_et_avg, feature_t_ec_avg,
            to_nchw(image_s_rec), to_nchw(image_t_rec), pred_s)


# ---------------------------- parameter building -----------------------------

class _KeyGen:
    def __init__(self, key):
        self._key = key

    def __call__(self):
        self._key, sub = jax.random.split(self._key)
        return sub


def _conv_w(kg, kh, kw, cin, cout):
    std = (2.0 / (kh * kw * cin)) ** 0.5
    return std * jax.random.normal(kg(), (kh, kw, cin, cout), jnp.float32)


def _bn_p(c):
    return jnp.ones((c,), jnp.float32), jnp.zeros((c,), jnp.float32)


def _make_bottleneck(kg, inplanes, planes, stride, downsample):
    p = {"stride": stride}
    p["conv1"] = _conv_w(kg, 1, 1, inplanes, planes)
    p["bn1g"], p["bn1b"] = _bn_p(planes)
    p["conv2"] = _conv_w(kg, 3, 3, planes, planes)
    p["bn2g"], p["bn2b"] = _bn_p(planes)
    p["conv3"] = _conv_w(kg, 1, 1, planes, planes * 4)
    p["bn3g"], p["bn3b"] = _bn_p(planes * 4)
    if downsample:
        p["convd"] = _conv_w(kg, 1, 1, inplanes, planes * 4)
        p["bndg"], p["bndb"] = _bn_p(planes * 4)
    return p


def _make_layer(kg, inplanes, planes, nblocks, stride):
    blocks = [_make_bottleneck(kg, inplanes, planes, stride, True)]
    for _ in range(nblocks - 1):
        blocks.append(_make_bottleneck(kg, planes * 4, planes, 1, False))
    return blocks


def _make_decoder(kg, cin, cout):
    # weights are stored directly as equivalent-conv kernels (kh, kw, Cin, Cout)
    d = {}
    d["w1"] = _conv_w(kg, 3, 3, cin, cout)
    d["b1"] = 0.1 * jax.random.normal(kg(), (cout,), jnp.float32)
    d["g1"], d["be1"] = _bn_p(cout)
    d["w2"] = _conv_w(kg, 3, 3, cout, cout)
    d["b2"] = 0.1 * jax.random.normal(kg(), (cout,), jnp.float32)
    d["g2"], d["be2"] = _bn_p(cout)
    d["w3"] = _conv_w(kg, 3, 3, cout, cout)
    d["b3"] = 0.1 * jax.random.normal(kg(), (cout,), jnp.float32)
    d["g3"], d["be3"] = _bn_p(cout)
    return d


def build_params(key, num_classes):
    kg = _KeyGen(key)
    base = {"conv1": _conv_w(kg, 7, 7, 3, 64)}
    base["bn1g"], base["bn1b"] = _bn_p(64)
    base["layer1"] = _make_layer(kg, 64, 64, 3, 1)
    base["layer2"] = _make_layer(kg, 256, 128, 4, 2)
    base["layer3"] = _make_layer(kg, 512, 256, 6, 2)

    cls = {}
    cls["gamma"], cls["beta"] = _bn_p(2048)
    cls["w"] = (1.0 / 2048.0) ** 0.5 * jax.random.normal(
        kg(), (2048, num_classes), jnp.float32)
    cls["bias"] = jnp.zeros((num_classes,), jnp.float32)

    return {
        "base": base,
        "enc_t": _make_layer(kg, 1024, 512, 3, 2),   # resnet50 layer4 copies
        "enc_c": _make_layer(kg, 1024, 512, 3, 2),
        "enc_s": _make_layer(kg, 1024, 512, 3, 2),
        "dec": _make_decoder(kg, 2048, 1024),        # ch_list[0] -> ch_list[1]
        "cls": cls,
    }


# ----------------------------------- main -------------------------------------

if __name__ == "__main__":
    root = jax.random.PRNGKey(0)
    pkey, skey, tkey = jax.random.split(root, 3)

    # classifier_input_dim=2048 (implied by AvgPool2d((8,4)) on the 2048-ch
    # layer4 output), classifier_output_dim=16 (small synthetic #ids).
    params = build_params(pkey, num_classes=16)

    # AvgPool2d((8,4)) + total stride 32 of resnet50 implies 256x128 inputs
    # (the standard ReID crop); batch=2.
    image_s = jax.random.normal(skey, (2, 3, 256, 128), jnp.float32)
    image_t = jax.random.normal(tkey, (2, 3, 256, 128), jnp.float32)

    outs = adaptreid_forward(params, image_s, image_t)
    outs = jax.block_until_ready(outs)

    (feature_s, feature_t, fs_es_avg, fs_ec_avg, ft_et_avg, ft_ec_avg,
     image_s_rec, image_t_rec, pred_s) = outs

    assert feature_s.shape == (2, 1024, 16, 8)
    assert feature_t.shape == (2, 1024, 16, 8)
    assert fs_es_avg.shape == (2, 2048)
    assert fs_ec_avg.shape == (2, 2048)
    assert ft_et_avg.shape == (2, 2048)
    assert ft_ec_avg.shape == (2, 2048)
    assert image_s_rec.shape == (2, 1024, 16, 8)   # Decoder only has block1
    assert image_t_rec.shape == (2, 1024, 16, 8)
    assert pred_s.shape == (2, 16)

    print("KERNEL_OK")
</pallas_src>

<mosaic_0001>
module attributes {stable_mosaic.version = 11 : i64} {
  func.func @_matmul_kernel(%arg0: i32, %arg1: i32, %arg2: i32, %arg3: memref<1024x256xbf16, #tpu.memory_space<vmem>>, %arg4: memref<256x128xbf16, #tpu.memory_space<vmem>>, %arg5: memref<1024x128xbf16, #tpu.memory_space<vmem>>, %arg6: memref<1024x128xf32, #tpu.memory_space<vmem>>) attributes {dimension_semantics = [#tpu.dimension_semantics<parallel>, #tpu.dimension_semantics<parallel>, #tpu.dimension_semantics<arbitrary>], iteration_bounds = array<i64: 32, 1, 1>, scalar_prefetch = 0 : i64, scratch_operands = 1 : i64, tpu.core_type = #tpu.core_type<tc>, window_params = [{transform_indices = @transform_0, window_bounds = array<i64: 1024, 256>}, {transform_indices = @transform_1, window_bounds = array<i64: 256, 128>}, {transform_indices = @transform_2, window_bounds = array<i64: 1024, 128>}]} {
    %c0 = arith.constant 0 : index
    %c0_0 = arith.constant 0 : index
    %0 = vector.load %arg3[%c0, %c0_0] : memref<1024x256xbf16, #tpu.memory_space<vmem>>, vector<1024x256xbf16>
    %c0_1 = arith.constant 0 : index
    %c0_2 = arith.constant 0 : index
    %1 = vector.load %arg4[%c0_1, %c0_2] : memref<256x128xbf16, #tpu.memory_space<vmem>>, vector<256x128xbf16>
    %cst = arith.constant dense<0.000000e+00> : vector<1024x128xf32>
    %2 = tpu.matmul %0, %1, %cst {dimension_numbers = #tpu.dot_dimension_numbers<[1], [0], [0], [1], [0, 0, 1, 1], [], []>} : vector<1024x256xbf16>, vector<256x128xbf16>, vector<1024x128xf32> -> vector<1024x128xf32>
    %c0_i32 = arith.constant 0 : i32
    %3 = arith.cmpi eq, %arg2, %c0_i32 : i32
    %4 = arith.extui %3 : i1 to i32
    %c0_i32_3 = arith.constant 0 : i32
    %5 = arith.cmpi ne, %4, %c0_i32_3 : i32
    scf.if %5 {
      %c0_8 = arith.constant 0 : index
      %c0_9 = arith.constant 0 : index
      %12 = vector.load %arg6[%c0_8, %c0_9] : memref<1024x128xf32, #tpu.memory_space<vmem>>, vector<1024x128xf32>
      tpu.vector_store %arg6[%c0_8, %c0_9], %2 {strides = array<i32>} : memref<1024x128xf32, #tpu.memory_space<vmem>>, vector<1024x128xf32>,
    } else {
    }
    %c0_i32_4 = arith.constant 0 : i32
    %6 = arith.cmpi ne, %arg2, %c0_i32_4 : i32
    %7 = arith.extui %6 : i1 to i32
    %c0_i32_5 = arith.constant 0 : i32
    %8 = arith.cmpi ne, %7, %c0_i32_5 : i32
    scf.if %8 {
      %c0_8 = arith.constant 0 : index
      %c0_9 = arith.constant 0 : index
      %12 = vector.load %arg6[%c0_8, %c0_9] : memref<1024x128xf32, #tpu.memory_space<vmem>>, vector<1024x128xf32>
      %13 = arith.addf %12, %2 : vector<1024x128xf32>
      %c0_10 = arith.constant 0 : index
      %c0_11 = arith.constant 0 : index
      %14 = vector.load %arg6[%c0_10, %c0_11] : memref<1024x128xf32, #tpu.memory_space<vmem>>, vector<1024x128xf32>
      tpu.vector_store %arg6[%c0_10, %c0_11], %13 {strides = array<i32>} : memref<1024x128xf32, #tpu.memory_space<vmem>>, vector<1024x128xf32>,
    } else {
    }
    %c0_i32_6 = arith.constant 0 : i32
    %9 = arith.cmpi eq, %arg2, %c0_i32_6 : i32
    %10 = arith.extui %9 : i1 to i32
    %c0_i32_7 = arith.constant 0 : i32
    %11 = arith.cmpi ne, %10, %c0_i32_7 : i32
    scf.if %11 {
      %c0_8 = arith.constant 0 : index
      %c0_9 = arith.constant 0 : index
      %12 = vector.load %arg6[%c0_8, %c0_9] : memref<1024x128xf32, #tpu.memory_space<vmem>>, vector<1024x128xf32>
      %13 = arith.truncf %12 : vector<1024x128xf32> to vector<1024x128xbf16>
      %c0_10 = arith.constant 0 : index
      %c0_11 = arith.constant 0 : index
      %14 = vector.load %arg5[%c0_10, %c0_11] : memref<1024x128xbf16, #tpu.memory_space<vmem>>, vector<1024x128xbf16>
      tpu.vector_store %arg5[%c0_10, %c0_11], %13 {strides = array<i32>} : memref<1024x128xbf16, #tpu.memory_space<vmem>>, vector<1024x128xbf16>,
    } else {
    }
    return
  }
  func.func @transform_0(%arg0: i32, %arg1: i32, %arg2: i32) -> (i32, i32) {
    %c0_i32 = arith.constant 0 : i32
    return %arg0, %arg2 : i32, i32
  }
  func.func @transform_1(%arg0: i32, %arg1: i32, %arg2: i32) -> (i32, i32) {
    %c0_i32 = arith.constant 0 : i32
    return %arg2, %arg1 : i32, i32
  }
  func.func @transform_2(%arg0: i32, %arg1: i32, %arg2: i32) -> (i32, i32) {
    %c0_i32 = arith.constant 0 : i32
    return %arg0, %arg1 : i32, i32
  }
}

</mosaic_0001>

<llo_original>
// kernel: conv2d.1
$region0: #{conv2d.1}
  #allocation0 [shape = 'u32[]', space=smem, size = 0x4, offset = 0x4, fixed_abs, tag = 'smem constant byte address 0x4 - core index']
  #allocation1 [shape = 'u32[144,128]{1,0:T(1,128)}', space=vmem, size = 0x12000, scoped, tag = 'internal scratch']
  #allocation2 [shape = 'f32[1024,128]{1,0:T(8,128)}', space=vmem, size = 0x80000, scoped, tag = 'scratch operand']
  %s0 = inlined_call_operand.hbm [shape: bf16[32768,256], index: 0, kind: input, shape index: {}]
  %s1 = inlined_call_operand.hbm [shape: bf16[256,128], index: 1, kind: input, shape index: {}]
  %s2 = inlined_call_operand.hbm [shape: bf16[32768,128], index: 2, kind: output, shape index: {}]
  %s3 = sld [smem:[#allocation0]]
  $region61: #{conv2d.1} parent=0
    _
  %s5 = ssub.s32 1, %s3
  %s6 = scalar_select 0, %s5, %s3
  $region1: #{conv2d.1} parent=0
    #allocation3 [shape = 'u8[1048576]{0}', space=vmem, size = 0x100000, scoped, tag = 'input window, operand 0']
    #allocation4 [shape = 's32[2]{0}', space=sflag, size = 0x8, scoped, tag = 'scoped memory for conv2d.1']
    #allocation5 [shape = 's32[2]{0}', space=sflag, size = 0x8, scoped, tag = 'scoped memory for conv2d.1']
    #allocation6 [shape = 'u8[65536]{0}', space=vmem, size = 0x10000, scoped, tag = 'input window, operand 1, single buffered']
    #allocation7 [shape = 's32[1]{0}', space=sflag, size = 0x4, scoped, tag = 'scoped memory for conv2d.1']
    #allocation8 [shape = 'u8[524288]{0}', space=vmem, size = 0x80000, scoped, tag = 'output window, operand 0']
    %7 = vsyncpa [#allocation4], 0
    %s8 = scalar_lea.sflag [#allocation4], 1
    %9 = vsyncpa %s8, 0
    %10 = vsyncpa [#allocation7], 0
    %11 = vsyncpa [#allocation5], 0
    %s12 = scalar_lea.sflag [#allocation5], 1
    %13 = vsyncpa %s12, 0
    loop: start=0, step=1, limit=34
    $region2: #{conv2d.1} parent=1 // loop_pre_header
      _
    $region3: #{conv2d.1} parent=1 // loop_header
      %s15 = sphi 0, %s19
      %p16 = scmp.ge.s32.totalorder %s15, 34
      %s22 = sphi 0, %s41
      %s23 = sphi 0, %s37
      %s24 = sphi 0, %s33
      %s25 = sphi 0, %s22
      %s26 = sphi 0, %s23
      %s27 = sphi 0, %s24
      %s28 = sphi 0, %s25
      %s29 = sphi 0, %s26
      %s30 = sphi 0, %s27
      %s46 = sphi 0, %s48
      %s49 = sphi 0, %s46
      %s50 = sphi 0, %s49
      %s66 = sphi 0, %s50
      %s74 = sphi 0, %s76
      %s77 = sphi 0, %s74
      %s78 = sphi 0, %s77
      %s94 = sphi 0, %s78
      %s102 = sphi 0, %s104
      %s105 = sphi 0, %s102
      %s106 = sphi 0, %s105
      %s122 = sphi 0, %s106
    $region4: #{conv2d.1} parent=1 // loop_header_branch
      %18 = sbr.rel (%p16) target = $region8
    $region5: #{conv2d.1} parent=1 // loop_body
      %s20 = ssub.s32 %s15, 1
      %s21 = ssub.s32 %s15, 2
      %s31 = sadd.s32 1, %s24
      %p32 = scmp.ge.s32.totalorder %s31, 1
      %s33 = scalar_select %p32, 0, %s31
      %s34 = sadd.s32 1, %s23
      %s35 = scalar_select %p32, %s34, %s23
      %p36 = scmp.ge.s32.totalorder %s35, 1
      %s37 = scalar_select %p36, 0, %s35
      %s38 = sadd.s32 1, %s22
      %s39 = scalar_select %p36, %s38, %s22
      %p40 = scmp.ge.s32.totalorder %s39, 32
      %s41 = scalar_select %p40, 0, %s39
      %s42 = ssub.s32 %s22, %s41
      %s43 = ssub.s32 %s24, %s33
      %s44 = sor.u32 %s42, %s43
      %p45 = scmp.eq.s32.totalorder %s44, 0
      %s47 = sadd.s32 %s46, 1
      %s48 = scalar_select %p45, %s46, %s47
      %p51 = pneg %p45
      %p52 = scmp.eq.s32.totalorder %s15, 31
      %p53 = por %p51, %p52
      %p54 = scmp.ne.s32.totalorder %s46, %s49
      %p55 = scmp.eq.s32.totalorder %s15, 0
      %p56 = por %p54, %p55
      %p57 = scmp.ne.s32.totalorder %s46, %s49
      %p58 = scmp.eq.s32.totalorder %s20, 31
      %p59 = por %p57, %p58
      %p60 = scmp.ne.s32.totalorder %s49, %s50
      %p61 = scmp.eq.s32.totalorder %s20, 0
      %p62 = por %p60, %p61
      %p63 = scmp.ne.s32.totalorder %s49, %s50
      %p64 = scmp.eq.s32.totalorder %s21, 31
      %p65 = por %p63, %p64
      %p67 = scmp.ne.s32.totalorder %s50, %s66
      %p68 = scmp.eq.s32.totalorder %s21, 0
      %p69 = por %p67, %p68
      %s70 = ssub.s32 %s24, %s33
      %s71 = ssub.s32 %s23, %s37
      %s72 = sor.u32 %s70, %s71
      %p73 = scmp.eq.s32.totalorder %s72, 0
      %s75 = sadd.s32 %s74, 1
      %s76 = scalar_select %p73, %s74, %s75
      %p79 = pneg %p73
      %p80 = scmp.eq.s32.totalorder %s15, 31
      %p81 = por %p79, %p80
      %p82 = scmp.ne.s32.totalorder %s74, %s77
      %p83 = scmp.eq.s32.totalorder %s15, 0
      %p84 = por %p82, %p83
      %p85 = scmp.ne.s32.totalorder %s74, %s77
      %p86 = scmp.eq.s32.totalorder %s20, 31
      %p87 = por %p85, %p86
      %p88 = scmp.ne.s32.totalorder %s77, %s78
      %p89 = scmp.eq.s32.totalorder %s20, 0
      %p90 = por %p88, %p89
      %p91 = scmp.ne.s32.totalorder %s77, %s78
      %p92 = scmp.eq.s32.totalorder %s21, 31
      %p93 = por %p91, %p92
      %p95 = scmp.ne.s32.totalorder %s78, %s94
      %p96 = scmp.eq.s32.totalorder %s21, 0
      %p97 = por %p95, %p96
      %s98 = ssub.s32 %s22, %s41
      %s99 = ssub.s32 %s23, %s37
      %s100 = sor.u32 %s98, %s99
      %p101 = scmp.eq.s32.totalorder %s100, 0
      %s103 = sadd.s32 %s102, 1
      %s104 = scalar_select %p101, %s102, %s103
      %p107 = pneg %p101
      %p108 = scmp.eq.s32.totalorder %s15, 31
      %p109 = por %p107, %p108
      %p110 = scmp.ne.s32.totalorder %s102, %s105
      %p111 = scmp.eq.s32.totalorder %s15, 0
      %p112 = por %p110, %p111
      %p113 = scmp.ne.s32.totalorder %s102, %s105
      %p114 = scmp.eq.s32.totalorder %s20, 31
      %p115 = por %p113, %p114
      %p116 = scmp.ne.s32.totalorder %s105, %s106
      %p117 = scmp.eq.s32.totalorder %s20, 0
      %p118 = por %p116, %p117
      %p119 = scmp.ne.s32.totalorder %s105, %s106
      %p120 = scmp.eq.s32.totalorder %s21, 31
      %p121 = por %p119, %p120
      %p123 = scmp.ne.s32.totalorder %s106, %s122
      %p124 = scmp.eq.s32.totalorder %s21, 0
      %p125 = por %p123, %p124
      %p126 = scmp.le.s32.totalorder 1, %s15
      %p127 = scmp.lt.s32.totalorder %s15, 33
      %p128 = pnand %p126, %p127
      %p129 = pneg %p128
      // Predicated region
      $region9: #{conv2d.1} parent=5 // pred_check
        _
      $region10: #{conv2d.1} parent=5 // pred_check_branch
        %131 = sbr.rel (%p128) target = $region12
      $region11: #{conv2d.1} parent=5 // pred_region
        %s132 = ssub.s32 %s15, 1
        // Predicated region
        $region13: #{conv2d.1} parent=11 // pred_check
          %p133 = pneg %p90
        $region14: #{conv2d.1} parent=11 // pred_check_branch
          %135 = sbr.rel (%p133) target = $region16
        $region15: #{conv2d.1} parent=11 // pred_region
          %s136 = smul.u32 32, %s27
          %s138 = ssub.s32 2048, 2048
          %139 = vsyncadd [#allocation7], %s138
          %s140 = sadd.s32 %s26, %s136
          %s141 = smul.addr %s140, 64
          %s142 = scalar_lea.hbm %s1, %s141
          %s143 = sshll.u32 [#allocation6], 4
          %s144 = int_to_ptr.vmem [resolvable:$true] %s143
          %149 = dma.hbm_to_vmem [thread:$0]  %s142, 2048, %s144, [#allocation7], 64, 64, 4
        $region16: #{conv2d.1} parent=11 // pred_fallthru
          _
      $region12: #{conv2d.1} parent=5 // pred_fallthru
        _
      %p150 = scmp.lt.s32.totalorder %s15, 32
      // Predicated region
      $region17: #{conv2d.1} parent=5 // pred_check
        %p151 = pneg %p150
      $region18: #{conv2d.1} parent=5 // pred_check_branch
        %153 = sbr.rel (%p151) target = $region20
      $region19: #{conv2d.1} parent=5 // pred_region
        // Predicated region
        $region21: #{conv2d.1} parent=19 // pred_check
          %p154 = pneg %p56
        $region22: #{conv2d.1} parent=19 // pred_check_branch
          %156 = sbr.rel (%p154) target = $region24
        $region23: #{conv2d.1} parent=19 // pred_region
          %s157 = sand.u32 %s46, 1
          %s158 = scalar_lea.sflag [#allocation4], %s157
          %s159 = sand.u32 %s46, 1
          %s160 = smul.addr %s159, 1024
          %s161 = scalar_lea.vmem [#allocation3], %s160
          %s162 = smul.u32 128, %s22
          %s163 = smul.u32 2, %s24
          %s165 = ssub.s32 16384, 16384
          %166 = vsyncadd %s158, %s165
          %s167 = smul.addr %s162, 2
          %s168 = sadd.s32 %s163, %s167
          %s169 = smul.addr %s168, 64
          %s170 = scalar_lea.hbm %s0, %s169
          %s171 = sshll.u32 %s161, 4
          %s172 = int_to_ptr.vmem [resolvable:$true] %s171
          %177 = dma.hbm_to_vmem [thread:$0]  %s170, 16384, %s172, %s158, 128, 128, 8
        $region24: #{conv2d.1} parent=19 // pred_fallthru
          _
      $region20: #{conv2d.1} parent=5 // pred_fallthru
        _
      %p178 = scmp.le.s32.totalorder 1, %s15
      %p179 = scmp.lt.s32.totalorder %s15, 33
      %p180 = pnand %p178, %p179
      %p181 = pneg %p180
      // Predicated region
      $region25: #{conv2d.1} parent=5 // pred_check
        _
      $region26: #{conv2d.1} parent=5 // pred_check_branch
        %183 = sbr.rel (%p180) target = $region28
      $region27: #{conv2d.1} parent=5 // pred_region
        %s184 = ssub.s32 %s15, 1
        %s185 = sand.u32 %s49, 1
        %s186 = scalar_lea.sflag [#allocation4], %s185
        %s187 = sand.u32 %s49, 1
        %s188 = smul.addr %s187, 1024
        %s189 = scalar_lea.vmem [#allocation3], %s188
        // Predicated region
        $region29: #{conv2d.1} parent=27 // pred_check
          %p190 = pneg %p62
        $region30: #{conv2d.1} parent=27 // pred_check_branch
          %192 = sbr.rel (%p190) target = $region32
        $region31: #{conv2d.1} parent=27 // pred_region
          %193 = dma.done %s186, 16384
        $region32: #{conv2d.1} parent=27 // pred_fallthru
          _
        // Predicated region
        $region33: #{conv2d.1} parent=27 // pred_check
          %p194 = pneg %p90
        $region34: #{conv2d.1} parent=27 // pred_check_branch
          %196 = sbr.rel (%p194) target = $region36
        $region35: #{conv2d.1} parent=27 // pred_region
          %197 = dma.done [#allocation7], 2048
        $region36: #{conv2d.1} parent=27 // pred_fallthru
          _
        %s198 = sand.u32 %s49, 1
        %s199 = scalar_lea.sflag [#allocation4], %s198
        %s200 = sand.u32 %s49, 1
        %s201 = smul.addr %s200, 1024
        %s202 = scalar_lea.vmem [#allocation3], %s201
        %p203 = pneg %p62
        %p204 = pneg %p59
        %p205 = pneg %p90
        %p206 = pneg %p87
        %p207 = pneg %p118
        %p208 = pneg %p115
        %s209 = sand.u32 %s105, 1
        %s210 = scalar_lea.sflag [#allocation5], %s209
        %s211 = sand.u32 %s105, 1
        %s212 = smul.addr %s211, 512
        %s213 = scalar_lea.vmem [#allocation8], %s212
        %s214 = smul.u32 128, %s25
        %s215 = smul.u32 2, %s27
        %s216 = smul.u32 32, %s27
        %s217 = smul.u32 128, %s25
        %v219 = vld [vmem:[%s189] sm:$0xff]
        %v220 = vld [vmem:[%s189 + $0x8] sm:$0xff]
        %v221 = vld [vmem:[%s189 + $0x10] sm:$0xff]
        %v222 = vld [vmem:[%s189 + $0x18] sm:$0xff]
        %v223 = vld [vmem:[%s189 + $0x20] sm:$0xff]
        %v224 = vld [vmem:[%s189 + $0x28] sm:$0xff]
        %v225 = vld [vmem:[%s189 + $0x30] sm:$0xff]
        %v226 = vld [vmem:[%s189 + $0x38] sm:$0xff]
        %v227 = vld [vmem:[%s189 + $0x40] sm:$0xff]
        %v228 = vld [vmem:[%s189 + $0x48] sm:$0xff]
        %v229 = vld [vmem:[%s189 + $0x50] sm:$0xff]
        %v230 = vld [vmem:[%s189 + $0x58] sm:$0xff]
        %v231 = vld [vmem:[%s189 + $0x60] sm:$0xff]
        %v232 = vld [vmem:[%s189 + $0x68] sm:$0xff]
        %v233 = vld [vmem:[%s189 + $0x70] sm:$0xff]
        %v234 = vld [vmem:[%s189 + $0x78] sm:$0xff]
        %v235 = vld [vmem:[%s189 + $0x80] sm:$0xff]
        %v236 = vld [vmem:[%s189 + $0x88] sm:$0xff]
        %v237 = vld [vmem:[%s189 + $0x90] sm:$0xff]
        %v238 = vld [vmem:[%s189 + $0x98] sm:$0xff]
        %v239 = vld [vmem:[%s189 + $0xa0] sm:$0xff]
        %v240 = vld [vmem:[%s189 + $0xa8] sm:$0xff]
        %v241 = vld [vmem:[%s189 + $0xb0] sm:$0xff]
        %v242 = vld [vmem:[%s189 + $0xb8] sm:$0xff]
        %v243 = vld [vmem:[%s189 + $0xc0] sm:$0xff]
        %v244 = vld [vmem:[%s189 + $0xc8] sm:$0xff]
        %v245 = vld [vmem:[%s189 + $0xd0] sm:$0xff]
        %v246 = vld [vmem:[%s189 + $0xd8] sm:$0xff]
        %v247 = vld [vmem:[%s189 + $0xe0] sm:$0xff]
        %v248 = vld [vmem:[%s189 + $0xe8] sm:$0xff]
        %v249 = vld [vmem:[%s189 + $0xf0] sm:$0xff]
        %v250 = vld [vmem:[%s189 + $0xf8] sm:$0xff]
        %v251 = vld [vmem:[%s189 + $0x100] sm:$0xff]
        %v252 = vld [vmem:[%s189 + $0x108] sm:$0xff]
        %v253 = vld [vmem:[%s189 + $0x110] sm:$0xff]
        %v254 = vld [vmem:[%s189 + $0x118] sm:$0xff]
        %v255 = vld [vmem:[%s189 + $0x120] sm:$0xff]
        %v256 = vld [vmem:[%s189 + $0x128] sm:$0xff]
        %v257 = vld [vmem:[%s189 + $0x130] sm:$0xff]
        %v258 = vld [vmem:[%s189 + $0x138] sm:$0xff]
        %v259 = vld [vmem:[%s189 + $0x140] sm:$0xff]
        %v260 = vld [vmem:[%s189 + $0x148] sm:$0xff]
        %v261 = vld [vmem:[%s189 + $0x150] sm:$0xff]
        %v262 = vld [vmem:[%s189 + $0x158] sm:$0xff]
        %v263 = vld [vmem:[%s189 + $0x160] sm:$0xff]
        %v264 = vld [vmem:[%s189 + $0x168] sm:$0xff]
        %v265 = vld [vmem:[%s189 + $0x170] sm:$0xff]
        %v266 = vld [vmem:[%s189 + $0x178] sm:$0xff]
        %v267 = vld [vmem:[%s189 + $0x180] sm:$0xff]
        %v268 = vld [vmem:[%s189 + $0x188] sm:$0xff]
        %v269 = vld [vmem:[%s189 + $0x190] sm:$0xff]
        %v270 = vld [vmem:[%s189 + $0x198] sm:$0xff]
        %v271 = vld [vmem:[%s189 + $0x1a0] sm:$0xff]
        %v272 = vld [vmem:[%s189 + $0x1a8] sm:$0xff]
        %v273 = vld [vmem:[%s189 + $0x1b0] sm:$0xff]
        %v274 = vld [vmem:[%s189 + $0x1b8] sm:$0xff]
        %v275 = vld [vmem:[%s189 + $0x1c0] sm:$0xff]
        %v276 = vld [vmem:[%s189 + $0x1c8] sm:$0xff]
        %v277 = vld [vmem:[%s189 + $0x1d0] sm:$0xff]
        %v278 = vld [vmem:[%s189 + $0x1d8] sm:$0xff]
        %v279 = vld [vmem:[%s189 + $0x1e0] sm:$0xff]
        %v280 = vld [vmem:[%s189 + $0x1e8] sm:$0xff]
        %v281 = vld [vmem:[%s189 + $0x1f0] sm:$0xff]
        %v282 = vld [vmem:[%s189 + $0x1f8] sm:$0xff]
        %v283 = vld [vmem:[%s189 + $0x200] sm:$0xff]
        %v284 = vld [vmem:[%s189 + $0x208] sm:$0xff]
        %v285 = vld [vmem:[%s189 + $0x210] sm:$0xff]
        %v286 = vld [vmem:[%s189 + $0x218] sm:$0xff]
        %v287 = vld [vmem:[%s189 + $0x220] sm:$0xff]
        %v288 = vld [vmem:[%s189 + $0x228] sm:$0xff]
        %v289 = vld [vmem:[%s189 + $0x230] sm:$0xff]
        %v290 = vld [vmem:[%s189 + $0x238] sm:$0xff]
        %v291 = vld [vmem:[%s189 + $0x240] sm:$0xff]
        %v292 = vld [vmem:[%s189 + $0x248] sm:$0xff]
        %v293 = vld [vmem:[%s189 + $0x250] sm:$0xff]
        %v294 = vld [vmem:[%s189 + $0x258] sm:$0xff]
        %v295 = vld [vmem:[%s189 + $0x260] sm:$0xff]
        %v296 = vld [vmem:[%s189 + $0x268] sm:$0xff]
        %v297 = vld [vmem:[%s189 + $0x270] sm:$0xff]
        %v298 = vld [vmem:[%s189 + $0x278] sm:$0xff]
        %v299 = vld [vmem:[%s189 + $0x280] sm:$0xff]
        %v300 = vld [vmem:[%s189 + $0x288] sm:$0xff]
        %v301 = vld [vmem:[%s189 + $0x290] sm:$0xff]
        %v302 = vld [vmem:[%s189 + $0x298] sm:$0xff]
        %v303 = vld [vmem:[%s189 + $0x2a0] sm:$0xff]
        %v304 = vld [vmem:[%s189 + $0x2a8] sm:$0xff]
        %v305 = vld [vmem:[%s189 + $0x2b0] sm:$0xff]
        %v306 = vld [vmem:[%s189 + $0x2b8] sm:$0xff]
        %v307 = vld [vmem:[%s189 + $0x2c0] sm:$0xff]
        %v308 = vld [vmem:[%s189 + $0x2c8] sm:$0xff]
        %v309 = vld [vmem:[%s189 + $0x2d0] sm:$0xff]
        %v310 = vld [vmem:[%s189 + $0x2d8] sm:$0xff]
        %v311 = vld [vmem:[%s189 + $0x2e0] sm:$0xff]
        %v312 = vld [vmem:[%s189 + $0x2e8] sm:$0xff]
        %v313 = vld [vmem:[%s189 + $0x2f0] sm:$0xff]
        %v314 = vld [vmem:[%s189 + $0x2f8] sm:$0xff]
        %v315 = vld [vmem:[%s189 + $0x300] sm:$0xff]
        %v316 = vld [vmem:[%s189 + $0x308] sm:$0xff]
        %v317 = vld [vmem:[%s189 + $0x310] sm:$0xff]
        %v318 = vld [vmem:[%s189 + $0x318] sm:$0xff]
        %v319 = vld [vmem:[%s189 + $0x320] sm:$0xff]
        %v320 = vld [vmem:[%s189 + $0x328] sm:$0xff]
        %v321 = vld [vmem:[%s189 + $0x330] sm:$0xff]
        %v322 = vld [vmem:[%s189 + $0x338] sm:$0xff]
        %v323 = vld [vmem:[%s189 + $0x340] sm:$0xff]
        %v324 = vld [vmem:[%s189 + $0x348] sm:$0xff]
        %v325 = vld [vmem:[%s189 + $0x350] sm:$0xff]
        %v326 = vld [vmem:[%s189 + $0x358] sm:$0xff]
        %v327 = vld [vmem:[%s189 + $0x360] sm:$0xff]
        %v328 = vld [vmem:[%s189 + $0x368] sm:$0xff]
        %v329 = vld [vmem:[%s189 + $0x370] sm:$0xff]
        %v330 = vld [vmem:[%s189 + $0x378] sm:$0xff]
        %v331 = vld [vmem:[%s189 + $0x380] sm:$0xff]
        %v332 = vld [vmem:[%s189 + $0x388] sm:$0xff]
        %v333 = vld [vmem:[%s189 + $0x390] sm:$0xff]
        %v334 = vld [vmem:[%s189 + $0x398] sm:$0xff]
        %v335 = vld [vmem:[%s189 + $0x3a0] sm:$0xff]
        %v336 = vld [vmem:[%s189 + $0x3a8] sm:$0xff]
        %v337 = vld [vmem:[%s189 + $0x3b0] sm:$0xff]
        %v338 = vld [vmem:[%s189 + $0x3b8] sm:$0xff]
        %v339 = vld [vmem:[%s189 + $0x3c0] sm:$0xff]
        %v340 = vld [vmem:[%s189 + $0x3c8] sm:$0xff]
        %v341 = vld [vmem:[%s189 + $0x3d0] sm:$0xff]
        %v342 = vld [vmem:[%s189 + $0x3d8] sm:$0xff]
        %v343 = vld [vmem:[%s189 + $0x3e0] sm:$0xff]
        %v344 = vld [vmem:[%s189 + $0x3e8] sm:$0xff]
        %v345 = vld [vmem:[%s189 + $0x3f0] sm:$0xff]
        %v346 = vld [vmem:[%s189 + $0x3f8] sm:$0xff]
        %v347 = vld [vmem:[#allocation6] sm:$0xf]
        %v348 = vld [vmem:[#allocation6 + $0x4] sm:$0xf]
        %v349 = vld [vmem:[#allocation6 + $0x8] sm:$0xf]
        %v350 = vld [vmem:[#allocation6 + $0xc] sm:$0xf]
        %v351 = vld [vmem:[#allocation6 + $0x10] sm:$0xf]
        %v352 = vld [vmem:[#allocation6 + $0x14] sm:$0xf]
        %v353 = vld [vmem:[#allocation6 + $0x18] sm:$0xf]
        %v354 = vld [vmem:[#allocation6 + $0x1c] sm:$0xf]
        %v355 = vld [vmem:[#allocation6 + $0x20] sm:$0xf]
        %v356 = vld [vmem:[#allocation6 + $0x24] sm:$0xf]
        %v357 = vld [vmem:[#allocation6 + $0x28] sm:$0xf]
        %v358 = vld [vmem:[#allocation6 + $0x2c] sm:$0xf]
        %v359 = vld [vmem:[#allocation6 + $0x30] sm:$0xf]
        %v360 = vld [vmem:[#allocation6 + $0x34] sm:$0xf]
        %v361 = vld [vmem:[#allocation6 + $0x38] sm:$0xf]
        %v362 = vld [vmem:[#allocation6 + $0x3c] sm:$0xf]
        %v363 = vld [vmem:[#allocation6 + $0x40] sm:$0xf]
        %v364 = vld [vmem:[#allocation6 + $0x44] sm:$0xf]
        %v365 = vld [vmem:[#allocation6 + $0x48] sm:$0xf]
        %v366 = vld [vmem:[#allocation6 + $0x4c] sm:$0xf]
        %v367 = vld [vmem:[#allocation6 + $0x50] sm:$0xf]
        %v368 = vld [vmem:[#allocation6 + $0x54] sm:$0xf]
        %v369 = vld [vmem:[#allocation6 + $0x58] sm:$0xf]
        %v370 = vld [vmem:[#allocation6 + $0x5c] sm:$0xf]
        %v371 = vld [vmem:[#allocation6 + $0x60] sm:$0xf]
        %v372 = vld [vmem:[#allocation6 + $0x64] sm:$0xf]
        %v373 = vld [vmem:[#allocation6 + $0x68] sm:$0xf]
        %v374 = vld [vmem:[#allocation6 + $0x6c] sm:$0xf]
        %v375 = vld [vmem:[#allocation6 + $0x70] sm:$0xf]
        %v376 = vld [vmem:[#allocation6 + $0x74] sm:$0xf]
        %v377 = vld [vmem:[#allocation6 + $0x78] sm:$0xf]
        %v378 = vld [vmem:[#allocation6 + $0x7c] sm:$0xf]
        %v507 = vunpack.c.l.b16 %v219
        %v508 = vunpack.c.h.b16 %v219
        %v509 = vunpack.c.l.b16 %v220
        %v510 = vunpack.c.h.b16 %v220
        %v511 = vunpack.c.l.b16 %v221
        %v512 = vunpack.c.h.b16 %v221
        %v513 = vunpack.c.l.b16 %v222
        %v514 = vunpack.c.h.b16 %v222
        %v515 = vunpack.c.l.b16 %v223
        %v516 = vunpack.c.h.b16 %v223
        %v517 = vunpack.c.l.b16 %v224
        %v518 = vunpack.c.h.b16 %v224
        %v519 = vunpack.c.l.b16 %v225
        %v520 = vunpack.c.h.b16 %v225
        %v521 = vunpack.c.l.b16 %v226
        %v522 = vunpack.c.h.b16 %v226
        %v523 = vunpack.c.l.b16 %v227
        %v524 = vunpack.c.h.b16 %v227
        %v525 = vunpack.c.l.b16 %v228
        %v526 = vunpack.c.h.b16 %v228
        %v527 = vunpack.c.l.b16 %v229
        %v528 = vunpack.c.h.b16 %v229
        %v529 = vunpack.c.l.b16 %v230
        %v530 = vunpack.c.h.b16 %v230
        %v531 = vunpack.c.l.b16 %v231
        %v532 = vunpack.c.h.b16 %v231
        %v533 = vunpack.c.l.b16 %v232
        %v534 = vunpack.c.h.b16 %v232
        %v535 = vunpack.c.l.b16 %v233
        %v536 = vunpack.c.h.b16 %v233
        %v537 = vunpack.c.l.b16 %v234
        %v538 = vunpack.c.h.b16 %v234
        %v539 = vunpack.c.l.b16 %v235
        %v540 = vunpack.c.h.b16 %v235
        %v541 = vunpack.c.l.b16 %v236
        %v542 = vunpack.c.h.b16 %v236
        %v543 = vunpack.c.l.b16 %v237
        %v544 = vunpack.c.h.b16 %v237
        %v545 = vunpack.c.l.b16 %v238
        %v546 = vunpack.c.h.b16 %v238
        %v547 = vunpack.c.l.b16 %v239
        %v548 = vunpack.c.h.b16 %v239
        %v549 = vunpack.c.l.b16 %v240
        %v550 = vunpack.c.h.b16 %v240
        %v551 = vunpack.c.l.b16 %v241
        %v552 = vunpack.c.h.b16 %v241
        %v553 = vunpack.c.l.b16 %v242
        %v554 = vunpack.c.h.b16 %v242
        %v555 = vunpack.c.l.b16 %v243
        %v556 = vunpack.c.h.b16 %v243
        %v557 = vunpack.c.l.b16 %v244
        %v558 = vunpack.c.h.b16 %v244
        %v559 = vunpack.c.l.b16 %v245
        %v560 = vunpack.c.h.b16 %v245
        %v561 = vunpack.c.l.b16 %v246
        %v562 = vunpack.c.h.b16 %v246
        %v563 = vunpack.c.l.b16 %v247
        %v564 = vunpack.c.h.b16 %v247
        %v565 = vunpack.c.l.b16 %v248
        %v566 = vunpack.c.h.b16 %v248
        %v567 = vunpack.c.l.b16 %v249
        %v568 = vunpack.c.h.b16 %v249
        %v569 = vunpack.c.l.b16 %v250
        %v570 = vunpack.c.h.b16 %v250
        %v571 = vunpack.c.l.b16 %v251
        %v572 = vunpack.c.h.b16 %v251
        %v573 = vunpack.c.l.b16 %v252
        %v574 = vunpack.c.h.b16 %v252
        %v575 = vunpack.c.l.b16 %v253
        %v576 = vunpack.c.h.b16 %v253
        %v577 = vunpack.c.l.b16 %v254
        %v578 = vunpack.c.h.b16 %v254
        %v579 = vunpack.c.l.b16 %v255
        %v580 = vunpack.c.h.b16 %v255
        %v581 = vunpack.c.l.b16 %v256
        %v582 = vunpack.c.h.b16 %v256
        %v583 = vunpack.c.l.b16 %v257
        %v584 = vunpack.c.h.b16 %v257
        %v585 = vunpack.c.l.b16 %v258
        %v586 = vunpack.c.h.b16 %v258
        %v587 = vunpack.c.l.b16 %v259
        %v588 = vunpack.c.h.b16 %v259
        %v589 = vunpack.c.l.b16 %v260
        %v590 = vunpack.c.h.b16 %v260
        %v591 = vunpack.c.l.b16 %v261
        %v592 = vunpack.c.h.b16 %v261
        %v593 = vunpack.c.l.b16 %v262
        %v594 = vunpack.c.h.b16 %v262
        %v595 = vunpack.c.l.b16 %v263
        %v596 = vunpack.c.h.b16 %v263
        %v597 = vunpack.c.l.b16 %v264
        %v598 = vunpack.c.h.b16 %v264
        %v599 = vunpack.c.l.b16 %v265
        %v600 = vunpack.c.h.b16 %v265
        %v601 = vunpack.c.l.b16 %v266
        %v602 = vunpack.c.h.b16 %v266
        %v603 = vunpack.c.l.b16 %v267
        %v604 = vunpack.c.h.b16 %v267
        %v605 = vunpack.c.l.b16 %v268
        %v606 = vunpack.c.h.b16 %v268
        %v607 = vunpack.c.l.b16 %v269
        %v608 = vunpack.c.h.b16 %v269
        %v609 = vunpack.c.l.b16 %v270
        %v610 = vunpack.c.h.b16 %v270
        %v611 = vunpack.c.l.b16 %v271
        %v612 = vunpack.c.h.b16 %v271
        %v613 = vunpack.c.l.b16 %v272
        %v614 = vunpack.c.h.b16 %v272
        %v615 = vunpack.c.l.b16 %v273
        %v616 = vunpack.c.h.b16 %v273
        %v617 = vunpack.c.l.b16 %v274
        %v618 = vunpack.c.h.b16 %v274
        %v619 = vunpack.c.l.b16 %v275
        %v620 = vunpack.c.h.b16 %v275
        %v621 = vunpack.c.l.b16 %v276
        %v622 = vunpack.c.h.b16 %v276
        %v623 = vunpack.c.l.b16 %v277
        %v624 = vunpack.c.h.b16 %v277
        %v625 = vunpack.c.l.b16 %v278
        %v626 = vunpack.c.h.b16 %v278
        %v627 = vunpack.c.l.b16 %v279
        %v628 = vunpack.c.h.b16 %v279
        %v629 = vunpack.c.l.b16 %v280
        %v630 = vunpack.c.h.b16 %v280
        %v631 = vunpack.c.l.b16 %v281
        %v632 = vunpack.c.h.b16 %v281
        %v633 = vunpack.c.l.b16 %v282
        %v634 = vunpack.c.h.b16 %v282
        %v635 = vunpack.c.l.b16 %v283
        %v636 = vunpack.c.h.b16 %v283
        %v637 = vunpack.c.l.b16 %v284
        %v638 = vunpack.c.h.b16 %v284
        %v639 = vunpack.c.l.b16 %v285
        %v640 = vunpack.c.h.b16 %v285
        %v641 = vunpack.c.l.b16 %v286
        %v642 = vunpack.c.h.b16 %v286
        %v643 = vunpack.c.l.b16 %v287
        %v644 = vunpack.c.h.b16 %v287
        %v645 = vunpack.c.l.b16 %v288
        %v646 = vunpack.c.h.b16 %v288
        %v647 = vunpack.c.l.b16 %v289
        %v648 = vunpack.c.h.b16 %v289
        %v649 = vunpack.c.l.b16 %v290
        %v650 = vunpack.c.h.b16 %v290
        %v651 = vunpack.c.l.b16 %v291
        %v652 = vunpack.c.h.b16 %v291
        %v653 = vunpack.c.l.b16 %v292
        %v654 = vunpack.c.h.b16 %v292
        %v655 = vunpack.c.l.b16 %v293
        %v656 = vunpack.c.h.b16 %v293
        %v657 = vunpack.c.l.b16 %v294
        %v658 = vunpack.c.h.b16 %v294
        %v659 = vunpack.c.l.b16 %v295
        %v660 = vunpack.c.h.b16 %v295
        %v661 = vunpack.c.l.b16 %v296
        %v662 = vunpack.c.h.b16 %v296
        %v663 = vunpack.c.l.b16 %v297
        %v664 = vunpack.c.h.b16 %v297
        %v665 = vunpack.c.l.b16 %v298
        %v666 = vunpack.c.h.b16 %v298
        %v667 = vunpack.c.l.b16 %v299
        %v668 = vunpack.c.h.b16 %v299
        %v669 = vunpack.c.l.b16 %v300
        %v670 = vunpack.c.h.b16 %v300
        %v671 = vunpack.c.l.b16 %v301
        %v672 = vunpack.c.h.b16 %v301
        %v673 = vunpack.c.l.b16 %v302
        %v674 = vunpack.c.h.b16 %v302
        %v675 = vunpack.c.l.b16 %v303
        %v676 = vunpack.c.h.b16 %v303
        %v677 = vunpack.c.l.b16 %v304
        %v678 = vunpack.c.h.b16 %v304
        %v679 = vunpack.c.l.b16 %v305
        %v680 = vunpack.c.h.b16 %v305
        %v681 = vunpack.c.l.b16 %v306
        %v682 = vunpack.c.h.b16 %v306
        %v683 = vunpack.c.l.b16 %v307
        %v684 = vunpack.c.h.b16 %v307
        %v685 = vunpack.c.l.b16 %v308
        %v686 = vunpack.c.h.b16 %v308
        %v687 = vunpack.c.l.b16 %v309
        %v688 = vunpack.c.h.b16 %v309
        %v689 = vunpack.c.l.b16 %v310
        %v690 = vunpack.c.h.b16 %v310
        %v691 = vunpack.c.l.b16 %v311
        %v692 = vunpack.c.h.b16 %v311
        %v693 = vunpack.c.l.b16 %v312
        %v694 = vunpack.c.h.b16 %v312
        %v695 = vunpack.c.l.b16 %v313
        %v696 = vunpack.c.h.b16 %v313
        %v697 = vunpack.c.l.b16 %v314
        %v698 = vunpack.c.h.b16 %v314
        %v699 = vunpack.c.l.b16 %v315
        %v700 = vunpack.c.h.b16 %v315
        %v701 = vunpack.c.l.b16 %v316
        %v702 = vunpack.c.h.b16 %v316
        %v703 = vunpack.c.l.b16 %v317
        %v704 = vunpack.c.h.b16 %v317
        %v705 = vunpack.c.l.b16 %v318
        %v706 = vunpack.c.h.b16 %v318
        %v707 = vunpack.c.l.b16 %v319
        %v708 = vunpack.c.h.b16 %v319
        %v709 = vunpack.c.l.b16 %v320
        %v710 = vunpack.c.h.b16 %v320
        %v711 = vunpack.c.l.b16 %v321
        %v712 = vunpack.c.h.b16 %v321
        %v713 = vunpack.c.l.b16 %v322
        %v714 = vunpack.c.h.b16 %v322
        %v715 = vunpack.c.l.b16 %v323
        %v716 = vunpack.c.h.b16 %v323
        %v717 = vunpack.c.l.b16 %v324
        %v718 = vunpack.c.h.b16 %v324
        %v719 = vunpack.c.l.b16 %v325
        %v720 = vunpack.c.h.b16 %v325
        %v721 = vunpack.c.l.b16 %v326
        %v722 = vunpack.c.h.b16 %v326
        %v723 = vunpack.c.l.b16 %v327
        %v724 = vunpack.c.h.b16 %v327
        %v725 = vunpack.c.l.b16 %v328
        %v726 = vunpack.c.h.b16 %v328
        %v727 = vunpack.c.l.b16 %v329
        %v728 = vunpack.c.h.b16 %v329
        %v729 = vunpack.c.l.b16 %v330
        %v730 = vunpack.c.h.b16 %v330
        %v731 = vunpack.c.l.b16 %v331
        %v732 = vunpack.c.h.b16 %v331
        %v733 = vunpack.c.l.b16 %v332
        %v734 = vunpack.c.h.b16 %v332
        %v735 = vunpack.c.l.b16 %v333
        %v736 = vunpack.c.h.b16 %v333
        %v737 = vunpack.c.l.b16 %v334
        %v738 = vunpack.c.h.b16 %v334
        %v739 = vunpack.c.l.b16 %v335
        %v740 = vunpack.c.h.b16 %v335
        %v741 = vunpack.c.l.b16 %v336
        %v742 = vunpack.c.h.b16 %v336
        %v743 = vunpack.c.l.b16 %v337
        %v744 = vunpack.c.h.b16 %v337
        %v745 = vunpack.c.l.b16 %v338
        %v746 = vunpack.c.h.b16 %v338
        %v747 = vunpack.c.l.b16 %v339
        %v748 = vunpack.c.h.b16 %v339
        %v749 = vunpack.c.l.b16 %v340
        %v750 = vunpack.c.h.b16 %v340
        %v751 = vunpack.c.l.b16 %v341
        %v752 = vunpack.c.h.b16 %v341
        %v753 = vunpack.c.l.b16 %v342
        %v754 = vunpack.c.h.b16 %v342
        %v755 = vunpack.c.l.b16 %v343
        %v756 = vunpack.c.h.b16 %v343
        %v757 = vunpack.c.l.b16 %v344
        %v758 = vunpack.c.h.b16 %v344
        %v759 = vunpack.c.l.b16 %v345
        %v760 = vunpack.c.h.b16 %v345
        %v761 = vunpack.c.l.b16 %v346
        %v762 = vunpack.c.h.b16 %v346
        %v763 = vpack.c.b16 %v509, %v507
        %v764 = vpack.c.b16 %v510, %v508
        %v765 = vpack.c.b16 %v513, %v511
        %v766 = vpack.c.b16 %v514, %v512
        %v767 = vpack.c.b16 %v517, %v515
        %v768 = vpack.c.b16 %v518, %v516
        %v769 = vpack.c.b16 %v521, %v519
        %v770 = vpack.c.b16 %v522, %v520
        %v771 = vpack.c.b16 %v525, %v523
        %v772 = vpack.c.b16 %v526, %v524
        %v773 = vpack.c.b16 %v529, %v527
        %v774 = vpack.c.b16 %v530, %v528
        %v775 = vpack.c.b16 %v533, %v531
        %v776 = vpack.c.b16 %v534, %v532
        %v777 = vpack.c.b16 %v537, %v535
        %v778 = vpack.c.b16 %v538, %v536
        %v779 = vpack.c.b16 %v541, %v539
        %v780 = vpack.c.b16 %v542, %v540
        %v781 = vpack.c.b16 %v545, %v543
        %v782 = vpack.c.b16 %v546, %v544
        %v783 = vpack.c.b16 %v549, %v547
        %v784 = vpack.c.b16 %v550, %v548
        %v785 = vpack.c.b16 %v553, %v551
        %v786 = vpack.c.b16 %v554, %v552
        %v787 = vpack.c.b16 %v557, %v555
        %v788 = vpack.c.b16 %v558, %v556
        %v789 = vpack.c.b16 %v561, %v559
        %v790 = vpack.c.b16 %v562, %v560
        %v791 = vpack.c.b16 %v565, %v563
        %v792 = vpack.c.b16 %v566, %v564
        %v793 = vpack.c.b16 %v569, %v567
        %v794 = vpack.c.b16 %v570, %v568
        %v795 = vpack.c.b16 %v573, %v571
        %v796 = vpack.c.b16 %v574, %v572
        %v797 = vpack.c.b16 %v577, %v575
        %v798 = vpack.c.b16 %v578, %v576
        %v799 = vpack.c.b16 %v581, %v579
        %v800 = vpack.c.b16 %v582, %v580
        %v801 = vpack.c.b16 %v585, %v583
        %v802 = vpack.c.b16 %v586, %v584
        %v803 = vpack.c.b16 %v589, %v587
        %v804 = vpack.c.b16 %v590, %v588
        %v805 = vpack.c.b16 %v593, %v591
        %v806 = vpack.c.b16 %v594, %v592
        %v807 = vpack.c.b16 %v597, %v595
        %v808 = vpack.c.b16 %v598, %v596
        %v809 = vpack.c.b16 %v601, %v599
        %v810 = vpack.c.b16 %v602, %v600
        %v811 = vpack.c.b16 %v605, %v603
        %v812 = vpack.c.b16 %v606, %v604
        %v813 = vpack.c.b16 %v609, %v607
        %v814 = vpack.c.b16 %v610, %v608
        %v815 = vpack.c.b16 %v613, %v611
        %v816 = vpack.c.b16 %v614, %v612
        %v817 = vpack.c.b16 %v617, %v615
        %v818 = vpack.c.b16 %v618, %v616
        %v819 = vpack.c.b16 %v621, %v619
        %v820 = vpack.c.b16 %v622, %v620
        %v821 = vpack.c.b16 %v625, %v623
        %v822 = vpack.c.b16 %v626, %v624
        %v823 = vpack.c.b16 %v629, %v627
        %v824 = vpack.c.b16 %v630, %v628
        %v825 = vpack.c.b16 %v633, %v631
        %v826 = vpack.c.b16 %v634, %v632
        %v827 = vpack.c.b16 %v637, %v635
        %v828 = vpack.c.b16 %v638, %v636
        %v829 = vpack.c.b16 %v641, %v639
        %v830 = vpack.c.b16 %v642, %v640
        %v831 = vpack.c.b16 %v645, %v643
        %v832 = vpack.c.b16 %v646, %v644
        %v833 = vpack.c.b16 %v649, %v647
        %v834 = vpack.c.b16 %v650, %v648
        %v835 = vpack.c.b16 %v653, %v651
        %v836 = vpack.c.b16 %v654, %v652
        %v837 = vpack.c.b16 %v657, %v655
        %v838 = vpack.c.b16 %v658, %v656
        %v839 = vpack.c.b16 %v661, %v659
        %v840 = vpack.c.b16 %v662, %v660
        %v841 = vpack.c.b16 %v665, %v663
        %v842 = vpack.c.b16 %v666, %v664
        %v843 = vpack.c.b16 %v669, %v667
        %v844 = vpack.c.b16 %v670, %v668
        %v845 = vpack.c.b16 %v673, %v671
        %v846 = vpack.c.b16 %v674, %v672
        %v847 = vpack.c.b16 %v677, %v675
        %v848 = vpack.c.b16 %v678, %v676
        %v849 = vpack.c.b16 %v681, %v679
        %v850 = vpack.c.b16 %v682, %v680
        %v851 = vpack.c.b16 %v685, %v683
        %v852 = vpack.c.b16 %v686, %v684
        %v853 = vpack.c.b16 %v689, %v687
        %v854 = vpack.c.b16 %v690, %v688
        %v855 = vpack.c.b16 %v693, %v691
        %v856 = vpack.c.b16 %v694, %v692
        %v857 = vpack.c.b16 %v697, %v695
        %v858 = vpack.c.b16 %v698, %v696
        %v859 = vpack.c.b16 %v701, %v699
        %v860 = vpack.c.b16 %v702, %v700
        %v861 = vpack.c.b16 %v705, %v703
        %v862 = vpack.c.b16 %v706, %v704
        %v863 = vpack.c.b16 %v709, %v707
        %v864 = vpack.c.b16 %v710, %v708
        %v865 = vpack.c.b16 %v713, %v711
        %v866 = vpack.c.b16 %v714, %v712
        %v867 = vpack.c.b16 %v717, %v715
        %v868 = vpack.c.b16 %v718, %v716
        %v869 = vpack.c.b16 %v721, %v719
        %v870 = vpack.c.b16 %v722, %v720
        %v871 = vpack.c.b16 %v725, %v723
        %v872 = vpack.c.b16 %v726, %v724
        %v873 = vpack.c.b16 %v729, %v727
        %v874 = vpack.c.b16 %v730, %v728
        %v875 = vpack.c.b16 %v733, %v731
        %v876 = vpack.c.b16 %v734, %v732
        %v877 = vpack.c.b16 %v737, %v735
        %v878 = vpack.c.b16 %v738, %v736
        %v879 = vpack.c.b16 %v741, %v739
        %v880 = vpack.c.b16 %v742, %v740
        %v881 = vpack.c.b16 %v745, %v743
        %v882 = vpack.c.b16 %v746, %v744
        %v883 = vpack.c.b16 %v749, %v747
        %v884 = vpack.c.b16 %v750, %v748
        %v885 = vpack.c.b16 %v753, %v751
        %v886 = vpack.c.b16 %v754, %v752
        %v887 = vpack.c.b16 %v757, %v755
        %v888 = vpack.c.b16 %v758, %v756
        %v889 = vpack.c.b16 %v761, %v759
        %v890 = vpack.c.b16 %v762, %v760
        %v1051 = vunpack.c.l.b16 %v347
        %v1052 = vunpack.c.l.b16 %v348
        %v1053 = vunpack.c.l.b16 %v349
        %v1054 = vunpack.c.l.b16 %v350
        %v1055 = vunpack.c.l.b16 %v351
        %v1056 = vunpack.c.l.b16 %v352
        %v1057 = vunpack.c.l.b16 %v353
        %v1058 = vunpack.c.l.b16 %v354
        %v1059 = vunpack.c.l.b16 %v355
        %v1060 = vunpack.c.l.b16 %v356
        %v1061 = vunpack.c.l.b16 %v357
        %v1062 = vunpack.c.l.b16 %v358
        %v1063 = vunpack.c.l.b16 %v359
        %v1064 = vunpack.c.l.b16 %v360
        %v1065 = vunpack.c.l.b16 %v361
        %v1066 = vunpack.c.l.b16 %v362
        %v1067 = vunpack.c.l.b16 %v363
        %v1068 = vunpack.c.l.b16 %v364
        %v1069 = vunpack.c.l.b16 %v365
        %v1070 = vunpack.c.l.b16 %v366
        %v1071 = vunpack.c.l.b16 %v367
        %v1072 = vunpack.c.l.b16 %v368
        %v1073 = vunpack.c.l.b16 %v369
        %v1074 = vunpack.c.l.b16 %v370
        %v1075 = vunpack.c.l.b16 %v371
        %v1076 = vunpack.c.l.b16 %v372
        %v1077 = vunpack.c.l.b16 %v373
        %v1078 = vunpack.c.l.b16 %v374
        %v1079 = vunpack.c.l.b16 %v375
        %v1080 = vunpack.c.l.b16 %v376
        %v1081 = vunpack.c.l.b16 %v377
        %v1082 = vunpack.c.l.b16 %v378
        %v1083 = vpack.c.b16 %v1052, %v1051
        %v1084 = vpack.c.b16 %v1054, %v1053
        %v1085 = vpack.c.b16 %v1056, %v1055
        %v1086 = vpack.c.b16 %v1058, %v1057
        %v1087 = vpack.c.b16 %v1060, %v1059
        %v1088 = vpack.c.b16 %v1062, %v1061
        %v1089 = vpack.c.b16 %v1064, %v1063
        %v1090 = vpack.c.b16 %v1066, %v1065
        %v1091 = vpack.c.b16 %v1068, %v1067
        %v1092 = vpack.c.b16 %v1070, %v1069
        %v1093 = vpack.c.b16 %v1072, %v1071
        %v1094 = vpack.c.b16 %v1074, %v1073
        %v1095 = vpack.c.b16 %v1076, %v1075
        %v1096 = vpack.c.b16 %v1078, %v1077
        %v1097 = vpack.c.b16 %v1080, %v1079
        %v1098 = vpack.c.b16 %v1082, %v1081
        %1115 = vmatprep.subr.bf16.mxu0 0
        %1116 = vmatpush1.bf16.msra.mxu0 %v1083
        %1117 = vmatprep.subr.bf16.mxu0 0
        %1118 = vmatpush1.bf16.msra.mxu0 %v1084
        %1119 = vmatprep.subr.bf16.mxu0 0
        %1120 = vmatpush1.bf16.msra.mxu0 %v1085
        %1121 = vmatprep.subr.bf16.mxu0 0
        %1122 = vmatpush1.bf16.msra.mxu0 %v1086
        %1123 = vmatprep.subr.bf16.mxu0 0
        %1124 = vmatpush1.bf16.msra.mxu0 %v1087
        %1125 = vmatprep.subr.bf16.mxu0 0
        %1126 = vmatpush1.bf16.msra.mxu0 %v1088
        %1127 = vmatprep.subr.bf16.mxu0 0
        %1128 = vmatpush1.bf16.msra.mxu0 %v1089
        %1129 = vmatprep.subr.bf16.mxu0 0
        %1130 = vmatpush1.bf16.msra.mxu0 %v1090
        %1131 = vmatprep.subr.bf16.mxu0 0
        %1132 = vmatpush1.bf16.msra.mxu0 %v1091
        %1133 = vmatprep.subr.bf16.mxu0 0
        %1134 = vmatpush1.bf16.msra.mxu0 %v1092
        %1135 = vmatprep.subr.bf16.mxu0 0
        %1136 = vmatpush1.bf16.msra.mxu0 %v1093
        %1137 = vmatprep.subr.bf16.mxu0 0
        %1138 = vmatpush1.bf16.msra.mxu0 %v1094
        %1139 = vmatprep.subr.bf16.mxu0 0
        %1140 = vmatpush1.bf16.msra.mxu0 %v1095
        %1141 = vmatprep.subr.bf16.mxu0 0
        %1142 = vmatpush1.bf16.msra.mxu0 %v1096
        %1143 = vmatprep.subr.bf16.mxu0 0
        %1144 = vmatpush1.bf16.msra.mxu0 %v1097
        %1145 = vmatprep.subr.bf16.mxu0 0
        %1146 = vmatpush1.bf16.msra.mxu0 %v1098
        %1147 = vmatprep.mubr.bf16.mxu0 %v764
        %1148 = vmatmul.mubr.bf16.gmra.mrb[0].mxu0 %v763
        %v1149 = vpop.f32.mrb[0].mxu0
        %v1150 = vadd.f32 0.0, %v1149
        %v1151 = vpop.f32.mrb[0].mxu0
        %v1152 = vpop.f32.mrb[0].mxu0
        %v1153 = vadd.f32 0.0, %v1152
        %v1154 = vpop.f32.mrb[0].mxu0
        %1155 = vmatprep.mubr.bf16.mxu0 %v766
        %1156 = vmatmul.mubr.bf16.gmra.mrb[0].mxu0 %v765
        %v1157 = vpop.f32.mrb[0].mxu0
        %v1158 = vadd.f32 0.0, %v1157
        %v1159 = vpop.f32.mrb[0].mxu0
        %v1160 = vpop.f32.mrb[0].mxu0
        %v1161 = vadd.f32 0.0, %v1160
        %v1162 = vpop.f32.mrb[0].mxu0
        %1163 = vmatprep.mubr.bf16.mxu0 %v768
        %1164 = vmatmul.mubr.bf16.gmra.mrb[0].mxu0 %v767
        %v1165 = vpop.f32.mrb[0].mxu0
        %v1166 = vadd.f32 0.0, %v1165
        %v1167 = vpop.f32.mrb[0].mxu0
        %v1168 = vpop.f32.mrb[0].mxu0
        %v1169 = vadd.f32 0.0, %v1168
        %v1170 = vpop.f32.mrb[0].mxu0
        %1171 = vmatprep.mubr.bf16.mxu0 %v770
        %1172 = vmatmul.mubr.bf16.gmra.mrb[0].mxu0 %v769
        %v1173 = vpop.f32.mrb[0].mxu0
        %v1174 = vadd.f32 0.0, %v1173
        %v1175 = vpop.f32.mrb[0].mxu0
        %v1176 = vpop.f32.mrb[0].mxu0
        %v1177 = vadd.f32 0.0, %v1176
        %v1178 = vpop.f32.mrb[0].mxu0
        %1179 = vmatprep.mubr.bf16.mxu0 %v772
        %1180 = vmatmul.mubr.bf16.gmra.mrb[0].mxu0 %v771
        %v1181 = vpop.f32.mrb[0].mxu0
        %v1182 = vadd.f32 0.0, %v1181
        %v1183 = vpop.f32.mrb[0].mxu0
        %v1184 = vpop.f32.mrb[0].mxu0
        %v1185 = vadd.f32 0.0, %v1184
        %v1186 = vpop.f32.mrb[0].mxu0
        %1187 = vmatprep.mubr.bf16.mxu0 %v774
        %1188 = vmatmul.mubr.bf16.gmra.mrb[0].mxu0 %v773
        %v1189 = vpop.f32.mrb[0].mxu0
        %v1190 = vadd.f32 0.0, %v1189
        %v1191 = vpop.f32.mrb[0].mxu0
        %v1192 = vpop.f32.mrb[0].mxu0
        %v1193 = vadd.f32 0.0, %v1192
        %v1194 = vpop.f32.mrb[0].mxu0
        %1195 = vmatprep.mubr.bf16.mxu0 %v776
        %1196 = vmatmul.mubr.bf16.gmra.mrb[0].mxu0 %v775
        %v1197 = vpop.f32.mrb[0].mxu0
        %v1198 = vadd.f32 0.0, %v1197
        %v1199 = vpop.f32.mrb[0].mxu0
        %v1200 = vpop.f32.mrb[0].mxu0
        %v1201 = vadd.f32 0.0, %v1200
        %v1202 = vpop.f32.mrb[0].mxu0
        %1203 = vmatprep.mubr.bf16.mxu0 %v778
        %1204 = vmatmul.mubr.bf16.gmra.mrb[0].mxu0 %v777
        %v1205 = vpop.f32.mrb[0].mxu0
        %v1206 = vadd.f32 0.0, %v1205
        %v1207 = vpop.f32.mrb[0].mxu0
        %v1208 = vpop.f32.mrb[0].mxu0
        %v1209 = vadd.f32 0.0, %v1208
        %v1210 = vpop.f32.mrb[0].mxu0
        %1211 = vmatprep.mubr.bf16.mxu0 %v780
        %1212 = vmatmul.mubr.bf16.gmra.mrb[0].mxu0 %v779
        %v1213 = vpop.f32.mrb[0].mxu0
        %v1214 = vadd.f32 0.0, %v1213
        %v1215 = vpop.f32.mrb[0].mxu0
        %v1216 = vpop.f32.mrb[0].mxu0
        %v1217 = vadd.f32 0.0, %v1216
        %v1218 = vpop.f32.mrb[0].mxu0
        %1219 = vmatprep.mubr.bf16.mxu0 %v782
        %1220 = vmatmul.mubr.bf16.gmra.mrb[0].mxu0 %v781
        %v1221 = vpop.f32.mrb[0].mxu0
        %v1222 = vadd.f32 0.0, %v1221
        %v1223 = vpop.f32.mrb[0].mxu0
        %v1224 = vpop.f32.mrb[0].mxu0
        %v1225 = vadd.f32 0.0, %v1224
        %v1226 = vpop.f32.mrb[0].mxu0
        %1227 = vmatprep.mubr.bf16.mxu0 %v784
        %1228 = vmatmul.mubr.bf16.gmra.mrb[0].mxu0 %v783
        %v1229 = vpop.f32.mrb[0].mxu0
        %v1230 = vadd.f32 0.0, %v1229
        %v1231 = vpop.f32.mrb[0].mxu0
        %v1232 = vpop.f32.mrb[0].mxu0
        %v1233 = vadd.f32 0.0, %v1232
        %v1234 = vpop.f32.mrb[0].mxu0
        %1235 = vmatprep.mubr.bf16.mxu0 %v786
        %1236 = vmatmul.mubr.bf16.gmra.mrb[0].mxu0 %v785
        %v1237 = vpop.f32.mrb[0].mxu0
        %v1238 = vadd.f32 0.0, %v1237
        %v1239 = vpop.f32.mrb[0].mxu0
        %v1240 = vpop.f32.mrb[0].mxu0
        %v1241 = vadd.f32 0.0, %v1240
        %v1242 = vpop.f32.mrb[0].mxu0
        %1243 = vmatprep.mubr.bf16.mxu0 %v788
        %1244 = vmatmul.mubr.bf16.gmra.mrb[0].mxu0 %v787
        %v1245 = vpop.f32.mrb[0].mxu0
        %v1246 = vadd.f32 0.0, %v1245
        %v1247 = vpop.f32.mrb[0].mxu0
        %v1248 = vpop.f32.mrb[0].mxu0
        %v1249 = vadd.f32 0.0, %v1248
        %v1250 = vpop.f32.mrb[0].mxu0
        %1251 = vmatprep.mubr.bf16.mxu0 %v790
        %1252 = vmatmul.mubr.bf16.gmra.mrb[0].mxu0 %v789
        %v1253 = vpop.f32.mrb[0].mxu0
        %v1254 = vadd.f32 0.0, %v1253
        %v1255 = vpop.f32.mrb[0].mxu0
        %v1256 = vpop.f32.mrb[0].mxu0
        %v1257 = vadd.f32 0.0, %v1256
        %v1258 = vpop.f32.mrb[0].mxu0
        %1259 = vmatprep.mubr.bf16.mxu0 %v792
        %1260 = vmatmul.mubr.bf16.gmra.mrb[0].mxu0 %v791
        %v1261 = vpop.f32.mrb[0].mxu0
        %v1262 = vadd.f32 0.0, %v1261
        %v1263 = vpop.f32.mrb[0].mxu0
        %v1264 = vpop.f32.mrb[0].mxu0
        %v1265 = vadd.f32 0.0, %v1264
        %v1266 = vpop.f32.mrb[0].mxu0
        %1267 = vmatprep.mubr.bf16.mxu0 %v794
        %1268 = vmatmul.mubr.bf16.gmra.mrb[0].mxu0 %v793
        %v1269 = vpop.f32.mrb[0].mxu0
        %v1270 = vadd.f32 0.0, %v1269
        %v1271 = vpop.f32.mrb[0].mxu0
        %v1272 = vpop.f32.mrb[0].mxu0
        %v1273 = vadd.f32 0.0, %v1272
        %v1274 = vpop.f32.mrb[0].mxu0
        %1275 = vmatprep.mubr.bf16.mxu0 %v796
        %1276 = vmatmul.mubr.bf16.gmra.mrb[0].mxu0 %v795
        %v1277 = vpop.f32.mrb[0].mxu0
        %v1278 = vadd.f32 0.0, %v1277
        %v1279 = vpop.f32.mrb[0].mxu0
        %v1280 = vpop.f32.mrb[0].mxu0
        %v1281 = vadd.f32 0.0, %v1280
        %v1282 = vpop.f32.mrb[0].mxu0
        %1283 = vmatprep.mubr.bf16.mxu0 %v798
        %1284 = vmatmul.mubr.bf16.gmra.mrb[0].mxu0 %v797
        %v1285 = vpop.f32.mrb[0].mxu0
        %v1286 = vadd.f32 0.0, %v1285
        %v1287 = vpop.f32.mrb[0].mxu0
        %v1288 = vpop.f32.mrb[0].mxu0
        %v1289 = vadd.f32 0.0, %v1288
        %v1290 = vpop.f32.mrb[0].mxu0
        %1291 = vmatprep.mubr.bf16.mxu0 %v800
        %1292 = vmatmul.mubr.bf16.gmra.mrb[0].mxu0 %v799
        %v1293 = vpop.f32.mrb[0].mxu0
        %v1294 = vadd.f32 0.0, %v1293
        %v1295 = vpop.f32.mrb[0].mxu0
        %v1296 = vpop.f32.mrb[0].mxu0
        %v1297 = vadd.f32 0.0, %v1296
        %v1298 = vpop.f32.mrb[0].mxu0
        %1299 = vmatprep.mubr.bf16.mxu0 %v802
        %1300 = vmatmul.mubr.bf16.gmra.mrb[0].mxu0 %v801
        %v1301 = vpop.f32.mrb[0].mxu0
        %v1302 = vadd.f32 0.0, %v1301
        %v1303 = vpop.f32.mrb[0].mxu0
        %v1304 = vpop.f32.mrb[0].mxu0
        %v1305 = vadd.f32 0.0, %v1304
        %v1306 = vpop.f32.mrb[0].mxu0
        %1307 = vmatprep.mubr.bf16.mxu0 %v804
        %1308 = vmatmul.mubr.bf16.gmra.mrb[0].mxu0 %v803
        %v1309 = vpop.f32.mrb[0].mxu0
        %v1310 = vadd.f32 0.0, %v1309
        %v1311 = vpop.f32.mrb[0].mxu0
        %v1312 = vpop.f32.mrb[0].mxu0
        %v1313 = vadd.f32 0.0, %v1312
        %v1314 = vpop.f32.mrb[0].mxu0
        %1315 = vmatprep.mubr.bf16.mxu0 %v806
        %1316 = vmatmul.mubr.bf16.gmra.mrb[0].mxu0 %v805
        %v1317 = vpop.f32.mrb[0].mxu0
        %v1318 = vadd.f32 0.0, %v1317
        %v1319 = vpop.f32.mrb[0].mxu0
        %v1320 = vpop.f32.mrb[0].mxu0
        %v1321 = vadd.f32 0.0, %v1320
        %v1322 = vpop.f32.mrb[0].mxu0
        %1323 = vmatprep.mubr.bf16.mxu0 %v808
        %1324 = vmatmul.mubr.bf16.gmra.mrb[0].mxu0 %v807
        %v1325 = vpop.f32.mrb[0].mxu0
        %v1326 = vadd.f32 0.0, %v1325
        %v1327 = vpop.f32.mrb[0].mxu0
        %v1328 = vpop.f32.mrb[0].mxu0
        %v1329 = vadd.f32 0.0, %v1328
        %v1330 = vpop.f32.mrb[0].mxu0
        %1331 = vmatprep.mubr.bf16.mxu0 %v810
        %1332 = vmatmul.mubr.bf16.gmra.mrb[0].mxu0 %v809
        %v1333 = vpop.f32.mrb[0].mxu0
        %v1334 = vadd.f32 0.0, %v1333
        %v1335 = vpop.f32.mrb[0].mxu0
        %v1336 = vpop.f32.mrb[0].mxu0
        %v1337 = vadd.f32 0.0, %v1336
        %v1338 = vpop.f32.mrb[0].mxu0
        %1339 = vmatprep.mubr.bf16.mxu0 %v812
        %1340 = vmatmul.mubr.bf16.gmra.mrb[0].mxu0 %v811
        %v1341 = vpop.f32.mrb[0].mxu0
        %v1342 = vadd.f32 0.0, %v1341
        %v1343 = vpop.f32.mrb[0].mxu0
        %v1344 = vpop.f32.mrb[0].mxu0
        %v1345 = vadd.f32 0.0, %v1344
        %v1346 = vpop.f32.mrb[0].mxu0
        %1347 = vmatprep.mubr.bf16.mxu0 %v814
        %1348 = vmatmul.mubr.bf16.gmra.mrb[0].mxu0 %v813
        %v1349 = vpop.f32.mrb[0].mxu0
        %v1350 = vadd.f32 0.0, %v1349
        %v1351 = vpop.f32.mrb[0].mxu0
        %v1352 = vpop.f32.mrb[0].mxu0
        %v1353 = vadd.f32 0.0, %v1352
        %v1354 = vpop.f32.mrb[0].mxu0
        %1355 = vmatprep.mubr.bf16.mxu0 %v816
        %1356 = vmatmul.mubr.bf16.gmra.mrb[0].mxu0 %v815
        %v1357 = vpop.f32.mrb[0].mxu0
        %v1358 = vadd.f32 0.0, %v1357
        %v1359 = vpop.f32.mrb[0].mxu0
        %v1360 = vpop.f32.mrb[0].mxu0
        %v1361 = vadd.f32 0.0, %v1360
        %v1362 = vpop.f32.mrb[0].mxu0
        %1363 = vmatprep.mubr.bf16.mxu0 %v818
        %1364 = vmatmul.mubr.bf16.gmra.mrb[0].mxu0 %v817
        %v1365 = vpop.f32.mrb[0].mxu0
        %v1366 = vadd.f32 0.0, %v1365
        %v1367 = vpop.f32.mrb[0].mxu0
        %v1368 = vpop.f32.mrb[0].mxu0
        %v1369 = vadd.f32 0.0, %v1368
        %v1370 = vpop.f32.mrb[0].mxu0
        %1371 = vmatprep.mubr.bf16.mxu0 %v820
        %1372 = vmatmul.mubr.bf16.gmra.mrb[0].mxu0 %v819
        %v1373 = vpop.f32.mrb[0].mxu0
        %v1374 = vadd.f32 0.0, %v1373
        %v1375 = vpop.f32.mrb[0].mxu0
        %v1376 = vpop.f32.mrb[0].mxu0
        %v1377 = vadd.f32 0.0, %v1376
        %v1378 = vpop.f32.mrb[0].mxu0
        %1379 = vmatprep.mubr.bf16.mxu0 %v822
        %1380 = vmatmul.mubr.bf16.gmra.mrb[0].mxu0 %v821
        %v1381 = vpop.f32.mrb[0].mxu0
        %v1382 = vadd.f32 0.0, %v1381
        %v1383 = vpop.f32.mrb[0].mxu0
        %v1384 = vpop.f32.mrb[0].mxu0
        %v1385 = vadd.f32 0.0, %v1384
        %v1386 = vpop.f32.mrb[0].mxu0
        %1387 = vmatprep.mubr.bf16.mxu0 %v824
        %1388 = vmatmul.mubr.bf16.gmra.mrb[0].mxu0 %v823
        %v1389 = vpop.f32.mrb[0].mxu0
        %v1390 = vadd.f32 0.0, %v1389
        %v1391 = vpop.f32.mrb[0].mxu0
        %v1392 = vpop.f32.mrb[0].mxu0
        %v1393 = vadd.f32 0.0, %v1392
        %v1394 = vpop.f32.mrb[0].mxu0
        %1395 = vmatprep.mubr.bf16.mxu0 %v826
        %1396 = vmatmul.mubr.bf16.gmra.mrb[0].mxu0 %v825
        %v1397 = vpop.f32.mrb[0].mxu0
        %v1398 = vadd.f32 0.0, %v1397
        %v1399 = vpop.f32.mrb[0].mxu0
        %v1400 = vpop.f32.mrb[0].mxu0
        %v1401 = vadd.f32 0.0, %v1400
        %v1402 = vpop.f32.mrb[0].mxu0
        %1403 = vmatprep.mubr.bf16.mxu0 %v828
        %1404 = vmatmul.mubr.bf16.gmra.mrb[0].mxu0 %v827
        %v1405 = vpop.f32.mrb[0].mxu0
        %v1406 = vadd.f32 0.0, %v1405
        %v1407 = vpop.f32.mrb[0].mxu0
        %v1408 = vpop.f32.mrb[0].mxu0
        %v1409 = vadd.f32 0.0, %v1408
        %v1410 = vpop.f32.mrb[0].mxu0
        %1411 = vmatprep.mubr.bf16.mxu0 %v830
        %1412 = vmatmul.mubr.bf16.gmra.mrb[0].mxu0 %v829
        %v1413 = vpop.f32.mrb[0].mxu0
        %v1414 = vadd.f32 0.0, %v1413
        %v1415 = vpop.f32.mrb[0].mxu0
        %v1416 = vpop.f32.mrb[0].mxu0
        %v1417 = vadd.f32 0.0, %v1416
        %v1418 = vpop.f32.mrb[0].mxu0
        %1419 = vmatprep.mubr.bf16.mxu0 %v832
        %1420 = vmatmul.mubr.bf16.gmra.mrb[0].mxu0 %v831
        %v1421 = vpop.f32.mrb[0].mxu0
        %v1422 = vadd.f32 0.0, %v1421
        %v1423 = vpop.f32.mrb[0].mxu0
        %v1424 = vpop.f32.mrb[0].mxu0
        %v1425 = vadd.f32 0.0, %v1424
        %v1426 = vpop.f32.mrb[0].mxu0
        %1427 = vmatprep.mubr.bf16.mxu0 %v834
        %1428 = vmatmul.mubr.bf16.gmra.mrb[0].mxu0 %v833
        %v1429 = vpop.f32.mrb[0].mxu0
        %v1430 = vadd.f32 0.0, %v1429
        %v1431 = vpop.f32.mrb[0].mxu0
        %v1432 = vpop.f32.mrb[0].mxu0
        %v1433 = vadd.f32 0.0, %v1432
        %v1434 = vpop.f32.mrb[0].mxu0
        %1435 = vmatprep.mubr.bf16.mxu0 %v836
        %1436 = vmatmul.mubr.bf16.gmra.mrb[0].mxu0 %v835
        %v1437 = vpop.f32.mrb[0].mxu0
        %v1438 = vadd.f32 0.0, %v1437
        %v1439 = vpop.f32.mrb[0].mxu0
        %v1440 = vpop.f32.mrb[0].mxu0
        %v1441 = vadd.f32 0.0, %v1440
        %v1442 = vpop.f32.mrb[0].mxu0
        %1443 = vmatprep.mubr.bf16.mxu0 %v838
        %1444 = vmatmul.mubr.bf16.gmra.mrb[0].mxu0 %v837
        %v1445 = vpop.f32.mrb[0].mxu0
        %v1446 = vadd.f32 0.0, %v1445
        %v1447 = vpop.f32.mrb[0].mxu0
        %v1448 = vpop.f32.mrb[0].mxu0
        %v1449 = vadd.f32 0.0, %v1448
        %v1450 = vpop.f32.mrb[0].mxu0
        %1451 = vmatprep.mubr.bf16.mxu0 %v840
        %1452 = vmatmul.mubr.bf16.gmra.mrb[0].mxu0 %v839
        %v1453 = vpop.f32.mrb[0].mxu0
        %v1454 = vadd.f32 0.0, %v1453
        %v1455 = vpop.f32.mrb[0].mxu0
        %v1456 = vpop.f32.mrb[0].mxu0
        %v1457 = vadd.f32 0.0, %v1456
        %v1458 = vpop.f32.mrb[0].mxu0
        %1459 = vmatprep.mubr.bf16.mxu0 %v842
        %1460 = vmatmul.mubr.bf16.gmra.mrb[0].mxu0 %v841
        %v1461 = vpop.f32.mrb[0].mxu0
        %v1462 = vadd.f32 0.0, %v1461
        %v1463 = vpop.f32.mrb[0].mxu0
        %v1464 = vpop.f32.mrb[0].mxu0
        %v1465 = vadd.f32 0.0, %v1464
        %v1466 = vpop.f32.mrb[0].mxu0
        %1467 = vmatprep.mubr.bf16.mxu0 %v844
        %1468 = vmatmul.mubr.bf16.gmra.mrb[0].mxu0 %v843
        %v1469 = vpop.f32.mrb[0].mxu0
        %v1470 = vadd.f32 0.0, %v1469
        %v1471 = vpop.f32.mrb[0].mxu0
        %v1472 = vpop.f32.mrb[0].mxu0
        %v1473 = vadd.f32 0.0, %v1472
        %v1474 = vpop.f32.mrb[0].mxu0
        %1475 = vmatprep.mubr.bf16.mxu0 %v846
        %1476 = vmatmul.mubr.bf16.gmra.mrb[0].mxu0 %v845
        %v1477 = vpop.f32.mrb[0].mxu0
        %v1478 = vadd.f32 0.0, %v1477
        %v1479 = vpop.f32.mrb[0].mxu0
        %v1480 = vpop.f32.mrb[0].mxu0
        %v1481 = vadd.f32 0.0, %v1480
        %v1482 = vpop.f32.mrb[0].mxu0
        %1483 = vmatprep.mubr.bf16.mxu0 %v848
        %1484 = vmatmul.mubr.bf16.gmra.mrb[0].mxu0 %v847
        %v1485 = vpop.f32.mrb[0].mxu0
        %v1486 = vadd.f32 0.0, %v1485
        %v1487 = vpop.f32.mrb[0].mxu0
        %v1488 = vpop.f32.mrb[0].mxu0
        %v1489 = vadd.f32 0.0, %v1488
        %v1490 = vpop.f32.mrb[0].mxu0
        %1491 = vmatprep.mubr.bf16.mxu0 %v850
        %1492 = vmatmul.mubr.bf16.gmra.mrb[0].mxu0 %v849
        %v1493 = vpop.f32.mrb[0].mxu0
        %v1494 = vadd.f32 0.0, %v1493
        %v1495 = vpop.f32.mrb[0].mxu0
        %v1496 = vpop.f32.mrb[0].mxu0
        %v1497 = vadd.f32 0.0, %v1496
        %v1498 = vpop.f32.mrb[0].mxu0
        %1499 = vmatprep.mubr.bf16.mxu0 %v852
        %1500 = vmatmul.mubr.bf16.gmra.mrb[0].mxu0 %v851
        %v1501 = vpop.f32.mrb[0].mxu0
        %v1502 = vadd.f32 0.0, %v1501
        %v1503 = vpop.f32.mrb[0].mxu0
        %v1504 = vpop.f32.mrb[0].mxu0
        %v1505 = vadd.f32 0.0, %v1504
        %v1506 = vpop.f32.mrb[0].mxu0
        %1507 = vmatprep.mubr.bf16.mxu0 %v854
        %1508 = vmatmul.mubr.bf16.gmra.mrb[0].mxu0 %v853
        %v1509 = vpop.f32.mrb[0].mxu0
        %v1510 = vadd.f32 0.0, %v1509
        %v1511 = vpop.f32.mrb[0].mxu0
        %v1512 = vpop.f32.mrb[0].mxu0
        %v1513 = vadd.f32 0.0, %v1512
        %v1514 = vpop.f32.mrb[0].mxu0
        %1515 = vmatprep.mubr.bf16.mxu0 %v856
        %1516 = vmatmul.mubr.bf16.gmra.mrb[0].mxu0 %v855
        %v1517 = vpop.f32.mrb[0].mxu0
        %v1518 = vadd.f32 0.0, %v1517
        %v1519 = vpop.f32.mrb[0].mxu0
        %v1520 = vpop.f32.mrb[0].mxu0
        %v1521 = vadd.f32 0.0, %v1520
        %v1522 = vpop.f32.mrb[0].mxu0
        %1523 = vmatprep.mubr.bf16.mxu0 %v858
        %1524 = vmatmul.mubr.bf16.gmra.mrb[0].mxu0 %v857
        %v1525 = vpop.f32.mrb[0].mxu0
        %v1526 = vadd.f32 0.0, %v1525
        %v1527 = vpop.f32.mrb[0].mxu0
        %v1528 = vpop.f32.mrb[0].mxu0
        %v1529 = vadd.f32 0.0, %v1528
        %v1530 = vpop.f32.mrb[0].mxu0
        %1531 = vmatprep.mubr.bf16.mxu0 %v860
        %1532 = vmatmul.mubr.bf16.gmra.mrb[0].mxu0 %v859
        %v1533 = vpop.f32.mrb[0].mxu0
        %v1534 = vadd.f32 0.0, %v1533
        %v1535 = vpop.f32.mrb[0].mxu0
        %v1536 = vpop.f32.mrb[0].mxu0
        %v1537 = vadd.f32 0.0, %v1536
        %v1538 = vpop.f32.mrb[0].mxu0
        %1539 = vmatprep.mubr.bf16.mxu0 %v862
        %1540 = vmatmul.mubr.bf16.gmra.mrb[0].mxu0 %v861
        %v1541 = vpop.f32.mrb[0].mxu0
        %v1542 = vadd.f32 0.0, %v1541
        %v1543 = vpop.f32.mrb[0].mxu0
        %v1544 = vpop.f32.mrb[0].mxu0
        %v1545 = vadd.f32 0.0, %v1544
        %v1546 = vpop.f32.mrb[0].mxu0
        %1547 = vmatprep.mubr.bf16.mxu0 %v864
        %1548 = vmatmul.mubr.bf16.gmra.mrb[0].mxu0 %v863
        %v1549 = vpop.f32.mrb[0].mxu0
        %v1550 = vadd.f32 0.0, %v1549
        %v1551 = vpop.f32.mrb[0].mxu0
        %v1552 = vpop.f32.mrb[0].mxu0
        %v1553 = vadd.f32 0.0, %v1552
        %v1554 = vpop.f32.mrb[0].mxu0
        %1555 = vmatprep.mubr.bf16.mxu0 %v866
        %1556 = vmatmul.mubr.bf16.gmra.mrb[0].mxu0 %v865
        %v1557 = vpop.f32.mrb[0].mxu0
        %v1558 = vadd.f32 0.0, %v1557
        %v1559 = vpop.f32.mrb[0].mxu0
        %v1560 = vpop.f32.mrb[0].mxu0
        %v1561 = vadd.f32 0.0, %v1560
        %v1562 = vpop.f32.mrb[0].mxu0
        %1563 = vmatprep.mubr.bf16.mxu0 %v868
        %1564 = vmatmul.mubr.bf16.gmra.mrb[0].mxu0 %v867
        %v1565 = vpop.f32.mrb[0].mxu0
        %v1566 = vadd.f32 0.0, %v1565
        %v1567 = vpop.f32.mrb[0].mxu0
        %v1568 = vpop.f32.mrb[0].mxu0
        %v1569 = vadd.f32 0.0, %v1568
        %v1570 = vpop.f32.mrb[0].mxu0
        %1571 = vmatprep.mubr.bf16.mxu0 %v870
        %1572 = vmatmul.mubr.bf16.gmra.mrb[0].mxu0 %v869
        %v1573 = vpop.f32.mrb[0].mxu0
        %v1574 = vadd.f32 0.0, %v1573
        %v1575 = vpop.f32.mrb[0].mxu0
        %v1576 = vpop.f32.mrb[0].mxu0
        %v1577 = vadd.f32 0.0, %v1576
        %v1578 = vpop.f32.mrb[0].mxu0
        %1579 = vmatprep.mubr.bf16.mxu0 %v872
        %1580 = vmatmul.mubr.bf16.gmra.mrb[0].mxu0 %v871
        %v1581 = vpop.f32.mrb[0].mxu0
        %v1582 = vadd.f32 0.0, %v1581
        %v1583 = vpop.f32.mrb[0].mxu0
        %v1584 = vpop.f32.mrb[0].mxu0
        %v1585 = vadd.f32 0.0, %v1584
        %v1586 = vpop.f32.mrb[0].mxu0
        %1587 = vmatprep.mubr.bf16.mxu0 %v874
        %1588 = vmatmul.mubr.bf16.gmra.mrb[0].mxu0 %v873
        %v1589 = vpop.f32.mrb[0].mxu0
        %v1590 = vadd.f32 0.0, %v1589
        %v1591 = vpop.f32.mrb[0].mxu0
        %v1592 = vpop.f32.mrb[0].mxu0
        %v1593 = vadd.f32 0.0, %v1592
        %v1594 = vpop.f32.mrb[0].mxu0
        %1595 = vmatprep.mubr.bf16.mxu0 %v876
        %1596 = vmatmul.mubr.bf16.gmra.mrb[0].mxu0 %v875
        %v1597 = vpop.f32.mrb[0].mxu0
        %v1598 = vadd.f32 0.0, %v1597
        %v1599 = vpop.f32.mrb[0].mxu0
        %v1600 = vpop.f32.mrb[0].mxu0
        %v1601 = vadd.f32 0.0, %v1600
        %v1602 = vpop.f32.mrb[0].mxu0
        %1603 = vmatprep.mubr.bf16.mxu0 %v878
        %1604 = vmatmul.mubr.bf16.gmra.mrb[0].mxu0 %v877
        %v1605 = vpop.f32.mrb[0].mxu0
        %v1606 = vadd.f32 0.0, %v1605
        %v1607 = vpop.f32.mrb[0].mxu0
        %v1608 = vpop.f32.mrb[0].mxu0
        %v1609 = vadd.f32 0.0, %v1608
        %v1610 = vpop.f32.mrb[0].mxu0
        %1611 = vmatprep.mubr.bf16.mxu0 %v880
        %1612 = vmatmul.mubr.bf16.gmra.mrb[0].mxu0 %v879
        %v1613 = vpop.f32.mrb[0].mxu0
        %v1614 = vadd.f32 0.0, %v1613
        %v1615 = vpop.f32.mrb[0].mxu0
        %v1616 = vpop.f32.mrb[0].mxu0
        %v1617 = vadd.f32 0.0, %v1616
        %v1618 = vpop.f32.mrb[0].mxu0
        %1619 = vmatprep.mubr.bf16.mxu0 %v882
        %1620 = vmatmul.mubr.bf16.gmra.mrb[0].mxu0 %v881
        %v1621 = vpop.f32.mrb[0].mxu0
        %v1622 = vadd.f32 0.0, %v1621
        %v1623 = vpop.f32.mrb[0].mxu0
        %v1624 = vpop.f32.mrb[0].mxu0
        %v1625 = vadd.f32 0.0, %v1624
        %v1626 = vpop.f32.mrb[0].mxu0
        %1627 = vmatprep.mubr.bf16.mxu0 %v884
        %1628 = vmatmul.mubr.bf16.gmra.mrb[0].mxu0 %v883
        %v1629 = vpop.f32.mrb[0].mxu0
        %v1630 = vadd.f32 0.0, %v1629
        %v1631 = vpop.f32.mrb[0].mxu0
        %v1632 = vpop.f32.mrb[0].mxu0
        %v1633 = vadd.f32 0.0, %v1632
        %v1634 = vpop.f32.mrb[0].mxu0
        %1635 = vmatprep.mubr.bf16.mxu0 %v886
        %1636 = vmatmul.mubr.bf16.gmra.mrb[0].mxu0 %v885
        %v1637 = vpop.f32.mrb[0].mxu0
        %v1638 = vadd.f32 0.0, %v1637
        %v1639 = vpop.f32.mrb[0].mxu0
        %v1640 = vpop.f32.mrb[0].mxu0
        %v1641 = vadd.f32 0.0, %v1640
        %v1642 = vpop.f32.mrb[0].mxu0
        %1643 = vmatprep.mubr.bf16.mxu0 %v888
        %1644 = vmatmul.mubr.bf16.gmra.mrb[0].mxu0 %v887
        %v1645 = vpop.f32.mrb[0].mxu0
        %v1646 = vadd.f32 0.0, %v1645
        %v1647 = vpop.f32.mrb[0].mxu0
        %v1648 = vpop.f32.mrb[0].mxu0
        %v1649 = vadd.f32 0.0, %v1648
        %v1650 = vpop.f32.mrb[0].mxu0
        %1651 = vmatprep.mubr.bf16.mxu0 %v890
        %1652 = vmatmul.mubr.bf16.gmra.mrb[0].mxu0 %v889
        %v1653 = vpop.f32.mrb[0].mxu0
        %v1654 = vadd.f32 0.0, %v1653
        %v1655 = vpop.f32.mrb[0].mxu0
        %v1656 = vpop.f32.mrb[0].mxu0
        %v1657 = vadd.f32 0.0, %v1656
        %v1658 = vpop.f32.mrb[0].mxu0
        %1659 = vdwg.mxu0
        %p1660 = scmp.eq.s32.totalorder %s27, 0
        // Predicated region
        $region37: #{conv2d.1} parent=27 // pred_check
          %p1661 = pneg %p1660
        $region38: #{conv2d.1} parent=27 // pred_check_branch
          %1663 = sbr.rel (%p1661) target = $region40
        $region39: #{conv2d.1} parent=27 // pred_region
          %1664 = vst [vmem:[#allocation2] sm:$0xff] %v1150
          %1665 = vst [vmem:[#allocation2 + $0x8] sm:$0xff] %v1153
          %1666 = vst [vmem:[#allocation2 + $0x10] sm:$0xff] %v1158
          %1667 = vst [vmem:[#allocation2 + $0x18] sm:$0xff] %v1161
          %1668 = vst [vmem:[#allocation2 + $0x20] sm:$0xff] %v1166
          %1669 = vst [vmem:[#allocation2 + $0x28] sm:$0xff] %v1169
          %1670 = vst [vmem:[#allocation2 + $0x30] sm:$0xff] %v1174
          %1671 = vst [vmem:[#allocation2 + $0x38] sm:$0xff] %v1177
          %1672 = vst [vmem:[#allocation2 + $0x40] sm:$0xff] %v1182
          %1673 = vst [vmem:[#allocation2 + $0x48] sm:$0xff] %v1185
          %1674 = vst [vmem:[#allocation2 + $0x50] sm:$0xff] %v1190
          %1675 = vst [vmem:[#allocation2 + $0x58] sm:$0xff] %v1193
          %1676 = vst [vmem:[#allocation2 + $0x60] sm:$0xff] %v1198
          %1677 = vst [vmem:[#allocation2 + $0x68] sm:$0xff] %v1201
          %1678 = vst [vmem:[#allocation2 + $0x70] sm:$0xff] %v1206
          %1679 = vst [vmem:[#allocation2 + $0x78] sm:$0xff] %v1209
          %1680 = vst [vmem:[#allocation2 + $0x80] sm:$0xff] %v1214
          %1681 = vst [vmem:[#allocation2 + $0x88] sm:$0xff] %v1217
          %1682 = vst [vmem:[#allocation2 + $0x90] sm:$0xff] %v1222
          %1683 = vst [vmem:[#allocation2 + $0x98] sm:$0xff] %v1225
          %1684 = vst [vmem:[#allocation2 + $0xa0] sm:$0xff] %v1230
          %1685 = vst [vmem:[#allocation2 + $0xa8] sm:$0xff] %v1233
          %1686 = vst [vmem:[#allocation2 + $0xb0] sm:$0xff] %v1238
          %1687 = vst [vmem:[#allocation2 + $0xb8] sm:$0xff] %v1241
          %1688 = vst [vmem:[#allocation2 + $0xc0] sm:$0xff] %v1246
          %1689 = vst [vmem:[#allocation2 + $0xc8] sm:$0xff] %v1249
          %1690 = vst [vmem:[#allocation2 + $0xd0] sm:$0xff] %v1254
          %1691 = vst [vmem:[#allocation2 + $0xd8] sm:$0xff] %v1257
          %1692 = vst [vmem:[#allocation2 + $0xe0] sm:$0xff] %v1262
          %1693 = vst [vmem:[#allocation2 + $0xe8] sm:$0xff] %v1265
          %1694 = vst [vmem:[#allocation2 + $0xf0] sm:$0xff] %v1270
          %1695 = vst [vmem:[#allocation2 + $0xf8] sm:$0xff] %v1273
          %1696 = vst [vmem:[#allocation2 + $0x100] sm:$0xff] %v1278
          %1697 = vst [vmem:[#allocation2 + $0x108] sm:$0xff] %v1281
          %1698 = vst [vmem:[#allocation2 + $0x110] sm:$0xff] %v1286
          %1699 = vst [vmem:[#allocation2 + $0x118] sm:$0xff] %v1289
          %1700 = vst [vmem:[#allocation2 + $0x120] sm:$0xff] %v1294
          %1701 = vst [vmem:[#allocation2 + $0x128] sm:$0xff] %v1297
          %1702 = vst [vmem:[#allocation2 + $0x130] sm:$0xff] %v1302
          %1703 = vst [vmem:[#allocation2 + $0x138] sm:$0xff] %v1305
          %1704 = vst [vmem:[#allocation2 + $0x140] sm:$0xff] %v1310
          %1705 = vst [vmem:[#allocation2 + $0x148] sm:$0xff] %v1313
          %1706 = vst [vmem:[#allocation2 + $0x150] sm:$0xff] %v1318
          %1707 = vst [vmem:[#allocation2 + $0x158] sm:$0xff] %v1321
          %1708 = vst [vmem:[#allocation2 + $0x160] sm:$0xff] %v1326
          %1709 = vst [vmem:[#allocation2 + $0x168] sm:$0xff] %v1329
          %1710 = vst [vmem:[#allocation2 + $0x170] sm:$0xff] %v1334
          %1711 = vst [vmem:[#allocation2 + $0x178] sm:$0xff] %v1337
          %1712 = vst [vmem:[#allocation2 + $0x180] sm:$0xff] %v1342
          %1713 = vst [vmem:[#allocation2 + $0x188] sm:$0xff] %v1345
          %1714 = vst [vmem:[#allocation2 + $0x190] sm:$0xff] %v1350
          %1715 = vst [vmem:[#allocation2 + $0x198] sm:$0xff] %v1353
          %1716 = vst [vmem:[#allocation2 + $0x1a0] sm:$0xff] %v1358
          %1717 = vst [vmem:[#allocation2 + $0x1a8] sm:$0xff] %v1361
          %1718 = vst [vmem:[#allocation2 + $0x1b0] sm:$0xff] %v1366
          %1719 = vst [vmem:[#allocation2 + $0x1b8] sm:$0xff] %v1369
          %1720 = vst [vmem:[#allocation2 + $0x1c0] sm:$0xff] %v1374
          %1721 = vst [vmem:[#allocation2 + $0x1c8] sm:$0xff] %v1377
          %1722 = vst [vmem:[#allocation2 + $0x1d0] sm:$0xff] %v1382
          %1723 = vst [vmem:[#allocation2 + $0x1d8] sm:$0xff] %v1385
          %1724 = vst [vmem:[#allocation2 + $0x1e0] sm:$0xff] %v1390
          %1725 = vst [vmem:[#allocation2 + $0x1e8] sm:$0xff] %v1393
          %1726 = vst [vmem:[#allocation2 + $0x1f0] sm:$0xff] %v1398
          %1727 = vst [vmem:[#allocation2 + $0x1f8] sm:$0xff] %v1401
          %1728 = vst [vmem:[#allocation2 + $0x200] sm:$0xff] %v1406
          %1729 = vst [vmem:[#allocation2 + $0x208] sm:$0xff] %v1409
          %1730 = vst [vmem:[#allocation2 + $0x210] sm:$0xff] %v1414
          %1731 = vst [vmem:[#allocation2 + $0x218] sm:$0xff] %v1417
          %1732 = vst [vmem:[#allocation2 + $0x220] sm:$0xff] %v1422
          %1733 = vst [vmem:[#allocation2 + $0x228] sm:$0xff] %v1425
          %1734 = vst [vmem:[#allocation2 + $0x230] sm:$0xff] %v1430
          %1735 = vst [vmem:[#allocation2 + $0x238] sm:$0xff] %v1433
          %1736 = vst [vmem:[#allocation2 + $0x240] sm:$0xff] %v1438
          %1737 = vst [vmem:[#allocation2 + $0x248] sm:$0xff] %v1441
          %1738 = vst [vmem:[#allocation2 + $0x250] sm:$0xff] %v1446
          %1739 = vst [vmem:[#allocation2 + $0x258] sm:$0xff] %v1449
          %1740 = vst [vmem:[#allocation2 + $0x260] sm:$0xff] %v1454
          %1741 = vst [vmem:[#allocation2 + $0x268] sm:$0xff] %v1457
          %1742 = vst [vmem:[#allocation2 + $0x270] sm:$0xff] %v1462
          %1743 = vst [vmem:[#allocation2 + $0x278] sm:$0xff] %v1465
          %1744 = vst [vmem:[#allocation2 + $0x280] sm:$0xff] %v1470
          %1745 = vst [vmem:[#allocation2 + $0x288] sm:$0xff] %v1473
          %1746 = vst [vmem:[#allocation2 + $0x290] sm:$0xff] %v1478
          %1747 = vst [vmem:[#allocation2 + $0x298] sm:$0xff] %v1481
          %1748 = vst [vmem:[#allocation2 + $0x2a0] sm:$0xff] %v1486
          %1749 = vst [vmem:[#allocation2 + $0x2a8] sm:$0xff] %v1489
          %1750 = vst [vmem:[#allocation2 + $0x2b0] sm:$0xff] %v1494
          %1751 = vst [vmem:[#allocation2 + $0x2b8] sm:$0xff] %v1497
          %1752 = vst [vmem:[#allocation2 + $0x2c0] sm:$0xff] %v1502
          %1753 = vst [vmem:[#allocation2 + $0x2c8] sm:$0xff] %v1505
          %1754 = vst [vmem:[#allocation2 + $0x2d0] sm:$0xff] %v1510
          %1755 = vst [vmem:[#allocation2 + $0x2d8] sm:$0xff] %v1513
          %1756 = vst [vmem:[#allocation2 + $0x2e0] sm:$0xff] %v1518
          %1757 = vst [vmem:[#allocation2 + $0x2e8] sm:$0xff] %v1521
          %1758 = vst [vmem:[#allocation2 + $0x2f0] sm:$0xff] %v1526
          %1759 = vst [vmem:[#allocation2 + $0x2f8] sm:$0xff] %v1529
          %1760 = vst [vmem:[#allocation2 + $0x300] sm:$0xff] %v1534
          %1761 = vst [vmem:[#allocation2 + $0x308] sm:$0xff] %v1537
          %1762 = vst [vmem:[#allocation2 + $0x310] sm:$0xff] %v1542
          %1763 = vst [vmem:[#allocation2 + $0x318] sm:$0xff] %v1545
          %1764 = vst [vmem:[#allocation2 + $0x320] sm:$0xff] %v1550
          %1765 = vst [vmem:[#allocation2 + $0x328] sm:$0xff] %v1553
          %1766 = vst [vmem:[#allocation2 + $0x330] sm:$0xff] %v1558
          %1767 = vst [vmem:[#allocation2 + $0x338] sm:$0xff] %v1561
          %1768 = vst [vmem:[#allocation2 + $0x340] sm:$0xff] %v1566
          %1769 = vst [vmem:[#allocation2 + $0x348] sm:$0xff] %v1569
          %1770 = vst [vmem:[#allocation2 + $0x350] sm:$0xff] %v1574
          %1771 = vst [vmem:[#allocation2 + $0x358] sm:$0xff] %v1577
          %1772 = vst [vmem:[#allocation2 + $0x360] sm:$0xff] %v1582
          %1773 = vst [vmem:[#allocation2 + $0x368] sm:$0xff] %v1585
          %1774 = vst [vmem:[#allocation2 + $0x370] sm:$0xff] %v1590
          %1775 = vst [vmem:[#allocation2 + $0x378] sm:$0xff] %v1593
          %1776 = vst [vmem:[#allocation2 + $0x380] sm:$0xff] %v1598
          %1777 = vst [vmem:[#allocation2 + $0x388] sm:$0xff] %v1601
          %1778 = vst [vmem:[#allocation2 + $0x390] sm:$0xff] %v1606
          %1779 = vst [vmem:[#allocation2 + $0x398] sm:$0xff] %v1609
          %1780 = vst [vmem:[#allocation2 + $0x3a0] sm:$0xff] %v1614
          %1781 = vst [vmem:[#allocation2 + $0x3a8] sm:$0xff] %v1617
          %1782 = vst [vmem:[#allocation2 + $0x3b0] sm:$0xff] %v1622
          %1783 = vst [vmem:[#allocation2 + $0x3b8] sm:$0xff] %v1625
          %1784 = vst [vmem:[#allocation2 + $0x3c0] sm:$0xff] %v1630
          %1785 = vst [vmem:[#allocation2 + $0x3c8] sm:$0xff] %v1633
          %1786 = vst [vmem:[#allocation2 + $0x3d0] sm:$0xff] %v1638
          %1787 = vst [vmem:[#allocation2 + $0x3d8] sm:$0xff] %v1641
          %1788 = vst [vmem:[#allocation2 + $0x3e0] sm:$0xff] %v1646
          %1789 = vst [vmem:[#allocation2 + $0x3e8] sm:$0xff] %v1649
          %1790 = vst [vmem:[#allocation2 + $0x3f0] sm:$0xff] %v1654
          %1791 = vst [vmem:[#allocation2 + $0x3f8] sm:$0xff] %v1657
        $region40: #{conv2d.1} parent=27 // pred_fallthru
          _
        %p1792 = scmp.ne.s32.totalorder %s27, 0
        // Predicated region
        $region41: #{conv2d.1} parent=27 // pred_check
          %p1793 = pneg %p1792
        $region42: #{conv2d.1} parent=27 // pred_check_branch
          %1795 = sbr.rel (%p1793) target = $region44
        $region43: #{conv2d.1} parent=27 // pred_region
          %v1796 = vld [vmem:[#allocation2] sm:$0xff]
          %v1797 = vld [vmem:[#allocation2 + $0x8] sm:$0xff]
          %v1798 = vld [vmem:[#allocation2 + $0x10] sm:$0xff]
          %v1799 = vld [vmem:[#allocation2 + $0x18] sm:$0xff]
          %v1800 = vld [vmem:[#allocation2 + $0x20] sm:$0xff]
          %v1801 = vld [vmem:[#allocation2 + $0x28] sm:$0xff]
          %v1802 = vld [vmem:[#allocation2 + $0x30] sm:$0xff]
          %v1803 = vld [vmem:[#allocation2 + $0x38] sm:$0xff]
          %v1804 = vld [vmem:[#allocation2 + $0x40] sm:$0xff]
          %v1805 = vld [vmem:[#allocation2 + $0x48] sm:$0xff]
          %v1806 = vld [vmem:[#allocation2 + $0x50] sm:$0xff]
          %v1807 = vld [vmem:[#allocation2 + $0x58] sm:$0xff]
          %v1808 = vld [vmem:[#allocation2 + $0x60] sm:$0xff]
          %v1809 = vld [vmem:[#allocation2 + $0x68] sm:$0xff]
          %v1810 = vld [vmem:[#allocation2 + $0x70] sm:$0xff]
          %v1811 = vld [vmem:[#allocation2 + $0x78] sm:$0xff]
          %v1812 = vld [vmem:[#allocation2 + $0x80] sm:$0xff]
          %v1813 = vld [vmem:[#allocation2 + $0x88] sm:$0xff]
          %v1814 = vld [vmem:[#allocation2 + $0x90] sm:$0xff]
          %v1815 = vld [vmem:[#allocation2 + $0x98] sm:$0xff]
          %v1816 = vld [vmem:[#allocation2 + $0xa0] sm:$0xff]
          %v1817 = vld [vmem:[#allocation2 + $0xa8] sm:$0xff]
          %v1818 = vld [vmem:[#allocation2 + $0xb0] sm:$0xff]
          %v1819 = vld [vmem:[#allocation2 + $0xb8] sm:$0xff]
          %v1820 = vld [vmem:[#allocation2 + $0xc0] sm:$0xff]
          %v1821 = vld [vmem:[#allocation2 + $0xc8] sm:$0xff]
          %v1822 = vld [vmem:[#allocation2 + $0xd0] sm:$0xff]
          %v1823 = vld [vmem:[#allocation2 + $0xd8] sm:$0xff]
          %v1824 = vld [vmem:[#allocation2 + $0xe0] sm:$0xff]
          %v1825 = vld [vmem:[#allocation2 + $0xe8] sm:$0xff]
          %v1826 = vld [vmem:[#allocation2 + $0xf0] sm:$0xff]
          %v1827 = vld [vmem:[#allocation2 + $0xf8] sm:$0xff]
          %v1828 = vld [vmem:[#allocation2 + $0x100] sm:$0xff]
          %v1829 = vld [vmem:[#allocation2 + $0x108] sm:$0xff]
          %v1830 = vld [vmem:[#allocation2 + $0x110] sm:$0xff]
          %v1831 = vld [vmem:[#allocation2 + $0x118] sm:$0xff]
          %v1832 = vld [vmem:[#allocation2 + $0x120] sm:$0xff]
          %v1833 = vld [vmem:[#allocation2 + $0x128] sm:$0xff]
          %v1834 = vld [vmem:[#allocation2 + $0x130] sm:$0xff]
          %v1835 = vld [vmem:[#allocation2 + $0x138] sm:$0xff]
          %v1836 = vld [vmem:[#allocation2 + $0x140] sm:$0xff]
          %v1837 = vld [vmem:[#allocation2 + $0x148] sm:$0xff]
          %v1838 = vld [vmem:[#allocation2 + $0x150] sm:$0xff]
          %v1839 = vld [vmem:[#allocation2 + $0x158] sm:$0xff]
          %v1840 = vld [vmem:[#allocation2 + $0x160] sm:$0xff]
          %v1841 = vld [vmem:[#allocation2 + $0x168] sm:$0xff]
          %v1842 = vld [vmem:[#allocation2 + $0x170] sm:$0xff]
          %v1843 = vld [vmem:[#allocation2 + $0x178] sm:$0xff]
          %v1844 = vld [vmem:[#allocation2 + $0x180] sm:$0xff]
          %v1845 = vld [vmem:[#allocation2 + $0x188] sm:$0xff]
          %v1846 = vld [vmem:[#allocation2 + $0x190] sm:$0xff]
          %v1847 = vld [vmem:[#allocation2 + $0x198] sm:$0xff]
          %v1848 = vld [vmem:[#allocation2 + $0x1a0] sm:$0xff]
          %v1849 = vld [vmem:[#allocation2 + $0x1a8] sm:$0xff]
          %v1850 = vld [vmem:[#allocation2 + $0x1b0] sm:$0xff]
          %v1851 = vld [vmem:[#allocation2 + $0x1b8] sm:$0xff]
          %v1852 = vld [vmem:[#allocation2 + $0x1c0] sm:$0xff]
          %v1853 = vld [vmem:[#allocation2 + $0x1c8] sm:$0xff]
          %v1854 = vld [vmem:[#allocation2 + $0x1d0] sm:$0xff]
          %v1855 = vld [vmem:[#allocation2 + $0x1d8] sm:$0xff]
          %v1856 = vld [vmem:[#allocation2 + $0x1e0] sm:$0xff]
          %v1857 = vld [vmem:[#allocation2 + $0x1e8] sm:$0xff]
          %v1858 = vld [vmem:[#allocation2 + $0x1f0] sm:$0xff]
          %v1859 = vld [vmem:[#allocation2 + $0x1f8] sm:$0xff]
          %v1860 = vld [vmem:[#allocation2 + $0x200] sm:$0xff]
          %v1861 = vld [vmem:[#allocation2 + $0x208] sm:$0xff]
          %v1862 = vld [vmem:[#allocation2 + $0x210] sm:$0xff]
          %v1863 = vld [vmem:[#allocation2 + $0x218] sm:$0xff]
          %v1864 = vld [vmem:[#allocation2 + $0x220] sm:$0xff]
          %v1865 = vld [vmem:[#allocation2 + $0x228] sm:$0xff]
          %v1866 = vld [vmem:[#allocation2 + $0x230] sm:$0xff]
          %v1867 = vld [vmem:[#allocation2 + $0x238] sm:$0xff]
          %v1868 = vld [vmem:[#allocation2 + $0x240] sm:$0xff]
          %v1869 = vld [vmem:[#allocation2 + $0x248] sm:$0xff]
          %v1870 = vld [vmem:[#allocation2 + $0x250] sm:$0xff]
          %v1871 = vld [vmem:[#allocation2 + $0x258] sm:$0xff]
          %v1872 = vld [vmem:[#allocation2 + $0x260] sm:$0xff]
          %v1873 = vld [vmem:[#allocation2 + $0x268] sm:$0xff]
          %v1874 = vld [vmem:[#allocation2 + $0x270] sm:$0xff]
          %v1875 = vld [vmem:[#allocation2 + $0x278] sm:$0xff]
          %v1876 = vld [vmem:[#allocation2 + $0x280] sm:$0xff]
          %v1877 = vld [vmem:[#allocation2 + $0x288] sm:$0xff]
          %v1878 = vld [vmem:[#allocation2 + $0x290] sm:$0xff]
          %v1879 = vld [vmem:[#allocation2 + $0x298] sm:$0xff]
          %v1880 = vld [vmem:[#allocation2 + $0x2a0] sm:$0xff]
          %v1881 = vld [vmem:[#allocation2 + $0x2a8] sm:$0xff]
          %v1882 = vld [vmem:[#allocation2 + $0x2b0] sm:$0xff]
          %v1883 = vld [vmem:[#allocation2 + $0x2b8] sm:$0xff]
          %v1884 = vld [vmem:[#allocation2 + $0x2c0] sm:$0xff]
          %v1885 = vld [vmem:[#allocation2 + $0x2c8] sm:$0xff]
          %v1886 = vld [vmem:[#allocation2 + $0x2d0] sm:$0xff]
          %v1887 = vld [vmem:[#allocation2 + $0x2d8] sm:$0xff]
          %v1888 = vld [vmem:[#allocation2 + $0x2e0] sm:$0xff]
          %v1889 = vld [vmem:[#allocation2 + $0x2e8] sm:$0xff]
          %v1890 = vld [vmem:[#allocation2 + $0x2f0] sm:$0xff]
          %v1891 = vld [vmem:[#allocation2 + $0x2f8] sm:$0xff]
          %v1892 = vld [vmem:[#allocation2 + $0x300] sm:$0xff]
          %v1893 = vld [vmem:[#allocation2 + $0x308] sm:$0xff]
          %v1894 = vld [vmem:[#allocation2 + $0x310] sm:$0xff]
          %v1895 = vld [vmem:[#allocation2 + $0x318] sm:$0xff]
          %v1896 = vld [vmem:[#allocation2 + $0x320] sm:$0xff]
          %v1897 = vld [vmem:[#allocation2 + $0x328] sm:$0xff]
          %v1898 = vld [vmem:[#allocation2 + $0x330] sm:$0xff]
          %v1899 = vld [vmem:[#allocation2 + $0x338] sm:$0xff]
          %v1900 = vld [vmem:[#allocation2 + $0x340] sm:$0xff]
          %v1901 = vld [vmem:[#allocation2 + $0x348] sm:$0xff]
          %v1902 = vld [vmem:[#allocation2 + $0x350] sm:$0xff]
          %v1903 = vld [vmem:[#allocation2 + $0x358] sm:$0xff]
          %v1904 = vld [vmem:[#allocation2 + $0x360] sm:$0xff]
          %v1905 = vld [vmem:[#allocation2 + $0x368] sm:$0xff]
          %v1906 = vld [vmem:[#allocation2 + $0x370] sm:$0xff]
          %v1907 = vld [vmem:[#allocation2 + $0x378] sm:$0xff]
          %v1908 = vld [vmem:[#allocation2 + $0x380] sm:$0xff]
          %v1909 = vld [vmem:[#allocation2 + $0x388] sm:$0xff]
          %v1910 = vld [vmem:[#allocation2 + $0x390] sm:$0xff]
          %v1911 = vld [vmem:[#allocation2 + $0x398] sm:$0xff]
          %v1912 = vld [vmem:[#allocation2 + $0x3a0] sm:$0xff]
          %v1913 = vld [vmem:[#allocation2 + $0x3a8] sm:$0xff]
          %v1914 = vld [vmem:[#allocation2 + $0x3b0] sm:$0xff]
          %v1915 = vld [vmem:[#allocation2 + $0x3b8] sm:$0xff]
          %v1916 = vld [vmem:[#allocation2 + $0x3c0] sm:$0xff]
          %v1917 = vld [vmem:[#allocation2 + $0x3c8] sm:$0xff]
          %v1918 = vld [vmem:[#allocation2 + $0x3d0] sm:$0xff]
          %v1919 = vld [vmem:[#allocation2 + $0x3d8] sm:$0xff]
          %v1920 = vld [vmem:[#allocation2 + $0x3e0] sm:$0xff]
          %v1921 = vld [vmem:[#allocation2 + $0x3e8] sm:$0xff]
          %v1922 = vld [vmem:[#allocation2 + $0x3f0] sm:$0xff]
          %v1923 = vld [vmem:[#allocation2 + $0x3f8] sm:$0xff]
          %v1924 = vadd.f32 %v1796, %v1150
          %v1925 = vadd.f32 %v1797, %v1153
          %v1926 = vadd.f32 %v1798, %v1158
          %v1927 = vadd.f32 %v1799, %v1161
          %v1928 = vadd.f32 %v1800, %v1166
          %v1929 = vadd.f32 %v1801, %v1169
          %v1930 = vadd.f32 %v1802, %v1174
          %v1931 = vadd.f32 %v1803, %v1177
          %v1932 = vadd.f32 %v1804, %v1182
          %v1933 = vadd.f32 %v1805, %v1185
          %v1934 = vadd.f32 %v1806, %v1190
          %v1935 = vadd.f32 %v1807, %v1193
          %v1936 = vadd.f32 %v1808, %v1198
          %v1937 = vadd.f32 %v1809, %v1201
          %v1938 = vadd.f32 %v1810, %v1206
          %v1939 = vadd.f32 %v1811, %v1209
          %v1940 = vadd.f32 %v1812, %v1214
          %v1941 = vadd.f32 %v1813, %v1217
          %v1942 = vadd.f32 %v1814, %v1222
          %v1943 = vadd.f32 %v1815, %v1225
          %v1944 = vadd.f32 %v1816, %v1230
          %v1945 = vadd.f32 %v1817, %v1233
          %v1946 = vadd.f32 %v1818, %v1238
          %v1947 = vadd.f32 %v1819, %v1241
          %v1948 = vadd.f32 %v1820, %v1246
          %v1949 = vadd.f32 %v1821, %v1249
          %v1950 = vadd.f32 %v1822, %v1254
          %v1951 = vadd.f32 %v1823, %v1257
          %v1952 = vadd.f32 %v1824, %v1262
          %v1953 = vadd.f32 %v1825, %v1265
          %v1954 = vadd.f32 %v1826, %v1270
          %v1955 = vadd.f32 %v1827, %v1273
          %v1956 = vadd.f32 %v1828, %v1278
          %v1957 = vadd.f32 %v1829, %v1281
          %v1958 = vadd.f32 %v1830, %v1286
          %v1959 = vadd.f32 %v1831, %v1289
          %v1960 = vadd.f32 %v1832, %v1294
          %v1961 = vadd.f32 %v1833, %v1297
          %v1962 = vadd.f32 %v1834, %v1302
          %v1963 = vadd.f32 %v1835, %v1305
          %v1964 = vadd.f32 %v1836, %v1310
          %v1965 = vadd.f32 %v1837, %v1313
          %v1966 = vadd.f32 %v1838, %v1318
          %v1967 = vadd.f32 %v1839, %v1321
          %v1968 = vadd.f32 %v1840, %v1326
          %v1969 = vadd.f32 %v1841, %v1329
          %v1970 = vadd.f32 %v1842, %v1334
          %v1971 = vadd.f32 %v1843, %v1337
          %v1972 = vadd.f32 %v1844, %v1342
          %v1973 = vadd.f32 %v1845, %v1345
          %v1974 = vadd.f32 %v1846, %v1350
          %v1975 = vadd.f32 %v1847, %v1353
          %v1976 = vadd.f32 %v1848, %v1358
          %v1977 = vadd.f32 %v1849, %v1361
          %v1978 = vadd.f32 %v1850, %v1366
          %v1979 = vadd.f32 %v1851, %v1369
          %v1980 = vadd.f32 %v1852, %v1374
          %v1981 = vadd.f32 %v1853, %v1377
          %v1982 = vadd.f32 %v1854, %v1382
          %v1983 = vadd.f32 %v1855, %v1385
          %v1984 = vadd.f32 %v1856, %v1390
          %v1985 = vadd.f32 %v1857, %v1393
          %v1986 = vadd.f32 %v1858, %v1398
          %v1987 = vadd.f32 %v1859, %v1401
          %v1988 = vadd.f32 %v1860, %v1406
          %v1989 = vadd.f32 %v1861, %v1409
          %v1990 = vadd.f32 %v1862, %v1414
          %v1991 = vadd.f32 %v1863, %v1417
          %v1992 = vadd.f32 %v1864, %v1422
          %v1993 = vadd.f32 %v1865, %v1425
          %v1994 = vadd.f32 %v1866, %v1430
          %v1995 = vadd.f32 %v1867, %v1433
          %v1996 = vadd.f32 %v1868, %v1438
          %v1997 = vadd.f32 %v1869, %v1441
          %v1998 = vadd.f32 %v1870, %v1446
          %v1999 = vadd.f32 %v1871, %v1449
          %v2000 = vadd.f32 %v1872, %v1454
          %v2001 = vadd.f32 %v1873, %v1457
          %v2002 = vadd.f32 %v1874, %v1462
          %v2003 = vadd.f32 %v1875, %v1465
          %v2004 = vadd.f32 %v1876, %v1470
          %v2005 = vadd.f32 %v1877, %v1473
          %v2006 = vadd.f32 %v1878, %v1478
          %v2007 = vadd.f32 %v1879, %v1481
          %v2008 = vadd.f32 %v1880, %v1486
          %v2009 = vadd.f32 %v1881, %v1489
          %v2010 = vadd.f32 %v1882, %v1494
          %v2011 = vadd.f32 %v1883, %v1497
          %v2012 = vadd.f32 %v1884, %v1502
          %v2013 = vadd.f32 %v1885, %v1505
          %v2014 = vadd.f32 %v1886, %v1510
          %v2015 = vadd.f32 %v1887, %v1513
          %v2016 = vadd.f32 %v1888, %v1518
          %v2017 = vadd.f32 %v1889, %v1521
          %v2018 = vadd.f32 %v1890, %v1526
          %v2019 = vadd.f32 %v1891, %v1529
          %v2020 = vadd.f32 %v1892, %v1534
          %v2021 = vadd.f32 %v1893, %v1537
          %v2022 = vadd.f32 %v1894, %v1542
          %v2023 = vadd.f32 %v1895, %v1545
          %v2024 = vadd.f32 %v1896, %v1550
          %v2025 = vadd.f32 %v1897, %v1553
          %v2026 = vadd.f32 %v1898, %v1558
          %v2027 = vadd.f32 %v1899, %v1561
          %v2028 = vadd.f32 %v1900, %v1566
          %v2029 = vadd.f32 %v1901, %v1569
          %v2030 = vadd.f32 %v1902, %v1574
          %v2031 = vadd.f32 %v1903, %v1577
          %v2032 = vadd.f32 %v1904, %v1582
          %v2033 = vadd.f32 %v1905, %v1585
          %v2034 = vadd.f32 %v1906, %v1590
          %v2035 = vadd.f32 %v1907, %v1593
          %v2036 = vadd.f32 %v1908, %v1598
          %v2037 = vadd.f32 %v1909, %v1601
          %v2038 = vadd.f32 %v1910, %v1606
          %v2039 = vadd.f32 %v1911, %v1609
          %v2040 = vadd.f32 %v1912, %v1614
          %v2041 = vadd.f32 %v1913, %v1617
          %v2042 = vadd.f32 %v1914, %v1622
          %v2043 = vadd.f32 %v1915, %v1625
          %v2044 = vadd.f32 %v1916, %v1630
          %v2045 = vadd.f32 %v1917, %v1633
          %v2046 = vadd.f32 %v1918, %v1638
          %v2047 = vadd.f32 %v1919, %v1641
          %v2048 = vadd.f32 %v1920, %v1646
          %v2049 = vadd.f32 %v1921, %v1649
          %v2050 = vadd.f32 %v1922, %v1654
          %v2051 = vadd.f32 %v1923, %v1657
          %2052 = vst [vmem:[#allocation2] sm:$0xff] %v1924
          %2053 = vst [vmem:[#allocation2 + $0x8] sm:$0xff] %v1925
          %2054 = vst [vmem:[#allocation2 + $0x10] sm:$0xff] %v1926
          %2055 = vst [vmem:[#allocation2 + $0x18] sm:$0xff] %v1927
          %2056 = vst [vmem:[#allocation2 + $0x20] sm:$0xff] %v1928
          %2057 = vst [vmem:[#allocation2 + $0x28] sm:$0xff] %v1929
          %2058 = vst [vmem:[#allocation2 + $0x30] sm:$0xff] %v1930
          %2059 = vst [vmem:[#allocation2 + $0x38] sm:$0xff] %v1931
          %2060 = vst [vmem:[#allocation2 + $0x40] sm:$0xff] %v1932
          %2061 = vst [vmem:[#allocation2 + $0x48] sm:$0xff] %v1933
          %2062 = vst [vmem:[#allocation2 + $0x50] sm:$0xff] %v1934
          %2063 = vst [vmem:[#allocation2 + $0x58] sm:$0xff] %v1935
          %2064 = vst [vmem:[#allocation2 + $0x60] sm:$0xff] %v1936
          %2065 = vst [vmem:[#allocation2 + $0x68] sm:$0xff] %v1937
          %2066 = vst [vmem:[#allocation2 + $0x70] sm:$0xff] %v1938
          %2067 = vst [vmem:[#allocation2 + $0x78] sm:$0xff] %v1939
          %2068 = vst [vmem:[#allocation2 + $0x80] sm:$0xff] %v1940
          %2069 = vst [vmem:[#allocation2 + $0x88] sm:$0xff] %v1941
          %2070 = vst [vmem:[#allocation2 + $0x90] sm:$0xff] %v1942
          %2071 = vst [vmem:[#allocation2 + $0x98] sm:$0xff] %v1943
          %2072 = vst [vmem:[#allocation2 + $0xa0] sm:$0xff] %v1944
          %2073 = vst [vmem:[#allocation2 + $0xa8] sm:$0xff] %v1945
          %2074 = vst [vmem:[#allocation2 + $0xb0] sm:$0xff] %v1946
          %2075 = vst [vmem:[#allocation2 + $0xb8] sm:$0xff] %v1947
          %2076 = vst [vmem:[#allocation2 + $0xc0] sm:$0xff] %v1948
          %2077 = vst [vmem:[#allocation2 + $0xc8] sm:$0xff] %v1949
          %2078 = vst [vmem:[#allocation2 + $0xd0] sm:$0xff] %v1950
          %2079 = vst [vmem:[#allocation2 + $0xd8] sm:$0xff] %v1951
          %2080 = vst [vmem:[#allocation2 + $0xe0] sm:$0xff] %v1952
          %2081 = vst [vmem:[#allocation2 + $0xe8] sm:$0xff] %v1953
          %2082 = vst [vmem:[#allocation2 + $0xf0] sm:$0xff] %v1954
          %2083 = vst [vmem:[#allocation2 + $0xf8] sm:$0xff] %v1955
          %2084 = vst [vmem:[#allocation2 + $0x100] sm:$0xff] %v1956
          %2085 = vst [vmem:[#allocation2 + $0x108] sm:$0xff] %v1957
          %2086 = vst [vmem:[#allocation2 + $0x110] sm:$0xff] %v1958
          %2087 = vst [vmem:[#allocation2 + $0x118] sm:$0xff] %v1959
          %2088 = vst [vmem:[#allocation2 + $0x120] sm:$0xff] %v1960
          %2089 = vst [vmem:[#allocation2 + $0x128] sm:$0xff] %v1961
          %2090 = vst [vmem:[#allocation2 + $0x130] sm:$0xff] %v1962
          %2091 = vst [vmem:[#allocation2 + $0x138] sm:$0xff] %v1963
          %2092 = vst [vmem:[#allocation2 + $0x140] sm:$0xff] %v1964
          %2093 = vst [vmem:[#allocation2 + $0x148] sm:$0xff] %v1965
          %2094 = vst [vmem:[#allocation2 + $0x150] sm:$0xff] %v1966
          %2095 = vst [vmem:[#allocation2 + $0x158] sm:$0xff] %v1967
          %2096 = vst [vmem:[#allocation2 + $0x160] sm:$0xff] %v1968
          %2097 = vst [vmem:[#allocation2 + $0x168] sm:$0xff] %v1969
          %2098 = vst [vmem:[#allocation2 + $0x170] sm:$0xff] %v1970
          %2099 = vst [vmem:[#allocation2 + $0x178] sm:$0xff] %v1971
          %2100 = vst [vmem:[#allocation2 + $0x180] sm:$0xff] %v1972
          %2101 = vst [vmem:[#allocation2 + $0x188] sm:$0xff] %v1973
          %2102 = vst [vmem:[#allocation2 + $0x190] sm:$0xff] %v1974
          %2103 = vst [vmem:[#allocation2 + $0x198] sm:$0xff] %v1975
          %2104 = vst [vmem:[#allocation2 + $0x1a0] sm:$0xff] %v1976
          %2105 = vst [vmem:[#allocation2 + $0x1a8] sm:$0xff] %v1977
          %2106 = vst [vmem:[#allocation2 + $0x1b0] sm:$0xff] %v1978
          %2107 = vst [vmem:[#allocation2 + $0x1b8] sm:$0xff] %v1979
          %2108 = vst [vmem:[#allocation2 + $0x1c0] sm:$0xff] %v1980
          %2109 = vst [vmem:[#allocation2 + $0x1c8] sm:$0xff] %v1981
          %2110 = vst [vmem:[#allocation2 + $0x1d0] sm:$0xff] %v1982
          %2111 = vst [vmem:[#allocation2 + $0x1d8] sm:$0xff] %v1983
          %2112 = vst [vmem:[#allocation2 + $0x1e0] sm:$0xff] %v1984
          %2113 = vst [vmem:[#allocation2 + $0x1e8] sm:$0xff] %v1985
          %2114 = vst [vmem:[#allocation2 + $0x1f0] sm:$0xff] %v1986
          %2115 = vst [vmem:[#allocation2 + $0x1f8] sm:$0xff] %v1987
          %2116 = vst [vmem:[#allocation2 + $0x200] sm:$0xff] %v1988
          %2117 = vst [vmem:[#allocation2 + $0x208] sm:$0xff] %v1989
          %2118 = vst [vmem:[#allocation2 + $0x210] sm:$0xff] %v1990
          %2119 = vst [vmem:[#allocation2 + $0x218] sm:$0xff] %v1991
          %2120 = vst [vmem:[#allocation2 + $0x220] sm:$0xff] %v1992
          %2121 = vst [vmem:[#allocation2 + $0x228] sm:$0xff] %v1993
          %2122 = vst [vmem:[#allocation2 + $0x230] sm:$0xff] %v1994
          %2123 = vst [vmem:[#allocation2 + $0x238] sm:$0xff] %v1995
          %2124 = vst [vmem:[#allocation2 + $0x240] sm:$0xff] %v1996
          %2125 = vst [vmem:[#allocation2 + $0x248] sm:$0xff] %v1997
          %2126 = vst [vmem:[#allocation2 + $0x250] sm:$0xff] %v1998
          %2127 = vst [vmem:[#allocation2 + $0x258] sm:$0xff] %v1999
          %2128 = vst [vmem:[#allocation2 + $0x260] sm:$0xff] %v2000
          %2129 = vst [vmem:[#allocation2 + $0x268] sm:$0xff] %v2001
          %2130 = vst [vmem:[#allocation2 + $0x270] sm:$0xff] %v2002
          %2131 = vst [vmem:[#allocation2 + $0x278] sm:$0xff] %v2003
          %2132 = vst [vmem:[#allocation2 + $0x280] sm:$0xff] %v2004
          %2133 = vst [vmem:[#allocation2 + $0x288] sm:$0xff] %v2005
          %2134 = vst [vmem:[#allocation2 + $0x290] sm:$0xff] %v2006
          %2135 = vst [vmem:[#allocation2 + $0x298] sm:$0xff] %v2007
          %2136 = vst [vmem:[#allocation2 + $0x2a0] sm:$0xff] %v2008
          %2137 = vst [vmem:[#allocation2 + $0x2a8] sm:$0xff] %v2009
          %2138 = vst [vmem:[#allocation2 + $0x2b0] sm:$0xff] %v2010
          %2139 = vst [vmem:[#allocation2 + $0x2b8] sm:$0xff] %v2011
          %2140 = vst [vmem:[#allocation2 + $0x2c0] sm:$0xff] %v2012
          %2141 = vst [vmem:[#allocation2 + $0x2c8] sm:$0xff] %v2013
          %2142 = vst [vmem:[#allocation2 + $0x2d0] sm:$0xff] %v2014
          %2143 = vst [vmem:[#allocation2 + $0x2d8] sm:$0xff] %v2015
          %2144 = vst [vmem:[#allocation2 + $0x2e0] sm:$0xff] %v2016
          %2145 = vst [vmem:[#allocation2 + $0x2e8] sm:$0xff] %v2017
          %2146 = vst [vmem:[#allocation2 + $0x2f0] sm:$0xff] %v2018
          %2147 = vst [vmem:[#allocation2 + $0x2f8] sm:$0xff] %v2019
          %2148 = vst [vmem:[#allocation2 + $0x300] sm:$0xff] %v2020
          %2149 = vst [vmem:[#allocation2 + $0x308] sm:$0xff] %v2021
          %2150 = vst [vmem:[#allocation2 + $0x310] sm:$0xff] %v2022
          %2151 = vst [vmem:[#allocation2 + $0x318] sm:$0xff] %v2023
          %2152 = vst [vmem:[#allocation2 + $0x320] sm:$0xff] %v2024
          %2153 = vst [vmem:[#allocation2 + $0x328] sm:$0xff] %v2025
          %2154 = vst [vmem:[#allocation2 + $0x330] sm:$0xff] %v2026
          %2155 = vst [vmem:[#allocation2 + $0x338] sm:$0xff] %v2027
          %2156 = vst [vmem:[#allocation2 + $0x340] sm:$0xff] %v2028
          %2157 = vst [vmem:[#allocation2 + $0x348] sm:$0xff] %v2029
          %2158 = vst [vmem:[#allocation2 + $0x350] sm:$0xff] %v2030
          %2159 = vst [vmem:[#allocation2 + $0x358] sm:$0xff] %v2031
          %2160 = vst [vmem:[#allocation2 + $0x360] sm:$0xff] %v2032
          %2161 = vst [vmem:[#allocation2 + $0x368] sm:$0xff] %v2033
          %2162 = vst [vmem:[#allocation2 + $0x370] sm:$0xff] %v2034
          %2163 = vst [vmem:[#allocation2 + $0x378] sm:$0xff] %v2035
          %2164 = vst [vmem:[#allocation2 + $0x380] sm:$0xff] %v2036
          %2165 = vst [vmem:[#allocation2 + $0x388] sm:$0xff] %v2037
          %2166 = vst [vmem:[#allocation2 + $0x390] sm:$0xff] %v2038
          %2167 = vst [vmem:[#allocation2 + $0x398] sm:$0xff] %v2039
          %2168 = vst [vmem:[#allocation2 + $0x3a0] sm:$0xff] %v2040
          %2169 = vst [vmem:[#allocation2 + $0x3a8] sm:$0xff] %v2041
          %2170 = vst [vmem:[#allocation2 + $0x3b0] sm:$0xff] %v2042
          %2171 = vst [vmem:[#allocation2 + $0x3b8] sm:$0xff] %v2043
          %2172 = vst [vmem:[#allocation2 + $0x3c0] sm:$0xff] %v2044
          %2173 = vst [vmem:[#allocation2 + $0x3c8] sm:$0xff] %v2045
          %2174 = vst [vmem:[#allocation2 + $0x3d0] sm:$0xff] %v2046
          %2175 = vst [vmem:[#allocation2 + $0x3d8] sm:$0xff] %v2047
          %2176 = vst [vmem:[#allocation2 + $0x3e0] sm:$0xff] %v2048
          %2177 = vst [vmem:[#allocation2 + $0x3e8] sm:$0xff] %v2049
          %2178 = vst [vmem:[#allocation2 + $0x3f0] sm:$0xff] %v2050
          %2179 = vst [vmem:[#allocation2 + $0x3f8] sm:$0xff] %v2051
        $region44: #{conv2d.1} parent=27 // pred_fallthru
          _
        // Predicated region
        $region45: #{conv2d.1} parent=27 // pred_check
          %p2180 = pneg %p1660
        $region46: #{conv2d.1} parent=27 // pred_check_branch
          %2182 = sbr.rel (%p2180) target = $region48
        $region47: #{conv2d.1} parent=27 // pred_region
          %v2183 = vld [vmem:[#allocation2] sm:$0xff]
          %v2184 = vld [vmem:[#allocation2 + $0x8] sm:$0xff]
          %v2185 = vld [vmem:[#allocation2 + $0x10] sm:$0xff]
          %v2186 = vld [vmem:[#allocation2 + $0x18] sm:$0xff]
          %v2187 = vld [vmem:[#allocation2 + $0x20] sm:$0xff]
          %v2188 = vld [vmem:[#allocation2 + $0x28] sm:$0xff]
          %v2189 = vld [vmem:[#allocation2 + $0x30] sm:$0xff]
          %v2190 = vld [vmem:[#allocation2 + $0x38] sm:$0xff]
          %v2191 = vld [vmem:[#allocation2 + $0x40] sm:$0xff]
          %v2192 = vld [vmem:[#allocation2 + $0x48] sm:$0xff]
          %v2193 = vld [vmem:[#allocation2 + $0x50] sm:$0xff]
          %v2194 = vld [vmem:[#allocation2 + $0x58] sm:$0xff]
          %v2195 = vld [vmem:[#allocation2 + $0x60] sm:$0xff]
          %v2196 = vld [vmem:[#allocation2 + $0x68] sm:$0xff]
          %v2197 = vld [vmem:[#allocation2 + $0x70] sm:$0xff]
          %v2198 = vld [vmem:[#allocation2 + $0x78] sm:$0xff]
          %v2199 = vld [vmem:[#allocation2 + $0x80] sm:$0xff]
          %v2200 = vld [vmem:[#allocation2 + $0x88] sm:$0xff]
          %v2201 = vld [vmem:[#allocation2 + $0x90] sm:$0xff]
          %v2202 = vld [vmem:[#allocation2 + $0x98] sm:$0xff]
          %v2203 = vld [vmem:[#allocation2 + $0xa0] sm:$0xff]
          %v2204 = vld [vmem:[#allocation2 + $0xa8] sm:$0xff]
          %v2205 = vld [vmem:[#allocation2 + $0xb0] sm:$0xff]
          %v2206 = vld [vmem:[#allocation2 + $0xb8] sm:$0xff]
          %v2207 = vld [vmem:[#allocation2 + $0xc0] sm:$0xff]
          %v2208 = vld [vmem:[#allocation2 + $0xc8] sm:$0xff]
          %v2209 = vld [vmem:[#allocation2 + $0xd0] sm:$0xff]
          %v2210 = vld [vmem:[#allocation2 + $0xd8] sm:$0xff]
          %v2211 = vld [vmem:[#allocation2 + $0xe0] sm:$0xff]
          %v2212 = vld [vmem:[#allocation2 + $0xe8] sm:$0xff]
          %v2213 = vld [vmem:[#allocation2 + $0xf0] sm:$0xff]
          %v2214 = vld [vmem:[#allocation2 + $0xf8] sm:$0xff]
          %v2215 = vld [vmem:[#allocation2 + $0x100] sm:$0xff]
          %v2216 = vld [vmem:[#allocation2 + $0x108] sm:$0xff]
          %v2217 = vld [vmem:[#allocation2 + $0x110] sm:$0xff]
          %v2218 = vld [vmem:[#allocation2 + $0x118] sm:$0xff]
          %v2219 = vld [vmem:[#allocation2 + $0x120] sm:$0xff]
          %v2220 = vld [vmem:[#allocation2 + $0x128] sm:$0xff]
          %v2221 = vld [vmem:[#allocation2 + $0x130] sm:$0xff]
          %v2222 = vld [vmem:[#allocation2 + $0x138] sm:$0xff]
          %v2223 = vld [vmem:[#allocation2 + $0x140] sm:$0xff]
          %v2224 = vld [vmem:[#allocation2 + $0x148] sm:$0xff]
          %v2225 = vld [vmem:[#allocation2 + $0x150] sm:$0xff]
          %v2226 = vld [vmem:[#allocation2 + $0x158] sm:$0xff]
          %v2227 = vld [vmem:[#allocation2 + $0x160] sm:$0xff]
          %v2228 = vld [vmem:[#allocation2 + $0x168] sm:$0xff]
          %v2229 = vld [vmem:[#allocation2 + $0x170] sm:$0xff]
          %v2230 = vld [vmem:[#allocation2 + $0x178] sm:$0xff]
          %v2231 = vld [vmem:[#allocation2 + $0x180] sm:$0xff]
          %v2232 = vld [vmem:[#allocation2 + $0x188] sm:$0xff]
          %v2233 = vld [vmem:[#allocation2 + $0x190] sm:$0xff]
          %v2234 = vld [vmem:[#allocation2 + $0x198] sm:$0xff]
          %v2235 = vld [vmem:[#allocation2 + $0x1a0] sm:$0xff]
          %v2236 = vld [vmem:[#allocation2 + $0x1a8] sm:$0xff]
          %v2237 = vld [vmem:[#allocation2 + $0x1b0] sm:$0xff]
          %v2238 = vld [vmem:[#allocation2 + $0x1b8] sm:$0xff]
          %v2239 = vld [vmem:[#allocation2 + $0x1c0] sm:$0xff]
          %v2240 = vld [vmem:[#allocation2 + $0x1c8] sm:$0xff]
          %v2241 = vld [vmem:[#allocation2 + $0x1d0] sm:$0xff]
          %v2242 = vld [vmem:[#allocation2 + $0x1d8] sm:$0xff]
          %v2243 = vld [vmem:[#allocation2 + $0x1e0] sm:$0xff]
          %v2244 = vld [vmem:[#allocation2 + $0x1e8] sm:$0xff]
          %v2245 = vld [vmem:[#allocation2 + $0x1f0] sm:$0xff]
          %v2246 = vld [vmem:[#allocation2 + $0x1f8] sm:$0xff]
          %v2247 = vld [vmem:[#allocation2 + $0x200] sm:$0xff]
          %v2248 = vld [vmem:[#allocation2 + $0x208] sm:$0xff]
          %v2249 = vld [vmem:[#allocation2 + $0x210] sm:$0xff]
          %v2250 = vld [vmem:[#allocation2 + $0x218] sm:$0xff]
          %v2251 = vld [vmem:[#allocation2 + $0x220] sm:$0xff]
          %v2252 = vld [vmem:[#allocation2 + $0x228] sm:$0xff]
          %v2253 = vld [vmem:[#allocation2 + $0x230] sm:$0xff]
          %v2254 = vld [vmem:[#allocation2 + $0x238] sm:$0xff]
          %v2255 = vld [vmem:[#allocation2 + $0x240] sm:$0xff]
          %v2256 = vld [vmem:[#allocation2 + $0x248] sm:$0xff]
          %v2257 = vld [vmem:[#allocation2 + $0x250] sm:$0xff]
          %v2258 = vld [vmem:[#allocation2 + $0x258] sm:$0xff]
          %v2259 = vld [vmem:[#allocation2 + $0x260] sm:$0xff]
          %v2260 = vld [vmem:[#allocation2 + $0x268] sm:$0xff]
          %v2261 = vld [vmem:[#allocation2 + $0x270] sm:$0xff]
          %v2262 = vld [vmem:[#allocation2 + $0x278] sm:$0xff]
          %v2263 = vld [vmem:[#allocation2 + $0x280] sm:$0xff]
          %v2264 = vld [vmem:[#allocation2 + $0x288] sm:$0xff]
          %v2265 = vld [vmem:[#allocation2 + $0x290] sm:$0xff]
          %v2266 = vld [vmem:[#allocation2 + $0x298] sm:$0xff]
          %v2267 = vld [vmem:[#allocation2 + $0x2a0] sm:$0xff]
          %v2268 = vld [vmem:[#allocation2 + $0x2a8] sm:$0xff]
          %v2269 = vld [vmem:[#allocation2 + $0x2b0] sm:$0xff]
          %v2270 = vld [vmem:[#allocation2 + $0x2b8] sm:$0xff]
          %v2271 = vld [vmem:[#allocation2 + $0x2c0] sm:$0xff]
          %v2272 = vld [vmem:[#allocation2 + $0x2c8] sm:$0xff]
          %v2273 = vld [vmem:[#allocation2 + $0x2d0] sm:$0xff]
          %v2274 = vld [vmem:[#allocation2 + $0x2d8] sm:$0xff]
          %v2275 = vld [vmem:[#allocation2 + $0x2e0] sm:$0xff]
          %v2276 = vld [vmem:[#allocation2 + $0x2e8] sm:$0xff]
          %v2277 = vld [vmem:[#allocation2 + $0x2f0] sm:$0xff]
          %v2278 = vld [vmem:[#allocation2 + $0x2f8] sm:$0xff]
          %v2279 = vld [vmem:[#allocation2 + $0x300] sm:$0xff]
          %v2280 = vld [vmem:[#allocation2 + $0x308] sm:$0xff]
          %v2281 = vld [vmem:[#allocation2 + $0x310] sm:$0xff]
          %v2282 = vld [vmem:[#allocation2 + $0x318] sm:$0xff]
          %v2283 = vld [vmem:[#allocation2 + $0x320] sm:$0xff]
          %v2284 = vld [vmem:[#allocation2 + $0x328] sm:$0xff]
          %v2285 = vld [vmem:[#allocation2 + $0x330] sm:$0xff]
          %v2286 = vld [vmem:[#allocation2 + $0x338] sm:$0xff]
          %v2287 = vld [vmem:[#allocation2 + $0x340] sm:$0xff]
          %v2288 = vld [vmem:[#allocation2 + $0x348] sm:$0xff]
          %v2289 = vld [vmem:[#allocation2 + $0x350] sm:$0xff]
          %v2290 = vld [vmem:[#allocation2 + $0x358] sm:$0xff]
          %v2291 = vld [vmem:[#allocation2 + $0x360] sm:$0xff]
          %v2292 = vld [vmem:[#allocation2 + $0x368] sm:$0xff]
          %v2293 = vld [vmem:[#allocation2 + $0x370] sm:$0xff]
          %v2294 = vld [vmem:[#allocation2 + $0x378] sm:$0xff]
          %v2295 = vld [vmem:[#allocation2 + $0x380] sm:$0xff]
          %v2296 = vld [vmem:[#allocation2 + $0x388] sm:$0xff]
          %v2297 = vld [vmem:[#allocation2 + $0x390] sm:$0xff]
          %v2298 = vld [vmem:[#allocation2 + $0x398] sm:$0xff]
          %v2299 = vld [vmem:[#allocation2 + $0x3a0] sm:$0xff]
          %v2300 = vld [vmem:[#allocation2 + $0x3a8] sm:$0xff]
          %v2301 = vld [vmem:[#allocation2 + $0x3b0] sm:$0xff]
          %v2302 = vld [vmem:[#allocation2 + $0x3b8] sm:$0xff]
          %v2303 = vld [vmem:[#allocation2 + $0x3c0] sm:$0xff]
          %v2304 = vld [vmem:[#allocation2 + $0x3c8] sm:$0xff]
          %v2305 = vld [vmem:[#allocation2 + $0x3d0] sm:$0xff]
          %v2306 = vld [vmem:[#allocation2 + $0x3d8] sm:$0xff]
          %v2307 = vld [vmem:[#allocation2 + $0x3e0] sm:$0xff]
          %v2308 = vld [vmem:[#allocation2 + $0x3e8] sm:$0xff]
          %v2309 = vld [vmem:[#allocation2 + $0x3f0] sm:$0xff]
          %v2310 = vld [vmem:[#allocation2 + $0x3f8] sm:$0xff]
          %v2311 = vpack.c.bf16 %v2184, %v2183
          %v2312 = vpack.c.bf16 %v2186, %v2185
          %v2313 = vpack.c.bf16 %v2188, %v2187
          %v2314 = vpack.c.bf16 %v2190, %v2189
          %v2315 = vpack.c.bf16 %v2192, %v2191
          %v2316 = vpack.c.bf16 %v2194, %v2193
          %v2317 = vpack.c.bf16 %v2196, %v2195
          %v2318 = vpack.c.bf16 %v2198, %v2197
          %v2319 = vpack.c.bf16 %v2200, %v2199
          %v2320 = vpack.c.bf16 %v2202, %v2201
          %v2321 = vpack.c.bf16 %v2204, %v2203
          %v2322 = vpack.c.bf16 %v2206, %v2205
          %v2323 = vpack.c.bf16 %v2208, %v2207
          %v2324 = vpack.c.bf16 %v2210, %v2209
          %v2325 = vpack.c.bf16 %v2212, %v2211
          %v2326 = vpack.c.bf16 %v2214, %v2213
          %v2327 = vpack.c.bf16 %v2216, %v2215
          %v2328 = vpack.c.bf16 %v2218, %v2217
          %v2329 = vpack.c.bf16 %v2220, %v2219
          %v2330 = vpack.c.bf16 %v2222, %v2221
          %v2331 = vpack.c.bf16 %v2224, %v2223
          %v2332 = vpack.c.bf16 %v2226, %v2225
          %v2333 = vpack.c.bf16 %v2228, %v2227
          %v2334 = vpack.c.bf16 %v2230, %v2229
          %v2335 = vpack.c.bf16 %v2232, %v2231
          %v2336 = vpack.c.bf16 %v2234, %v2233
          %v2337 = vpack.c.bf16 %v2236, %v2235
          %v2338 = vpack.c.bf16 %v2238, %v2237
          %v2339 = vpack.c.bf16 %v2240, %v2239
          %v2340 = vpack.c.bf16 %v2242, %v2241
          %v2341 = vpack.c.bf16 %v2244, %v2243
          %v2342 = vpack.c.bf16 %v2246, %v2245
          %v2343 = vpack.c.bf16 %v2248, %v2247
          %v2344 = vpack.c.bf16 %v2250, %v2249
          %v2345 = vpack.c.bf16 %v2252, %v2251
          %v2346 = vpack.c.bf16 %v2254, %v2253
          %v2347 = vpack.c.bf16 %v2256, %v2255
          %v2348 = vpack.c.bf16 %v2258, %v2257
          %v2349 = vpack.c.bf16 %v2260, %v2259
          %v2350 = vpack.c.bf16 %v2262, %v2261
          %v2351 = vpack.c.bf16 %v2264, %v2263
          %v2352 = vpack.c.bf16 %v2266, %v2265
          %v2353 = vpack.c.bf16 %v2268, %v2267
          %v2354 = vpack.c.bf16 %v2270, %v2269
          %v2355 = vpack.c.bf16 %v2272, %v2271
          %v2356 = vpack.c.bf16 %v2274, %v2273
          %v2357 = vpack.c.bf16 %v2276, %v2275
          %v2358 = vpack.c.bf16 %v2278, %v2277
          %v2359 = vpack.c.bf16 %v2280, %v2279
          %v2360 = vpack.c.bf16 %v2282, %v2281
          %v2361 = vpack.c.bf16 %v2284, %v2283
          %v2362 = vpack.c.bf16 %v2286, %v2285
          %v2363 = vpack.c.bf16 %v2288, %v2287
          %v2364 = vpack.c.bf16 %v2290, %v2289
          %v2365 = vpack.c.bf16 %v2292, %v2291
          %v2366 = vpack.c.bf16 %v2294, %v2293
          %v2367 = vpack.c.bf16 %v2296, %v2295
          %v2368 = vpack.c.bf16 %v2298, %v2297
          %v2369 = vpack.c.bf16 %v2300, %v2299
          %v2370 = vpack.c.bf16 %v2302, %v2301
          %v2371 = vpack.c.bf16 %v2304, %v2303
          %v2372 = vpack.c.bf16 %v2306, %v2305
          %v2373 = vpack.c.bf16 %v2308, %v2307
          %v2374 = vpack.c.bf16 %v2310, %v2309
          %v2439 = vunpack.c.l.b16 %v2311
          %v2440 = vunpack.c.h.b16 %v2311
          %v2441 = vunpack.c.l.b16 %v2312
          %v2442 = vunpack.c.h.b16 %v2312
          %v2443 = vunpack.c.l.b16 %v2313
          %v2444 = vunpack.c.h.b16 %v2313
          %v2445 = vunpack.c.l.b16 %v2314
          %v2446 = vunpack.c.h.b16 %v2314
          %v2447 = vunpack.c.l.b16 %v2315
          %v2448 = vunpack.c.h.b16 %v2315
          %v2449 = vunpack.c.l.b16 %v2316
          %v2450 = vunpack.c.h.b16 %v2316
          %v2451 = vunpack.c.l.b16 %v2317
          %v2452 = vunpack.c.h.b16 %v2317
          %v2453 = vunpack.c.l.b16 %v2318
          %v2454 = vunpack.c.h.b16 %v2318
          %v2455 = vunpack.c.l.b16 %v2319
          %v2456 = vunpack.c.h.b16 %v2319
          %v2457 = vunpack.c.l.b16 %v2320
          %v2458 = vunpack.c.h.b16 %v2320
          %v2459 = vunpack.c.l.b16 %v2321
          %v2460 = vunpack.c.h.b16 %v2321
          %v2461 = vunpack.c.l.b16 %v2322
          %v2462 = vunpack.c.h.b16 %v2322
          %v2463 = vunpack.c.l.b16 %v2323
          %v2464 = vunpack.c.h.b16 %v2323
          %v2465 = vunpack.c.l.b16 %v2324
          %v2466 = vunpack.c.h.b16 %v2324
          %v2467 = vunpack.c.l.b16 %v2325
          %v2468 = vunpack.c.h.b16 %v2325
          %v2469 = vunpack.c.l.b16 %v2326
          %v2470 = vunpack.c.h.b16 %v2326
          %v2471 = vunpack.c.l.b16 %v2327
          %v2472 = vunpack.c.h.b16 %v2327
          %v2473 = vunpack.c.l.b16 %v2328
          %v2474 = vunpack.c.h.b16 %v2328
          %v2475 = vunpack.c.l.b16 %v2329
          %v2476 = vunpack.c.h.b16 %v2329
          %v2477 = vunpack.c.l.b16 %v2330
          %v2478 = vunpack.c.h.b16 %v2330
          %v2479 = vunpack.c.l.b16 %v2331
          %v2480 = vunpack.c.h.b16 %v2331
          %v2481 = vunpack.c.l.b16 %v2332
          %v2482 = vunpack.c.h.b16 %v2332
          %v2483 = vunpack.c.l.b16 %v2333
          %v2484 = vunpack.c.h.b16 %v2333
          %v2485 = vunpack.c.l.b16 %v2334
          %v2486 = vunpack.c.h.b16 %v2334
          %v2487 = vunpack.c.l.b16 %v2335
          %v2488 = vunpack.c.h.b16 %v2335
          %v2489 = vunpack.c.l.b16 %v2336
          %v2490 = vunpack.c.h.b16 %v2336
          %v2491 = vunpack.c.l.b16 %v2337
          %v2492 = vunpack.c.h.b16 %v2337
          %v2493 = vunpack.c.l.b16 %v2338
          %v2494 = vunpack.c.h.b16 %v2338
          %v2495 = vunpack.c.l.b16 %v2339
          %v2496 = vunpack.c.h.b16 %v2339
          %v2497 = vunpack.c.l.b16 %v2340
          %v2498 = vunpack.c.h.b16 %v2340
          %v2499 = vunpack.c.l.b16 %v2341
          %v2500 = vunpack.c.h.b16 %v2341
          %v2501 = vunpack.c.l.b16 %v2342
          %v2502 = vunpack.c.h.b16 %v2342
          %v2503 = vunpack.c.l.b16 %v2343
          %v2504 = vunpack.c.h.b16 %v2343
          %v2505 = vunpack.c.l.b16 %v2344
          %v2506 = vunpack.c.h.b16 %v2344
          %v2507 = vunpack.c.l.b16 %v2345
          %v2508 = vunpack.c.h.b16 %v2345
          %v2509 = vunpack.c.l.b16 %v2346
          %v2510 = vunpack.c.h.b16 %v2346
          %v2511 = vunpack.c.l.b16 %v2347
          %v2512 = vunpack.c.h.b16 %v2347
          %v2513 = vunpack.c.l.b16 %v2348
          %v2514 = vunpack.c.h.b16 %v2348
          %v2515 = vunpack.c.l.b16 %v2349
          %v2516 = vunpack.c.h.b16 %v2349
          %v2517 = vunpack.c.l.b16 %v2350
          %v2518 = vunpack.c.h.b16 %v2350
          %v2519 = vunpack.c.l.b16 %v2351
          %v2520 = vunpack.c.h.b16 %v2351
          %v2521 = vunpack.c.l.b16 %v2352
          %v2522 = vunpack.c.h.b16 %v2352
          %v2523 = vunpack.c.l.b16 %v2353
          %v2524 = vunpack.c.h.b16 %v2353
          %v2525 = vunpack.c.l.b16 %v2354
          %v2526 = vunpack.c.h.b16 %v2354
          %v2527 = vunpack.c.l.b16 %v2355
          %v2528 = vunpack.c.h.b16 %v2355
          %v2529 = vunpack.c.l.b16 %v2356
          %v2530 = vunpack.c.h.b16 %v2356
          %v2531 = vunpack.c.l.b16 %v2357
          %v2532 = vunpack.c.h.b16 %v2357
          %v2533 = vunpack.c.l.b16 %v2358
          %v2534 = vunpack.c.h.b16 %v2358
          %v2535 = vunpack.c.l.b16 %v2359
          %v2536 = vunpack.c.h.b16 %v2359
          %v2537 = vunpack.c.l.b16 %v2360
          %v2538 = vunpack.c.h.b16 %v2360
          %v2539 = vunpack.c.l.b16 %v2361
          %v2540 = vunpack.c.h.b16 %v2361
          %v2541 = vunpack.c.l.b16 %v2362
          %v2542 = vunpack.c.h.b16 %v2362
          %v2543 = vunpack.c.l.b16 %v2363
          %v2544 = vunpack.c.h.b16 %v2363
          %v2545 = vunpack.c.l.b16 %v2364
          %v2546 = vunpack.c.h.b16 %v2364
          %v2547 = vunpack.c.l.b16 %v2365
          %v2548 = vunpack.c.h.b16 %v2365
          %v2549 = vunpack.c.l.b16 %v2366
          %v2550 = vunpack.c.h.b16 %v2366
          %v2551 = vunpack.c.l.b16 %v2367
          %v2552 = vunpack.c.h.b16 %v2367
          %v2553 = vunpack.c.l.b16 %v2368
          %v2554 = vunpack.c.h.b16 %v2368
          %v2555 = vunpack.c.l.b16 %v2369
          %v2556 = vunpack.c.h.b16 %v2369
          %v2557 = vunpack.c.l.b16 %v2370
          %v2558 = vunpack.c.h.b16 %v2370
          %v2559 = vunpack.c.l.b16 %v2371
          %v2560 = vunpack.c.h.b16 %v2371
          %v2561 = vunpack.c.l.b16 %v2372
          %v2562 = vunpack.c.h.b16 %v2372
          %v2563 = vunpack.c.l.b16 %v2373
          %v2564 = vunpack.c.h.b16 %v2373
          %v2565 = vunpack.c.l.b16 %v2374
          %v2566 = vunpack.c.h.b16 %v2374
          %v2567 = vpack.c.b16 %v2439, %v2439
          %v2568 = vpack.c.b16 %v2440, %v2440
          %v2569 = vpack.c.b16 %v2441, %v2441
          %v2570 = vpack.c.b16 %v2442, %v2442
          %v2571 = vpack.c.b16 %v2443, %v2443
          %v2572 = vpack.c.b16 %v2444, %v2444
          %v2573 = vpack.c.b16 %v2445, %v2445
          %v2574 = vpack.c.b16 %v2446, %v2446
          %v2575 = vpack.c.b16 %v2447, %v2447
          %v2576 = vpack.c.b16 %v2448, %v2448
          %v2577 = vpack.c.b16 %v2449, %v2449
          %v2578 = vpack.c.b16 %v2450, %v2450
          %v2579 = vpack.c.b16 %v2451, %v2451
          %v2580 = vpack.c.b16 %v2452, %v2452
          %v2581 = vpack.c.b16 %v2453, %v2453
          %v2582 = vpack.c.b16 %v2454, %v2454
          %v2583 = vpack.c.b16 %v2455, %v2455
          %v2584 = vpack.c.b16 %v2456, %v2456
          %v2585 = vpack.c.b16 %v2457, %v2457
          %v2586 = vpack.c.b16 %v2458, %v2458
          %v2587 = vpack.c.b16 %v2459, %v2459
          %v2588 = vpack.c.b16 %v2460, %v2460
          %v2589 = vpack.c.b16 %v2461, %v2461
          %v2590 = vpack.c.b16 %v2462, %v2462
          %v2591 = vpack.c.b16 %v2463, %v2463
          %v2592 = vpack.c.b16 %v2464, %v2464
          %v2593 = vpack.c.b16 %v2465, %v2465
          %v2594 = vpack.c.b16 %v2466, %v2466
          %v2595 = vpack.c.b16 %v2467, %v2467
          %v2596 = vpack.c.b16 %v2468, %v2468
          %v2597 = vpack.c.b16 %v2469, %v2469
          %v2598 = vpack.c.b16 %v2470, %v2470
          %v2599 = vpack.c.b16 %v2471, %v2471
          %v2600 = vpack.c.b16 %v2472, %v2472
          %v2601 = vpack.c.b16 %v2473, %v2473
          %v2602 = vpack.c.b16 %v2474, %v2474
          %v2603 = vpack.c.b16 %v2475, %v2475
          %v2604 = vpack.c.b16 %v2476, %v2476
          %v2605 = vpack.c.b16 %v2477, %v2477
          %v2606 = vpack.c.b16 %v2478, %v2478
          %v2607 = vpack.c.b16 %v2479, %v2479
          %v2608 = vpack.c.b16 %v2480, %v2480
          %v2609 = vpack.c.b16 %v2481, %v2481
          %v2610 = vpack.c.b16 %v2482, %v2482
          %v2611 = vpack.c.b16 %v2483, %v2483
          %v2612 = vpack.c.b16 %v2484, %v2484
          %v2613 = vpack.c.b16 %v2485, %v2485
          %v2614 = vpack.c.b16 %v2486, %v2486
          %v2615 = vpack.c.b16 %v2487, %v2487
          %v2616 = vpack.c.b16 %v2488, %v2488
          %v2617 = vpack.c.b16 %v2489, %v2489
          %v2618 = vpack.c.b16 %v2490, %v2490
          %v2619 = vpack.c.b16 %v2491, %v2491
          %v2620 = vpack.c.b16 %v2492, %v2492
          %v2621 = vpack.c.b16 %v2493, %v2493
          %v2622 = vpack.c.b16 %v2494, %v2494
          %v2623 = vpack.c.b16 %v2495, %v2495
          %v2624 = vpack.c.b16 %v2496, %v2496
          %v2625 = vpack.c.b16 %v2497, %v2497
          %v2626 = vpack.c.b16 %v2498, %v2498
          %v2627 = vpack.c.b16 %v2499, %v2499
          %v2628 = vpack.c.b16 %v2500, %v2500
          %v2629 = vpack.c.b16 %v2501, %v2501
          %v2630 = vpack.c.b16 %v2502, %v2502
          %v2631 = vpack.c.b16 %v2503, %v2503
          %v2632 = vpack.c.b16 %v2504, %v2504
          %v2633 = vpack.c.b16 %v2505, %v2505
          %v2634 = vpack.c.b16 %v2506, %v2506
          %v2635 = vpack.c.b16 %v2507, %v2507
          %v2636 = vpack.c.b16 %v2508, %v2508
          %v2637 = vpack.c.b16 %v2509, %v2509
          %v2638 = vpack.c.b16 %v2510, %v2510
          %v2639 = vpack.c.b16 %v2511, %v2511
          %v2640 = vpack.c.b16 %v2512, %v2512
          %v2641 = vpack.c.b16 %v2513, %v2513
          %v2642 = vpack.c.b16 %v2514, %v2514
          %v2643 = vpack.c.b16 %v2515, %v2515
          %v2644 = vpack.c.b16 %v2516, %v2516
          %v2645 = vpack.c.b16 %v2517, %v2517
          %v2646 = vpack.c.b16 %v2518, %v2518
          %v2647 = vpack.c.b16 %v2519, %v2519
          %v2648 = vpack.c.b16 %v2520, %v2520
          %v2649 = vpack.c.b16 %v2521, %v2521
          %v2650 = vpack.c.b16 %v2522, %v2522
          %v2651 = vpack.c.b16 %v2523, %v2523
          %v2652 = vpack.c.b16 %v2524, %v2524
          %v2653 = vpack.c.b16 %v2525, %v2525
          %v2654 = vpack.c.b16 %v2526, %v2526
          %v2655 = vpack.c.b16 %v2527, %v2527
          %v2656 = vpack.c.b16 %v2528, %v2528
          %v2657 = vpack.c.b16 %v2529, %v2529
          %v2658 = vpack.c.b16 %v2530, %v2530
          %v2659 = vpack.c.b16 %v2531, %v2531
          %v2660 = vpack.c.b16 %v2532, %v2532
          %v2661 = vpack.c.b16 %v2533, %v2533
          %v2662 = vpack.c.b16 %v2534, %v2534
          %v2663 = vpack.c.b16 %v2535, %v2535
          %v2664 = vpack.c.b16 %v2536, %v2536
          %v2665 = vpack.c.b16 %v2537, %v2537
          %v2666 = vpack.c.b16 %v2538, %v2538
          %v2667 = vpack.c.b16 %v2539, %v2539
          %v2668 = vpack.c.b16 %v2540, %v2540
          %v2669 = vpack.c.b16 %v2541, %v2541
          %v2670 = vpack.c.b16 %v2542, %v2542
          %v2671 = vpack.c.b16 %v2543, %v2543
          %v2672 = vpack.c.b16 %v2544, %v2544
          %v2673 = vpack.c.b16 %v2545, %v2545
          %v2674 = vpack.c.b16 %v2546, %v2546
          %v2675 = vpack.c.b16 %v2547, %v2547
          %v2676 = vpack.c.b16 %v2548, %v2548
          %v2677 = vpack.c.b16 %v2549, %v2549
          %v2678 = vpack.c.b16 %v2550, %v2550
          %v2679 = vpack.c.b16 %v2551, %v2551
          %v2680 = vpack.c.b16 %v2552, %v2552
          %v2681 = vpack.c.b16 %v2553, %v2553
          %v2682 = vpack.c.b16 %v2554, %v2554
          %v2683 = vpack.c.b16 %v2555, %v2555
          %v2684 = vpack.c.b16 %v2556, %v2556
          %v2685 = vpack.c.b16 %v2557, %v2557
          %v2686 = vpack.c.b16 %v2558, %v2558
          %v2687 = vpack.c.b16 %v2559, %v2559
          %v2688 = vpack.c.b16 %v2560, %v2560
          %v2689 = vpack.c.b16 %v2561, %v2561
          %v2690 = vpack.c.b16 %v2562, %v2562
          %v2691 = vpack.c.b16 %v2563, %v2563
          %v2692 = vpack.c.b16 %v2564, %v2564
          %v2693 = vpack.c.b16 %v2565, %v2565
          %v2694 = vpack.c.b16 %v2566, %v2566
          %2823 = vst [vmem:[%s213] sm:$0xf] %v2567
          %2824 = vst [vmem:[%s213 + $0x4] sm:$0xf] %v2568
          %2825 = vst [vmem:[%s213 + $0x8] sm:$0xf] %v2569
          %2826 = vst [vmem:[%s213 + $0xc] sm:$0xf] %v2570
          %2827 = vst [vmem:[%s213 + $0x10] sm:$0xf] %v2571
          %2828 = vst [vmem:[%s213 + $0x14] sm:$0xf] %v2572
          %2829 = vst [vmem:[%s213 + $0x18] sm:$0xf] %v2573
          %2830 = vst [vmem:[%s213 + $0x1c] sm:$0xf] %v2574
          %2831 = vst [vmem:[%s213 + $0x20] sm:$0xf] %v2575
          %2832 = vst [vmem:[%s213 + $0x24] sm:$0xf] %v2576
          %2833 = vst [vmem:[%s213 + $0x28] sm:$0xf] %v2577
          %2834 = vst [vmem:[%s213 + $0x2c] sm:$0xf] %v2578
          %2835 = vst [vmem:[%s213 + $0x30] sm:$0xf] %v2579
          %2836 = vst [vmem:[%s213 + $0x34] sm:$0xf] %v2580
          %2837 = vst [vmem:[%s213 + $0x38] sm:$0xf] %v2581
          %2838 = vst [vmem:[%s213 + $0x3c] sm:$0xf] %v2582
          %2839 = vst [vmem:[%s213 + $0x40] sm:$0xf] %v2583
          %2840 = vst [vmem:[%s213 + $0x44] sm:$0xf] %v2584
          %2841 = vst [vmem:[%s213 + $0x48] sm:$0xf] %v2585
          %2842 = vst [vmem:[%s213 + $0x4c] sm:$0xf] %v2586
          %2843 = vst [vmem:[%s213 + $0x50] sm:$0xf] %v2587
          %2844 = vst [vmem:[%s213 + $0x54] sm:$0xf] %v2588
          %2845 = vst [vmem:[%s213 + $0x58] sm:$0xf] %v2589
          %2846 = vst [vmem:[%s213 + $0x5c] sm:$0xf] %v2590
          %2847 = vst [vmem:[%s213 + $0x60] sm:$0xf] %v2591
          %2848 = vst [vmem:[%s213 + $0x64] sm:$0xf] %v2592
          %2849 = vst [vmem:[%s213 + $0x68] sm:$0xf] %v2593
          %2850 = vst [vmem:[%s213 + $0x6c] sm:$0xf] %v2594
          %2851 = vst [vmem:[%s213 + $0x70] sm:$0xf] %v2595
          %2852 = vst [vmem:[%s213 + $0x74] sm:$0xf] %v2596
          %2853 = vst [vmem:[%s213 + $0x78] sm:$0xf] %v2597
          %2854 = vst [vmem:[%s213 + $0x7c] sm:$0xf] %v2598
          %2855 = vst [vmem:[%s213 + $0x80] sm:$0xf] %v2599
          %2856 = vst [vmem:[%s213 + $0x84] sm:$0xf] %v2600
          %2857 = vst [vmem:[%s213 + $0x88] sm:$0xf] %v2601
          %2858 = vst [vmem:[%s213 + $0x8c] sm:$0xf] %v2602
          %2859 = vst [vmem:[%s213 + $0x90] sm:$0xf] %v2603
          %2860 = vst [vmem:[%s213 + $0x94] sm:$0xf] %v2604
          %2861 = vst [vmem:[%s213 + $0x98] sm:$0xf] %v2605
          %2862 = vst [vmem:[%s213 + $0x9c] sm:$0xf] %v2606
          %2863 = vst [vmem:[%s213 + $0xa0] sm:$0xf] %v2607
          %2864 = vst [vmem:[%s213 + $0xa4] sm:$0xf] %v2608
          %2865 = vst [vmem:[%s213 + $0xa8] sm:$0xf] %v2609
          %2866 = vst [vmem:[%s213 + $0xac] sm:$0xf] %v2610
          %2867 = vst [vmem:[%s213 + $0xb0] sm:$0xf] %v2611
          %2868 = vst [vmem:[%s213 + $0xb4] sm:$0xf] %v2612
          %2869 = vst [vmem:[%s213 + $0xb8] sm:$0xf] %v2613
          %2870 = vst [vmem:[%s213 + $0xbc] sm:$0xf] %v2614
          %2871 = vst [vmem:[%s213 + $0xc0] sm:$0xf] %v2615
          %2872 = vst [vmem:[%s213 + $0xc4] sm:$0xf] %v2616
          %2873 = vst [vmem:[%s213 + $0xc8] sm:$0xf] %v2617
          %2874 = vst [vmem:[%s213 + $0xcc] sm:$0xf] %v2618
          %2875 = vst [vmem:[%s213 + $0xd0] sm:$0xf] %v2619
          %2876 = vst [vmem:[%s213 + $0xd4] sm:$0xf] %v2620
          %2877 = vst [vmem:[%s213 + $0xd8] sm:$0xf] %v2621
          %2878 = vst [vmem:[%s213 + $0xdc] sm:$0xf] %v2622
          %2879 = vst [vmem:[%s213 + $0xe0] sm:$0xf] %v2623
          %2880 = vst [vmem:[%s213 + $0xe4] sm:$0xf] %v2624
          %2881 = vst [vmem:[%s213 + $0xe8] sm:$0xf] %v2625
          %2882 = vst [vmem:[%s213 + $0xec] sm:$0xf] %v2626
          %2883 = vst [vmem:[%s213 + $0xf0] sm:$0xf] %v2627
          %2884 = vst [vmem:[%s213 + $0xf4] sm:$0xf] %v2628
          %2885 = vst [vmem:[%s213 + $0xf8] sm:$0xf] %v2629
          %2886 = vst [vmem:[%s213 + $0xfc] sm:$0xf] %v2630
          %2887 = vst [vmem:[%s213 + $0x100] sm:$0xf] %v2631
          %2888 = vst [vmem:[%s213 + $0x104] sm:$0xf] %v2632
          %2889 = vst [vmem:[%s213 + $0x108] sm:$0xf] %v2633
          %2890 = vst [vmem:[%s213 + $0x10c] sm:$0xf] %v2634
          %2891 = vst [vmem:[%s213 + $0x110] sm:$0xf] %v2635
          %2892 = vst [vmem:[%s213 + $0x114] sm:$0xf] %v2636
          %2893 = vst [vmem:[%s213 + $0x118] sm:$0xf] %v2637
          %2894 = vst [vmem:[%s213 + $0x11c] sm:$0xf] %v2638
          %2895 = vst [vmem:[%s213 + $0x120] sm:$0xf] %v2639
          %2896 = vst [vmem:[%s213 + $0x124] sm:$0xf] %v2640
          %2897 = vst [vmem:[%s213 + $0x128] sm:$0xf] %v2641
          %2898 = vst [vmem:[%s213 + $0x12c] sm:$0xf] %v2642
          %2899 = vst [vmem:[%s213 + $0x130] sm:$0xf] %v2643
          %2900 = vst [vmem:[%s213 + $0x134] sm:$0xf] %v2644
          %2901 = vst [vmem:[%s213 + $0x138] sm:$0xf] %v2645
          %2902 = vst [vmem:[%s213 + $0x13c] sm:$0xf] %v2646
          %2903 = vst [vmem:[%s213 + $0x140] sm:$0xf] %v2647
          %2904 = vst [vmem:[%s213 + $0x144] sm:$0xf] %v2648
          %2905 = vst [vmem:[%s213 + $0x148] sm:$0xf] %v2649
          %2906 = vst [vmem:[%s213 + $0x14c] sm:$0xf] %v2650
          %2907 = vst [vmem:[%s213 + $0x150] sm:$0xf] %v2651
          %2908 = vst [vmem:[%s213 + $0x154] sm:$0xf] %v2652
          %2909 = vst [vmem:[%s213 + $0x158] sm:$0xf] %v2653
          %2910 = vst [vmem:[%s213 + $0x15c] sm:$0xf] %v2654
          %2911 = vst [vmem:[%s213 + $0x160] sm:$0xf] %v2655
          %2912 = vst [vmem:[%s213 + $0x164] sm:$0xf] %v2656
          %2913 = vst [vmem:[%s213 + $0x168] sm:$0xf] %v2657
          %2914 = vst [vmem:[%s213 + $0x16c] sm:$0xf] %v2658
          %2915 = vst [vmem:[%s213 + $0x170] sm:$0xf] %v2659
          %2916 = vst [vmem:[%s213 + $0x174] sm:$0xf] %v2660
          %2917 = vst [vmem:[%s213 + $0x178] sm:$0xf] %v2661
          %2918 = vst [vmem:[%s213 + $0x17c] sm:$0xf] %v2662
          %2919 = vst [vmem:[%s213 + $0x180] sm:$0xf] %v2663
          %2920 = vst [vmem:[%s213 + $0x184] sm:$0xf] %v2664
          %2921 = vst [vmem:[%s213 + $0x188] sm:$0xf] %v2665
          %2922 = vst [vmem:[%s213 + $0x18c] sm:$0xf] %v2666
          %2923 = vst [vmem:[%s213 + $0x190] sm:$0xf] %v2667
          %2924 = vst [vmem:[%s213 + $0x194] sm:$0xf] %v2668
          %2925 = vst [vmem:[%s213 + $0x198] sm:$0xf] %v2669
          %2926 = vst [vmem:[%s213 + $0x19c] sm:$0xf] %v2670
          %2927 = vst [vmem:[%s213 + $0x1a0] sm:$0xf] %v2671
          %2928 = vst [vmem:[%s213 + $0x1a4] sm:$0xf] %v2672
          %2929 = vst [vmem:[%s213 + $0x1a8] sm:$0xf] %v2673
          %2930 = vst [vmem:[%s213 + $0x1ac] sm:$0xf] %v2674
          %2931 = vst [vmem:[%s213 + $0x1b0] sm:$0xf] %v2675
          %2932 = vst [vmem:[%s213 + $0x1b4] sm:$0xf] %v2676
          %2933 = vst [vmem:[%s213 + $0x1b8] sm:$0xf] %v2677
          %2934 = vst [vmem:[%s213 + $0x1bc] sm:$0xf] %v2678
          %2935 = vst [vmem:[%s213 + $0x1c0] sm:$0xf] %v2679
          %2936 = vst [vmem:[%s213 + $0x1c4] sm:$0xf] %v2680
          %2937 = vst [vmem:[%s213 + $0x1c8] sm:$0xf] %v2681
          %2938 = vst [vmem:[%s213 + $0x1cc] sm:$0xf] %v2682
          %2939 = vst [vmem:[%s213 + $0x1d0] sm:$0xf] %v2683
          %2940 = vst [vmem:[%s213 + $0x1d4] sm:$0xf] %v2684
          %2941 = vst [vmem:[%s213 + $0x1d8] sm:$0xf] %v2685
          %2942 = vst [vmem:[%s213 + $0x1dc] sm:$0xf] %v2686
          %2943 = vst [vmem:[%s213 + $0x1e0] sm:$0xf] %v2687
          %2944 = vst [vmem:[%s213 + $0x1e4] sm:$0xf] %v2688
          %2945 = vst [vmem:[%s213 + $0x1e8] sm:$0xf] %v2689
          %2946 = vst [vmem:[%s213 + $0x1ec] sm:$0xf] %v2690
          %2947 = vst [vmem:[%s213 + $0x1f0] sm:$0xf] %v2691
          %2948 = vst [vmem:[%s213 + $0x1f4] sm:$0xf] %v2692
          %2949 = vst [vmem:[%s213 + $0x1f8] sm:$0xf] %v2693
          %2950 = vst [vmem:[%s213 + $0x1fc] sm:$0xf] %v2694
        $region48: #{conv2d.1} parent=27 // pred_fallthru
          _
        %s2951 = sand.u32 %s105, 1
        %s2952 = scalar_lea.sflag [#allocation5], %s2951
        %s2953 = sand.u32 %s105, 1
        %s2954 = smul.addr %s2953, 512
        %s2955 = scalar_lea.vmem [#allocation8], %s2954
        // Predicated region
        $region49: #{conv2d.1} parent=27 // pred_check
          %p2956 = pneg %p115
        $region50: #{conv2d.1} parent=27 // pred_check_branch
          %2958 = sbr.rel (%p2956) target = $region52
        $region51: #{conv2d.1} parent=27 // pred_region
          %s2959 = smul.u32 128, %s25
          %s2961 = ssub.s32 8192, 8192
          %2962 = vsyncadd %s2952, %s2961
          %s2963 = sadd.s32 %s26, %s2959
          %s2964 = smul.addr %s2963, 64
          %s2965 = scalar_lea.hbm %s2, %s2964
          %s2966 = sshll.u32 %s2955, 4
          %s2967 = int_to_ptr.vmem [resolvable:$true] %s2966
          %2972 = dma.vmem_to_hbm [thread:$0]  %s2967, 8192, %s2965, %s2952, 64, 64, 4
        $region52: #{conv2d.1} parent=27 // pred_fallthru
          _
      $region28: #{conv2d.1} parent=5 // pred_fallthru
        _
      %p2973 = scmp.le.s32.totalorder 2, %s15
      // Predicated region
      $region53: #{conv2d.1} parent=5 // pred_check
        %p2974 = pneg %p2973
      $region54: #{conv2d.1} parent=5 // pred_check_branch
        %2976 = sbr.rel (%p2974) target = $region56
      $region55: #{conv2d.1} parent=5 // pred_region
        %s2977 = ssub.s32 %s15, 2
        // Predicated region
        $region57: #{conv2d.1} parent=55 // pred_check
          %p2978 = pneg %p121
        $region58: #{conv2d.1} parent=55 // pred_check_branch
          %2980 = sbr.rel (%p2978) target = $region60
        $region59: #{conv2d.1} parent=55 // pred_region
          %s2981 = sand.u32 %s106, 1
          %s2982 = scalar_lea.sflag [#allocation5], %s2981
          %s2983 = sand.u32 %s106, 1
          %s2984 = smul.addr %s2983, 512
          %s2985 = scalar_lea.vmem [#allocation8], %s2984
          %2986 = dma.done %s2982, 8192
        $region60: #{conv2d.1} parent=55 // pred_fallthru
          _
      $region56: #{conv2d.1} parent=5 // pred_fallthru
        _
    $region6: #{conv2d.1} parent=1 // loop_footer
      %s19 = sadd.s32 1, %s15
    $region7: #{conv2d.1} parent=1 // loop_footer_branch
      %14 = sbr.rel target = $region3
    $region8: #{conv2d.1} parent=1 // loop_exit
      _
    %2987 = vsyncpa [#allocation4], 1
    %s2988 = scalar_lea.sflag [#allocation4], 1
    %2989 = vsyncpa %s2988, 1
    %2990 = vsyncpa [#allocation7], 1
    %2991 = vsyncpa [#allocation5], 1
    %s2992 = scalar_lea.sflag [#allocation5], 1
    %2993 = vsyncpa %s2992, 1

</llo_original>
